<compile_context>
chip_gen: v6e
topology: v6e:2x2x1
jax: 0.10.0
libtpu: 0.0.40
codegen_flags: <defaults>
</compile_context>

<pallas_src>
import functools
import math

import jax
import jax.numpy as jnp
from jax import lax
from jax.experimental import pallas as pl
from jax.experimental.pallas import tpu as pltpu


# ----------------------------- Fused forward kernel ---------------------------
def _fused_attn_kernel(q_ref, k_ref, v_ref, m_ref,
                       wqT_ref, wkT_ref, wvT_ref, wfT_ref,
                       bq_ref, bk_ref, bv_ref, bf_ref,
                       x_ref, attn_ref,
                       kp_ref, vp_ref, w_ref,
                       *, n_heads, head_dim):
    qi = pl.program_id(1)

    # K/V projections depend only on the batch element (the k/v input blocks are
    # resident across the q-tile axis), so compute them once per batch element into
    # persistent VMEM scratch, stored bf16 so every per-head MXU push reads them
    # directly.  Legal because the qi grid axis is "arbitrary" (sequential per core).
    @pl.when(qi == 0)
    def _():
        xk = k_ref[0].astype(jnp.bfloat16)
        xv = v_ref[0].astype(jnp.bfloat16)
        kp_ref[...] = (jnp.dot(xk, wkT_ref[...],
                               preferred_element_type=jnp.float32)
                       + bk_ref[...]).astype(jnp.bfloat16)
        vp_ref[...] = (jnp.dot(xv, wvT_ref[...],
                               preferred_element_type=jnp.float32)
                       + bv_ref[...]).astype(jnp.bfloat16)

    # Q projection for this q-tile; 1/sqrt(head_dim) is already folded into wqT/bq.
    xq = q_ref[0].astype(jnp.bfloat16)
    Qp = (jnp.dot(xq, wqT_ref[...], preferred_element_type=jnp.float32)
          + bq_ref[...]).astype(jnp.bfloat16)                         # (Tq, D)

    # Mask hoisted out of the head loop, additive form (exp underflows to exactly 0
    # for masked keys, matching masked_fill(-1e10) for any row with >= 1 valid key).
    mask_add = jnp.where(m_ref[0] == 0, jnp.float32(-1e10), jnp.float32(0.0))

    for h in range(n_heads):                 # static unroll, static column slices
        lo = h * head_dim
        hi = lo + head_dim
        qh = Qp[:, lo:hi]                    # (Tq, Dh) bf16
        kh = kp_ref[:, lo:hi]                # (Sk, Dh) bf16
        vh = vp_ref[:, lo:hi]                # (Sk, Dh) bf16

        # (Tq, Sk) = qh . kh^T -- contract last axes, no explicit kh transpose.
        # TODO(synk): confirm via pl.lower_as_mlir that no per-head XLU transpose of
        # kh is emitted; if it is, materialize Kp^T once per batch element instead.
        energy = lax.dot_general(qh, kh, (((1,), (1,)), ((), ())),
                                 preferred_element_type=jnp.float32)
        energy = energy + mask_add

        # numerically-stable softmax over the key axis, in f32
        energy = energy - jnp.max(energy, axis=-1, keepdims=True)
        p = jnp.exp(energy)
        denom = jnp.sum(p, axis=-1, keepdims=True)
        attn_h = p * pl.reciprocal(denom, approx=False)   # exact: rows sum to 1

        attn_ref[0, h] = attn_h.astype(attn_ref.dtype)
        # Per-head write into the (Tq, D) slab: no lane-axis concatenate, the head
        # partial's live range ends here, and the final fc keeps its K=D contraction.
        w_ref[:, lo:hi] = jnp.dot(attn_h.astype(jnp.bfloat16), vh,
                                  preferred_element_type=jnp.float32
                                  ).astype(jnp.bfloat16)

    # Final fc on the merged (Tq, D) slab -> one MXU push with K = d_model.
    x_ref[0] = (jnp.dot(w_ref[...], wfT_ref[...],
                        preferred_element_type=jnp.float32) + bf_ref[...])


# ------------------------------ Parameter prep ---------------------------------
def prepare_params(params, n_heads):
    """One-time prep: transpose torch-layout (out, in) weights, cast them to bf16
    (MXU-native on v5e/v6e/v7x, halves resident weight VMEM), fold 1/sqrt(head_dim)
    into the Q projection, 2D-ify the f32 biases."""
    d_model = params["wq"].shape[0]
    inv_scale = 1.0 / math.sqrt(d_model // n_heads)
    return {
        "wqT": (params["wq"].T * inv_scale).astype(jnp.bfloat16),
        "wkT": params["wk"].T.astype(jnp.bfloat16),
        "wvT": params["wv"].T.astype(jnp.bfloat16),
        "wfT": params["wf"].T.astype(jnp.bfloat16),
        "bq": (params["bq"] * inv_scale).reshape(1, -1).astype(jnp.float32),
        "bk": params["bk"].reshape(1, -1).astype(jnp.float32),
        "bv": params["bv"].reshape(1, -1).astype(jnp.float32),
        "bf": params["bf"].reshape(1, -1).astype(jnp.float32),
    }


# ------------------------------- Tile selection ---------------------------------
def _choose_tq(sq, sk, d, n_heads, attn_itemsize, budget_bytes=12 * 1024 * 1024):
    """Largest q-tile whose per-step (double-buffered) q/x/attn blocks fit the budget.
    Tq must divide Sq and be a multiple of 8 (sublane) unless it equals Sq."""
    def step_bytes(tq):
        return 2 * (tq * d * 4                         # q input block
                    + tq * d * 4                       # x output block
                    + n_heads * tq * sk * attn_itemsize)   # attention output block
    cands = [t for t in range(sq, 0, -1)
             if sq % t == 0 and (t == sq or t % 8 == 0)]
    for t in cands:
        if step_bytes(t) <= budget_bytes:
            return t
    return cands[-1]


# ------------------------------ Module wrapper ----------------------------------
def self_attention(prep, query, key, value, mask=None, *, n_heads,
                   attn_dtype=jnp.float32):
    B, Sq, D = query.shape
    Sk = key.shape[1]
    head_dim = D // n_heads

    # Compact mask: (B, mq, Sk) with mq in {1, Sq}; broadcast happens in the kernel.
    if mask is None:
        mask_b = jnp.ones((B, 1, Sk), dtype=jnp.int32)
    else:
        m = jnp.asarray(mask, dtype=jnp.int32)
        if m.ndim == 4:            # torch-style (B, 1, 1 or Sq, Sk)
            m = m[:, 0]
        mask_b = jnp.broadcast_to(m, (B, m.shape[-2], Sk))
    mq = mask_b.shape[1]

    attn_itemsize = jnp.dtype(attn_dtype).itemsize
    Tq = _choose_tq(Sq, Sk, D, n_heads, attn_itemsize)
    n_qt = Sq // Tq
    m_blk = 1 if mq == 1 else Tq

    kernel = functools.partial(_fused_attn_kernel, n_heads=n_heads,
                               head_dim=head_dim)

    # VMEM budget estimate: double-buffered per-step blocks + resident k/v + weights
    # + persistent scratch + headroom.  Only raised above the 32 MiB scoped default
    # when actually needed; capped below every generation's physical VMEM.
    step_bytes = 2 * (2 * Tq * D * 4 + n_heads * Tq * Sk * attn_itemsize
                      + m_blk * Sk * 4)
    kv_bytes = 2 * 2 * Sk * D * 4
    weight_bytes = 2 * (4 * D * D * 2 + 4 * D * 4)
    scratch_bytes = 2 * Sk * D * 2 + Tq * D * 2
    vmem_limit = min(max(step_bytes + kv_bytes + weight_bytes + scratch_bytes
                         + (4 << 20), 32 << 20), 98 << 20)

    def _build_and_call(single_buffer_weights):
        def _resident(shape):
            ndim = len(shape)
            index_map = lambda b, qi: (0,) * ndim
            if single_buffer_weights:
                # Block index never changes -> one buffer is enough (halves their VMEM).
                return pl.BlockSpec(shape, index_map,
                                    pipeline_mode=pl.Buffered(1))
            return pl.BlockSpec(shape, index_map)

        mask_spec = (pl.BlockSpec((1, 1, Sk), lambda b, qi: (b, 0, 0)) if mq == 1
                     else pl.BlockSpec((1, Tq, Sk), lambda b, qi: (b, qi, 0)))

        return pl.pallas_call(
            kernel,
            out_shape=(
                jax.ShapeDtypeStruct((B, Sq, D), jnp.float32),
                jax.ShapeDtypeStruct((B, n_heads, Sq, Sk), attn_dtype),
            ),
            grid=(B, n_qt),
            in_specs=[
                pl.BlockSpec((1, Tq, D), lambda b, qi: (b, qi, 0)),   # q tile
                pl.BlockSpec((1, Sk, D), lambda b, qi: (b, 0, 0)),    # k (resident per b)
                pl.BlockSpec((1, Sk, D), lambda b, qi: (b, 0, 0)),    # v (resident per b)
                mask_spec,
                _resident((D, D)), _resident((D, D)),
                _resident((D, D)), _resident((D, D)),
                _resident((1, D)), _resident((1, D)),
                _resident((1, D)), _resident((1, D)),
            ],
            out_specs=(
                pl.BlockSpec((1, Tq, D), lambda b, qi: (b, qi, 0)),
                pl.BlockSpec((1, n_heads, Tq, Sk), lambda b, qi: (b, 0, qi, 0)),
            ),
            scratch_shapes=[
                pltpu.VMEM((Sk, D), jnp.bfloat16),   # Kp -- persists across q tiles
                pltpu.VMEM((Sk, D), jnp.bfloat16),   # Vp -- persists across q tiles
                pltpu.VMEM((Tq, D), jnp.bfloat16),   # merged-head slab
            ],
            compiler_params=pltpu.CompilerParams(
                # b is "parallel" (megacore); qi is "arbitrary" because the Kp/Vp
                # scratch carry (computed once per batch element) requires the q-tile
                # axis to run sequentially on one core.
                dimension_semantics=("parallel", "arbitrary"),
                vmem_limit_bytes=vmem_limit,
            ),
        )(query, key, value, mask_b,
          prep["wqT"], prep["wkT"], prep["wvT"], prep["wfT"],
          prep["bq"], prep["bk"], prep["bv"], prep["bf"])

    try:
        return _build_and_call(True)
    except Exception:
        # pipeline_mode=pl.Buffered(1) unsupported on this jax/backend version ->
        # fall back to default double-buffered weights (identical numerics).
        return _build_and_call(False)


# -------------------------------- Reference ------------------------------------
def self_attention_ref(params, query, key, value, mask, *, n_heads):
    B, Sq, D = query.shape
    Sk = key.shape[1]
    hd = D // n_heads
    Q = query @ params["wq"].T + params["bq"]
    K = key @ params["wk"].T + params["bk"]
    V = value @ params["wv"].T + params["bv"]
    Q = Q.reshape(B, Sq, n_heads, hd).transpose(0, 2, 1, 3)
    K = K.reshape(B, Sk, n_heads, hd).transpose(0, 2, 1, 3)
    V = V.reshape(B, Sk, n_heads, hd).transpose(0, 2, 1, 3)
    energy = jnp.einsum("bhqd,bhkd->bhqk", Q, K) / math.sqrt(hd)
    if mask is not None:
        energy = jnp.where(mask == 0, -1e10, energy)
    attn = jax.nn.softmax(energy, axis=-1)
    weighted = jnp.einsum("bhqk,bhkd->bhqd", attn, V)
    x = weighted.transpose(0, 2, 1, 3).reshape(B, Sq, D)
    x = x @ params["wf"].T + params["bf"]
    return x, attn


# --------------------------------- Main -----------------------------------------
if __name__ == "__main__":
    B, S, d_model, n_heads = 2, 8, 32, 4

    key0 = jax.random.PRNGKey(0)
    ks = jax.random.split(key0, 12)

    def init_w(k):
        return jax.random.normal(k, (d_model, d_model), jnp.float32) * 0.05

    def init_b(k):
        return jax.random.normal(k, (d_model,), jnp.float32) * 0.01

    params = {
        "wq": init_w(ks[0]), "bq": init_b(ks[1]),
        "wk": init_w(ks[2]), "bk": init_b(ks[3]),
        "wv": init_w(ks[4]), "bv": init_b(ks[5]),
        "wf": init_w(ks[6]), "bf": init_b(ks[7]),
    }
    prep = prepare_params(params, n_heads)   # one-time transpose / bf16 / scale fold

    query = jax.random.normal(ks[8], (B, S, d_model), jnp.float32)
    key_in = jax.random.normal(ks[9], (B, S, d_model), jnp.float32)
    value = jax.random.normal(ks[10], (B, S, d_model), jnp.float32)

    # padding-style mask: (B, 1, 1, S); second batch element has 2 padded positions
    valid = jnp.array([[1] * 8, [1] * 6 + [0] * 2], dtype=jnp.int32)
    mask = valid[:, None, None, :]  # (B, 1, 1, S)

    x, attn = self_attention(prep, query, key_in, value, mask, n_heads=n_heads)
    x = jax.block_until_ready(x)
    attn = jax.block_until_ready(attn)

    x_ref, attn_ref = self_attention_ref(
        params, query, key_in, value, mask, n_heads=n_heads
    )
    assert x.shape == (B, S, d_model) and attn.shape == (B, n_heads, S, S)
    # tolerances account for bf16 MXU operands (f32 accumulation)
    assert jnp.allclose(x, x_ref, atol=2e-2, rtol=2e-2)
    assert jnp.allclose(attn, attn_ref, atol=2e-2, rtol=2e-2)

    print("KERNEL_OK")
</pallas_src>

<mosaic_0001>
module attributes {stable_mosaic.version = 11 : i64} {
  func.func @_fused_attn_kernel(%arg0: i32, %arg1: i32, %arg2: memref<1x8x32xf32, #tpu.memory_space<vmem>>, %arg3: memref<1x8x32xf32, #tpu.memory_space<vmem>>, %arg4: memref<1x8x32xf32, #tpu.memory_space<vmem>>, %arg5: memref<1x1x8xi32, #tpu.memory_space<vmem>>, %arg6: memref<32x32xbf16, #tpu.memory_space<vmem>>, %arg7: memref<32x32xbf16, #tpu.memory_space<vmem>>, %arg8: memref<32x32xbf16, #tpu.memory_space<vmem>>, %arg9: memref<32x32xbf16, #tpu.memory_space<vmem>>, %arg10: memref<1x32xf32, #tpu.memory_space<vmem>>, %arg11: memref<1x32xf32, #tpu.memory_space<vmem>>, %arg12: memref<1x32xf32, #tpu.memory_space<vmem>>, %arg13: memref<1x32xf32, #tpu.memory_space<vmem>>, %arg14: memref<1x8x32xf32, #tpu.memory_space<vmem>>, %arg15: memref<1x4x8x8xf32, #tpu.memory_space<vmem>>, %arg16: memref<8x32xbf16, #tpu.memory_space<vmem>>, %arg17: memref<8x32xbf16, #tpu.memory_space<vmem>>, %arg18: memref<8x32xbf16, #tpu.memory_space<vmem>>) attributes {dimension_semantics = [#tpu.dimension_semantics<parallel>, #tpu.dimension_semantics<arbitrary>], iteration_bounds = array<i64: 2, 1>, scalar_prefetch = 0 : i64, scratch_operands = 3 : i64, tpu.core_type = #tpu.core_type<tc>, window_params = [{transform_indices = @transform_0, window_bounds = array<i64: 1, 8, 32>}, {transform_indices = @transform_1, window_bounds = array<i64: 1, 8, 32>}, {transform_indices = @transform_2, window_bounds = array<i64: 1, 8, 32>}, {transform_indices = @transform_3, window_bounds = array<i64: 1, 1, 8>}, {pipeline_mode = #tpu.pipeline_mode<synchronous>, transform_indices = @transform_4, window_bounds = array<i64: 32, 32>}, {pipeline_mode = #tpu.pipeline_mode<synchronous>, transform_indices = @transform_5, window_bounds = array<i64: 32, 32>}, {pipeline_mode = #tpu.pipeline_mode<synchronous>, transform_indices = @transform_6, window_bounds = array<i64: 32, 32>}, {pipeline_mode = #tpu.pipeline_mode<synchronous>, transform_indices = @transform_7, window_bounds = array<i64: 32, 32>}, {pipeline_mode = #tpu.pipeline_mode<synchronous>, transform_indices = @transform_8, window_bounds = array<i64: 1, 32>}, {pipeline_mode = #tpu.pipeline_mode<synchronous>, transform_indices = @transform_9, window_bounds = array<i64: 1, 32>}, {pipeline_mode = #tpu.pipeline_mode<synchronous>, transform_indices = @transform_10, window_bounds = array<i64: 1, 32>}, {pipeline_mode = #tpu.pipeline_mode<synchronous>, transform_indices = @transform_11, window_bounds = array<i64: 1, 32>}, {transform_indices = @transform_12, window_bounds = array<i64: 1, 8, 32>}, {transform_indices = @transform_13, window_bounds = array<i64: 1, 4, 8, 8>}]} {
    %c0_i32 = arith.constant 0 : i32
    %0 = arith.cmpi eq, %arg1, %c0_i32 : i32
    %1 = arith.extui %0 : i1 to i32
    %c0_i32_0 = arith.constant 0 : i32
    %2 = arith.cmpi ne, %1, %c0_i32_0 : i32
    scf.if %2 {
      %c0_73 = arith.constant 0 : index
      %c0_74 = arith.constant 0 : index
      %c0_75 = arith.constant 0 : index
      %120 = vector.load %arg3[%c0_73, %c0_74, %c0_75] : memref<1x8x32xf32, #tpu.memory_space<vmem>>, vector<1x8x32xf32>
      %121 = vector.shape_cast %120 : vector<1x8x32xf32> to vector<8x32xf32>
      %122 = arith.truncf %121 : vector<8x32xf32> to vector<8x32xbf16>
      %c0_76 = arith.constant 0 : index
      %c0_77 = arith.constant 0 : index
      %c0_78 = arith.constant 0 : index
      %123 = vector.load %arg4[%c0_76, %c0_77, %c0_78] : memref<1x8x32xf32, #tpu.memory_space<vmem>>, vector<1x8x32xf32>
      %124 = vector.shape_cast %123 : vector<1x8x32xf32> to vector<8x32xf32>
      %125 = arith.truncf %124 : vector<8x32xf32> to vector<8x32xbf16>
      %c0_79 = arith.constant 0 : index
      %c0_80 = arith.constant 0 : index
      %126 = vector.load %arg7[%c0_79, %c0_80] : memref<32x32xbf16, #tpu.memory_space<vmem>>, vector<32x32xbf16>
      %cst_81 = arith.constant dense<0.000000e+00> : vector<8x32xf32>
      %127 = tpu.matmul %122, %126, %cst_81 {dimension_numbers = #tpu.dot_dimension_numbers<[1], [0], [0], [1], [0, 0, 1, 1], [], []>} : vector<8x32xbf16>, vector<32x32xbf16>, vector<8x32xf32> -> vector<8x32xf32>
      %c0_82 = arith.constant 0 : index
      %c0_83 = arith.constant 0 : index
      %128 = vector.load %arg11[%c0_82, %c0_83] : memref<1x32xf32, #tpu.memory_space<vmem>>, vector<1x32xf32>
      %129 = vector.broadcast %128 : vector<1x32xf32> to vector<8x32xf32>
      %130 = arith.addf %127, %129 : vector<8x32xf32>
      %131 = arith.truncf %130 : vector<8x32xf32> to vector<8x32xbf16>
      %c0_84 = arith.constant 0 : index
      %c0_85 = arith.constant 0 : index
      %132 = vector.load %arg16[%c0_84, %c0_85] : memref<8x32xbf16, #tpu.memory_space<vmem>>, vector<8x32xbf16>
      tpu.vector_store %arg16[%c0_84, %c0_85], %131 {strides = array<i32>} : memref<8x32xbf16, #tpu.memory_space<vmem>>, vector<8x32xbf16>,
      %c0_86 = arith.constant 0 : index
      %c0_87 = arith.constant 0 : index
      %133 = vector.load %arg8[%c0_86, %c0_87] : memref<32x32xbf16, #tpu.memory_space<vmem>>, vector<32x32xbf16>
      %cst_88 = arith.constant dense<0.000000e+00> : vector<8x32xf32>
      %134 = tpu.matmul %125, %133, %cst_88 {dimension_numbers = #tpu.dot_dimension_numbers<[1], [0], [0], [1], [0, 0, 1, 1], [], []>} : vector<8x32xbf16>, vector<32x32xbf16>, vector<8x32xf32> -> vector<8x32xf32>
      %c0_89 = arith.constant 0 : index
      %c0_90 = arith.constant 0 : index
      %135 = vector.load %arg12[%c0_89, %c0_90] : memref<1x32xf32, #tpu.memory_space<vmem>>, vector<1x32xf32>
      %136 = vector.broadcast %135 : vector<1x32xf32> to vector<8x32xf32>
      %137 = arith.addf %134, %136 : vector<8x32xf32>
      %138 = arith.truncf %137 : vector<8x32xf32> to vector<8x32xbf16>
      %c0_91 = arith.constant 0 : index
      %c0_92 = arith.constant 0 : index
      %139 = vector.load %arg17[%c0_91, %c0_92] : memref<8x32xbf16, #tpu.memory_space<vmem>>, vector<8x32xbf16>
      tpu.vector_store %arg17[%c0_91, %c0_92], %138 {strides = array<i32>} : memref<8x32xbf16, #tpu.memory_space<vmem>>, vector<8x32xbf16>,
    } else {
    }
    %c0 = arith.constant 0 : index
    %c0_1 = arith.constant 0 : index
    %c0_2 = arith.constant 0 : index
    %3 = vector.load %arg2[%c0, %c0_1, %c0_2] : memref<1x8x32xf32, #tpu.memory_space<vmem>>, vector<1x8x32xf32>
    %4 = vector.shape_cast %3 : vector<1x8x32xf32> to vector<8x32xf32>
    %5 = arith.truncf %4 : vector<8x32xf32> to vector<8x32xbf16>
    %c0_3 = arith.constant 0 : index
    %c0_4 = arith.constant 0 : index
    %6 = vector.load %arg6[%c0_3, %c0_4] : memref<32x32xbf16, #tpu.memory_space<vmem>>, vector<32x32xbf16>
    %cst = arith.constant dense<0.000000e+00> : vector<8x32xf32>
    %7 = tpu.matmul %5, %6, %cst {dimension_numbers = #tpu.dot_dimension_numbers<[1], [0], [0], [1], [0, 0, 1, 1], [], []>} : vector<8x32xbf16>, vector<32x32xbf16>, vector<8x32xf32> -> vector<8x32xf32>
    %c0_5 = arith.constant 0 : index
    %c0_6 = arith.constant 0 : index
    %8 = vector.load %arg10[%c0_5, %c0_6] : memref<1x32xf32, #tpu.memory_space<vmem>>, vector<1x32xf32>
    %9 = vector.broadcast %8 : vector<1x32xf32> to vector<8x32xf32>
    %10 = arith.addf %7, %9 : vector<8x32xf32>
    %11 = arith.truncf %10 : vector<8x32xf32> to vector<8x32xbf16>
    %c0_7 = arith.constant 0 : index
    %c0_8 = arith.constant 0 : index
    %c0_9 = arith.constant 0 : index
    %12 = vector.load %arg5[%c0_7, %c0_8, %c0_9] : memref<1x1x8xi32, #tpu.memory_space<vmem>>, vector<1x1x8xi32>
    %13 = vector.shape_cast %12 : vector<1x1x8xi32> to vector<1x8xi32>
    %c0_i32_10 = arith.constant 0 : i32
    %14 = vector.broadcast %c0_i32_10 : i32 to vector<1x8xi32>
    %15 = arith.cmpi eq, %13, %14 : vector<1x8xi32>
    %cst_11 = arith.constant -1.000000e+10 : f32
    %cst_12 = arith.constant 0.000000e+00 : f32
    %16 = vector.broadcast %cst_11 : f32 to vector<1x8xf32>
    %17 = vector.broadcast %cst_12 : f32 to vector<1x8xf32>
    %18 = arith.select %15, %16, %17 : vector<1x8xi1>, vector<1x8xf32>
    %19 = vector.extract_strided_slice %11 {offsets = [0, 0], sizes = [8, 8], strides = [1, 1]} : vector<8x32xbf16> to vector<8x8xbf16>
    %c0_13 = arith.constant 0 : index
    %c0_14 = arith.constant 0 : index
    %20 = vector.load %arg16[%c0_13, %c0_14] : memref<8x32xbf16, #tpu.memory_space<vmem>>, vector<8x8xbf16>
    %c0_15 = arith.constant 0 : index
    %c0_16 = arith.constant 0 : index
    %21 = vector.load %arg17[%c0_15, %c0_16] : memref<8x32xbf16, #tpu.memory_space<vmem>>, vector<8x8xbf16>
    %cst_17 = arith.constant dense<0.000000e+00> : vector<8x8xf32>
    %22 = tpu.matmul %19, %20, %cst_17 {dimension_numbers = #tpu.dot_dimension_numbers<[1], [1], [0], [0], [0, 0, 1, 0], [], []>} : vector<8x8xbf16>, vector<8x8xbf16>, vector<8x8xf32> -> vector<8x8xf32>
    %23 = vector.broadcast %18 : vector<1x8xf32> to vector<8x8xf32>
    %24 = arith.addf %22, %23 : vector<8x8xf32>
    %cst_18 = arith.constant dense<0xFF800000> : vector<8xf32>
    %25 = vector.multi_reduction <maximumf>, %24, %cst_18 [1] : vector<8x8xf32> to vector<8xf32>
    %26 = vector.shape_cast %25 : vector<8xf32> to vector<8x1xf32>
    %27 = vector.broadcast %26 : vector<8x1xf32> to vector<8x8xf32>
    %28 = arith.subf %24, %27 : vector<8x8xf32>
    %29 = math.exp %28 : vector<8x8xf32>
    %cst_19 = arith.constant dense<0.000000e+00> : vector<8xf32>
    %30 = vector.multi_reduction <add>, %29, %cst_19 [1] : vector<8x8xf32> to vector<8xf32>
    %31 = vector.shape_cast %30 : vector<8xf32> to vector<8x1xf32>
    %32 = tpu.reciprocal %31 : vector<8x1xf32> -> vector<8x1xf32>
    %33 = vector.broadcast %32 : vector<8x1xf32> to vector<8x8xf32>
    %34 = arith.mulf %29, %33 : vector<8x8xf32>
    %c0_20 = arith.constant 0 : index
    %c0_21 = arith.constant 0 : index
    %c0_22 = arith.constant 0 : index
    %c0_23 = arith.constant 0 : index
    %35 = vector.load %arg15[%c0_20, %c0_21, %c0_22, %c0_23] : memref<1x4x8x8xf32, #tpu.memory_space<vmem>>, vector<1x1x8x8xf32>
    %36 = vector.shape_cast %35 : vector<1x1x8x8xf32> to vector<8x8xf32>
    %37 = vector.shape_cast %34 : vector<8x8xf32> to vector<1x1x8x8xf32>
    tpu.vector_store %arg15[%c0_20, %c0_21, %c0_22, %c0_23], %37 {strides = array<i32>} : memref<1x4x8x8xf32, #tpu.memory_space<vmem>>, vector<1x1x8x8xf32>,
    %38 = arith.truncf %34 : vector<8x8xf32> to vector<8x8xbf16>
    %cst_24 = arith.constant dense<0.000000e+00> : vector<8x8xf32>
    %39 = tpu.matmul %38, %21, %cst_24 {dimension_numbers = #tpu.dot_dimension_numbers<[1], [0], [0], [1], [0, 0, 1, 1], [], []>} : vector<8x8xbf16>, vector<8x8xbf16>, vector<8x8xf32> -> vector<8x8xf32>
    %40 = arith.truncf %39 : vector<8x8xf32> to vector<8x8xbf16>
    %c0_25 = arith.constant 0 : index
    %c0_26 = arith.constant 0 : index
    %41 = vector.load %arg18[%c0_25, %c0_26] : memref<8x32xbf16, #tpu.memory_space<vmem>>, vector<8x8xbf16>
    tpu.vector_store %arg18[%c0_25, %c0_26], %40 {strides = array<i32>} : memref<8x32xbf16, #tpu.memory_space<vmem>>, vector<8x8xbf16>,
    %42 = vector.extract_strided_slice %11 {offsets = [0, 8], sizes = [8, 8], strides = [1, 1]} : vector<8x32xbf16> to vector<8x8xbf16>
    %c0_27 = arith.constant 0 : index
    %c8 = arith.constant 8 : index
    %43 = vector.load %arg16[%c0_27, %c8] : memref<8x32xbf16, #tpu.memory_space<vmem>>, vector<8x8xbf16>
    %c0_28 = arith.constant 0 : index
    %c8_29 = arith.constant 8 : index
    %44 = vector.load %arg17[%c0_28, %c8_29] : memref<8x32xbf16, #tpu.memory_space<vmem>>, vector<8x8xbf16>
    %cst_30 = arith.constant dense<0.000000e+00> : vector<8x8xf32>
    %45 = tpu.matmul %42, %43, %cst_30 {dimension_numbers = #tpu.dot_dimension_numbers<[1], [1], [0], [0], [0, 0, 1, 0], [], []>} : vector<8x8xbf16>, vector<8x8xbf16>, vector<8x8xf32> -> vector<8x8xf32>
    %46 = vector.broadcast %18 : vector<1x8xf32> to vector<8x8xf32>
    %47 = arith.addf %45, %46 : vector<8x8xf32>
    %cst_31 = arith.constant dense<0xFF800000> : vector<8xf32>
    %48 = vector.multi_reduction <maximumf>, %47, %cst_31 [1] : vector<8x8xf32> to vector<8xf32>
    %49 = vector.shape_cast %48 : vector<8xf32> to vector<8x1xf32>
    %50 = vector.broadcast %49 : vector<8x1xf32> to vector<8x8xf32>
    %51 = arith.subf %47, %50 : vector<8x8xf32>
    %52 = math.exp %51 : vector<8x8xf32>
    %cst_32 = arith.constant dense<0.000000e+00> : vector<8xf32>
    %53 = vector.multi_reduction <add>, %52, %cst_32 [1] : vector<8x8xf32> to vector<8xf32>
    %54 = vector.shape_cast %53 : vector<8xf32> to vector<8x1xf32>
    %55 = tpu.reciprocal %54 : vector<8x1xf32> -> vector<8x1xf32>
    %56 = vector.broadcast %55 : vector<8x1xf32> to vector<8x8xf32>
    %57 = arith.mulf %52, %56 : vector<8x8xf32>
    %c0_33 = arith.constant 0 : index
    %c1 = arith.constant 1 : index
    %c0_34 = arith.constant 0 : index
    %c0_35 = arith.constant 0 : index
    %58 = vector.load %arg15[%c0_33, %c1, %c0_34, %c0_35] : memref<1x4x8x8xf32, #tpu.memory_space<vmem>>, vector<1x1x8x8xf32>
    %59 = vector.shape_cast %58 : vector<1x1x8x8xf32> to vector<8x8xf32>
    %60 = vector.shape_cast %57 : vector<8x8xf32> to vector<1x1x8x8xf32>
    tpu.vector_store %arg15[%c0_33, %c1, %c0_34, %c0_35], %60 {strides = array<i32>} : memref<1x4x8x8xf32, #tpu.memory_space<vmem>>, vector<1x1x8x8xf32>,
    %61 = arith.truncf %57 : vector<8x8xf32> to vector<8x8xbf16>
    %cst_36 = arith.constant dense<0.000000e+00> : vector<8x8xf32>
    %62 = tpu.matmul %61, %44, %cst_36 {dimension_numbers = #tpu.dot_dimension_numbers<[1], [0], [0], [1], [0, 0, 1, 1], [], []>} : vector<8x8xbf16>, vector<8x8xbf16>, vector<8x8xf32> -> vector<8x8xf32>
    %63 = arith.truncf %62 : vector<8x8xf32> to vector<8x8xbf16>
    %c0_37 = arith.constant 0 : index
    %c8_38 = arith.constant 8 : index
    %64 = vector.load %arg18[%c0_37, %c8_38] : memref<8x32xbf16, #tpu.memory_space<vmem>>, vector<8x8xbf16>
    tpu.vector_store %arg18[%c0_37, %c8_38], %63 {strides = array<i32>} : memref<8x32xbf16, #tpu.memory_space<vmem>>, vector<8x8xbf16>,
    %65 = vector.extract_strided_slice %11 {offsets = [0, 16], sizes = [8, 8], strides = [1, 1]} : vector<8x32xbf16> to vector<8x8xbf16>
    %c0_39 = arith.constant 0 : index
    %c16 = arith.constant 16 : index
    %66 = vector.load %arg16[%c0_39, %c16] : memref<8x32xbf16, #tpu.memory_space<vmem>>, vector<8x8xbf16>
    %c0_40 = arith.constant 0 : index
    %c16_41 = arith.constant 16 : index
    %67 = vector.load %arg17[%c0_40, %c16_41] : memref<8x32xbf16, #tpu.memory_space<vmem>>, vector<8x8xbf16>
    %cst_42 = arith.constant dense<0.000000e+00> : vector<8x8xf32>
    %68 = tpu.matmul %65, %66, %cst_42 {dimension_numbers = #tpu.dot_dimension_numbers<[1], [1], [0], [0], [0, 0, 1, 0], [], []>} : vector<8x8xbf16>, vector<8x8xbf16>, vector<8x8xf32> -> vector<8x8xf32>
    %69 = vector.broadcast %18 : vector<1x8xf32> to vector<8x8xf32>
    %70 = arith.addf %68, %69 : vector<8x8xf32>
    %cst_43 = arith.constant dense<0xFF800000> : vector<8xf32>
    %71 = vector.multi_reduction <maximumf>, %70, %cst_43 [1] : vector<8x8xf32> to vector<8xf32>
    %72 = vector.shape_cast %71 : vector<8xf32> to vector<8x1xf32>
    %73 = vector.broadcast %72 : vector<8x1xf32> to vector<8x8xf32>
    %74 = arith.subf %70, %73 : vector<8x8xf32>
    %75 = math.exp %74 : vector<8x8xf32>
    %cst_44 = arith.constant dense<0.000000e+00> : vector<8xf32>
    %76 = vector.multi_reduction <add>, %75, %cst_44 [1] : vector<8x8xf32> to vector<8xf32>
    %77 = vector.shape_cast %76 : vector<8xf32> to vector<8x1xf32>
    %78 = tpu.reciprocal %77 : vector<8x1xf32> -> vector<8x1xf32>
    %79 = vector.broadcast %78 : vector<8x1xf32> to vector<8x8xf32>
    %80 = arith.mulf %75, %79 : vector<8x8xf32>
    %c0_45 = arith.constant 0 : index
    %c2 = arith.constant 2 : index
    %c0_46 = arith.constant 0 : index
    %c0_47 = arith.constant 0 : index
    %81 = vector.load %arg15[%c0_45, %c2, %c0_46, %c0_47] : memref<1x4x8x8xf32, #tpu.memory_space<vmem>>, vector<1x1x8x8xf32>
    %82 = vector.shape_cast %81 : vector<1x1x8x8xf32> to vector<8x8xf32>
    %83 = vector.shape_cast %80 : vector<8x8xf32> to vector<1x1x8x8xf32>
    tpu.vector_store %arg15[%c0_45, %c2, %c0_46, %c0_47], %83 {strides = array<i32>} : memref<1x4x8x8xf32, #tpu.memory_space<vmem>>, vector<1x1x8x8xf32>,
    %84 = arith.truncf %80 : vector<8x8xf32> to vector<8x8xbf16>
    %cst_48 = arith.constant dense<0.000000e+00> : vector<8x8xf32>
    %85 = tpu.matmul %84, %67, %cst_48 {dimension_numbers = #tpu.dot_dimension_numbers<[1], [0], [0], [1], [0, 0, 1, 1], [], []>} : vector<8x8xbf16>, vector<8x8xbf16>, vector<8x8xf32> -> vector<8x8xf32>
    %86 = arith.truncf %85 : vector<8x8xf32> to vector<8x8xbf16>
    %c0_49 = arith.constant 0 : index
    %c16_50 = arith.constant 16 : index
    %87 = vector.load %arg18[%c0_49, %c16_50] : memref<8x32xbf16, #tpu.memory_space<vmem>>, vector<8x8xbf16>
    tpu.vector_store %arg18[%c0_49, %c16_50], %86 {strides = array<i32>} : memref<8x32xbf16, #tpu.memory_space<vmem>>, vector<8x8xbf16>,
    %88 = vector.extract_strided_slice %11 {offsets = [0, 24], sizes = [8, 8], strides = [1, 1]} : vector<8x32xbf16> to vector<8x8xbf16>
    %c0_51 = arith.constant 0 : index
    %c24 = arith.constant 24 : index
    %89 = vector.load %arg16[%c0_51, %c24] : memref<8x32xbf16, #tpu.memory_space<vmem>>, vector<8x8xbf16>
    %c0_52 = arith.constant 0 : index
    %c24_53 = arith.constant 24 : index
    %90 = vector.load %arg17[%c0_52, %c24_53] : memref<8x32xbf16, #tpu.memory_space<vmem>>, vector<8x8xbf16>
    %cst_54 = arith.constant dense<0.000000e+00> : vector<8x8xf32>
    %91 = tpu.matmul %88, %89, %cst_54 {dimension_numbers = #tpu.dot_dimension_numbers<[1], [1], [0], [0], [0, 0, 1, 0], [], []>} : vector<8x8xbf16>, vector<8x8xbf16>, vector<8x8xf32> -> vector<8x8xf32>
    %92 = vector.broadcast %18 : vector<1x8xf32> to vector<8x8xf32>
    %93 = arith.addf %91, %92 : vector<8x8xf32>
    %cst_55 = arith.constant dense<0xFF800000> : vector<8xf32>
    %94 = vector.multi_reduction <maximumf>, %93, %cst_55 [1] : vector<8x8xf32> to vector<8xf32>
    %95 = vector.shape_cast %94 : vector<8xf32> to vector<8x1xf32>
    %96 = vector.broadcast %95 : vector<8x1xf32> to vector<8x8xf32>
    %97 = arith.subf %93, %96 : vector<8x8xf32>
    %98 = math.exp %97 : vector<8x8xf32>
    %cst_56 = arith.constant dense<0.000000e+00> : vector<8xf32>
    %99 = vector.multi_reduction <add>, %98, %cst_56 [1] : vector<8x8xf32> to vector<8xf32>
    %100 = vector.shape_cast %99 : vector<8xf32> to vector<8x1xf32>
    %101 = tpu.reciprocal %100 : vector<8x1xf32> -> vector<8x1xf32>
    %102 = vector.broadcast %101 : vector<8x1xf32> to vector<8x8xf32>
    %103 = arith.mulf %98, %102 : vector<8x8xf32>
    %c0_57 = arith.constant 0 : index
    %c3 = arith.constant 3 : index
    %c0_58 = arith.constant 0 : index
    %c0_59 = arith.constant 0 : index
    %104 = vector.load %arg15[%c0_57, %c3, %c0_58, %c0_59] : memref<1x4x8x8xf32, #tpu.memory_space<vmem>>, vector<1x1x8x8xf32>
    %105 = vector.shape_cast %104 : vector<1x1x8x8xf32> to vector<8x8xf32>
    %106 = vector.shape_cast %103 : vector<8x8xf32> to vector<1x1x8x8xf32>
    tpu.vector_store %arg15[%c0_57, %c3, %c0_58, %c0_59], %106 {strides = array<i32>} : memref<1x4x8x8xf32, #tpu.memory_space<vmem>>, vector<1x1x8x8xf32>,
    %107 = arith.truncf %103 : vector<8x8xf32> to vector<8x8xbf16>
    %cst_60 = arith.constant dense<0.000000e+00> : vector<8x8xf32>
    %108 = tpu.matmul %107, %90, %cst_60 {dimension_numbers = #tpu.dot_dimension_numbers<[1], [0], [0], [1], [0, 0, 1, 1], [], []>} : vector<8x8xbf16>, vector<8x8xbf16>, vector<8x8xf32> -> vector<8x8xf32>
    %109 = arith.truncf %108 : vector<8x8xf32> to vector<8x8xbf16>
    %c0_61 = arith.constant 0 : index
    %c24_62 = arith.constant 24 : index
    %110 = vector.load %arg18[%c0_61, %c24_62] : memref<8x32xbf16, #tpu.memory_space<vmem>>, vector<8x8xbf16>
    tpu.vector_store %arg18[%c0_61, %c24_62], %109 {strides = array<i32>} : memref<8x32xbf16, #tpu.memory_space<vmem>>, vector<8x8xbf16>,
    %c0_63 = arith.constant 0 : index
    %c0_64 = arith.constant 0 : index
    %111 = vector.load %arg18[%c0_63, %c0_64] : memref<8x32xbf16, #tpu.memory_space<vmem>>, vector<8x32xbf16>
    %c0_65 = arith.constant 0 : index
    %c0_66 = arith.constant 0 : index
    %112 = vector.load %arg9[%c0_65, %c0_66] : memref<32x32xbf16, #tpu.memory_space<vmem>>, vector<32x32xbf16>
    %cst_67 = arith.constant dense<0.000000e+00> : vector<8x32xf32>
    %113 = tpu.matmul %111, %112, %cst_67 {dimension_numbers = #tpu.dot_dimension_numbers<[1], [0], [0], [1], [0, 0, 1, 1], [], []>} : vector<8x32xbf16>, vector<32x32xbf16>, vector<8x32xf32> -> vector<8x32xf32>
    %c0_68 = arith.constant 0 : index
    %c0_69 = arith.constant 0 : index
    %114 = vector.load %arg13[%c0_68, %c0_69] : memref<1x32xf32, #tpu.memory_space<vmem>>, vector<1x32xf32>
    %115 = vector.broadcast %114 : vector<1x32xf32> to vector<8x32xf32>
    %116 = arith.addf %113, %115 : vector<8x32xf32>
    %c0_70 = arith.constant 0 : index
    %c0_71 = arith.constant 0 : index
    %c0_72 = arith.constant 0 : index
    %117 = vector.load %arg14[%c0_70, %c0_71, %c0_72] : memref<1x8x32xf32, #tpu.memory_space<vmem>>, vector<1x8x32xf32>
    %118 = vector.shape_cast %117 : vector<1x8x32xf32> to vector<8x32xf32>
    %119 = vector.shape_cast %116 : vector<8x32xf32> to vector<1x8x32xf32>
    tpu.vector_store %arg14[%c0_70, %c0_71, %c0_72], %119 {strides = array<i32>} : memref<1x8x32xf32, #tpu.memory_space<vmem>>, vector<1x8x32xf32>,
    return
  }
  func.func @transform_0(%arg0: i32, %arg1: i32) -> (i32, i32, i32) {
    %c0_i32 = arith.constant 0 : i32
    %c0_i32_0 = arith.constant 0 : i32
    return %arg0, %arg1, %c0_i32 : i32, i32, i32
  }
  func.func @transform_1(%arg0: i32, %arg1: i32) -> (i32, i32, i32) {
    %c0_i32 = arith.constant 0 : i32
    %c0_i32_0 = arith.constant 0 : i32
    %c0_i32_1 = arith.constant 0 : i32
    return %arg0, %c0_i32, %c0_i32_0 : i32, i32, i32
  }
  func.func @transform_2(%arg0: i32, %arg1: i32) -> (i32, i32, i32) {
    %c0_i32 = arith.constant 0 : i32
    %c0_i32_0 = arith.constant 0 : i32
    %c0_i32_1 = arith.constant 0 : i32
    return %arg0, %c0_i32, %c0_i32_0 : i32, i32, i32
  }
  func.func @transform_3(%arg0: i32, %arg1: i32) -> (i32, i32, i32) {
    %c0_i32 = arith.constant 0 : i32
    %c0_i32_0 = arith.constant 0 : i32
    %c0_i32_1 = arith.constant 0 : i32
    return %arg0, %c0_i32, %c0_i32_0 : i32, i32, i32
  }
  func.func @transform_4(%arg0: i32, %arg1: i32) -> (i32, i32) {
    %c0_i32 = arith.constant 0 : i32
    %c0_i32_0 = arith.constant 0 : i32
    %c0_i32_1 = arith.constant 0 : i32
    return %c0_i32, %c0_i32_0 : i32, i32
  }
  func.func @transform_5(%arg0: i32, %arg1: i32) -> (i32, i32) {
    %c0_i32 = arith.constant 0 : i32
    %c0_i32_0 = arith.constant 0 : i32
    %c0_i32_1 = arith.constant 0 : i32
    return %c0_i32, %c0_i32_0 : i32, i32
  }
  func.func @transform_6(%arg0: i32, %arg1: i32) -> (i32, i32) {
    %c0_i32 = arith.constant 0 : i32
    %c0_i32_0 = arith.constant 0 : i32
    %c0_i32_1 = arith.constant 0 : i32
    return %c0_i32, %c0_i32_0 : i32, i32
  }
  func.func @transform_7(%arg0: i32, %arg1: i32) -> (i32, i32) {
    %c0_i32 = arith.constant 0 : i32
    %c0_i32_0 = arith.constant 0 : i32
    %c0_i32_1 = arith.constant 0 : i32
    return %c0_i32, %c0_i32_0 : i32, i32
  }
  func.func @transform_8(%arg0: i32, %arg1: i32) -> (i32, i32) {
    %c0_i32 = arith.constant 0 : i32
    %c0_i32_0 = arith.constant 0 : i32
    %c0_i32_1 = arith.constant 0 : i32
    return %c0_i32, %c0_i32_0 : i32, i32
  }
  func.func @transform_9(%arg0: i32, %arg1: i32) -> (i32, i32) {
    %c0_i32 = arith.constant 0 : i32
    %c0_i32_0 = arith.constant 0 : i32
    %c0_i32_1 = arith.constant 0 : i32
    return %c0_i32, %c0_i32_0 : i32, i32
  }
  func.func @transform_10(%arg0: i32, %arg1: i32) -> (i32, i32) {
    %c0_i32 = arith.constant 0 : i32
    %c0_i32_0 = arith.constant 0 : i32
    %c0_i32_1 = arith.constant 0 : i32
    return %c0_i32, %c0_i32_0 : i32, i32
  }
  func.func @transform_11(%arg0: i32, %arg1: i32) -> (i32, i32) {
    %c0_i32 = arith.constant 0 : i32
    %c0_i32_0 = arith.constant 0 : i32
    %c0_i32_1 = arith.constant 0 : i32
    return %c0_i32, %c0_i32_0 : i32, i32
  }
  func.func @transform_12(%arg0: i32, %arg1: i32) -> (i32, i32, i32) {
    %c0_i32 = arith.constant 0 : i32
    %c0_i32_0 = arith.constant 0 : i32
    return %arg0, %arg1, %c0_i32 : i32, i32, i32
  }
  func.func @transform_13(%arg0: i32, %arg1: i32) -> (i32, i32, i32, i32) {
    %c0_i32 = arith.constant 0 : i32
    %c0_i32_0 = arith.constant 0 : i32
    %c0_i32_1 = arith.constant 0 : i32
    return %arg0, %c0_i32, %arg1, %c0_i32_0 : i32, i32, i32, i32
  }
}

module attributes {stable_mosaic.version = 11 : i64} {
  func.func @_fused_attn_kernel(%arg0: i32, %arg1: i32, %arg2: memref<1x8x32xf32, #tpu.memory_space<vmem>>, %arg3: memref<1x8x32xf32, #tpu.memory_space<vmem>>, %arg4: memref<1x8x32xf32, #tpu.memory_space<vmem>>, %arg5: memref<1x1x8xi32, #tpu.memory_space<vmem>>, %arg6: memref<32x32xbf16, #tpu.memory_space<vmem>>, %arg7: memref<32x32xbf16, #tpu.memory_space<vmem>>, %arg8: memref<32x32xbf16, #tpu.memory_space<vmem>>, %arg9: memref<32x32xbf16, #tpu.memory_space<vmem>>, %arg10: memref<1x32xf32, #tpu.memory_space<vmem>>, %arg11: memref<1x32xf32, #tpu.memory_space<vmem>>, %arg12: memref<1x32xf32, #tpu.memory_space<vmem>>, %arg13: memref<1x32xf32, #tpu.memory_space<vmem>>, %arg14: memref<1x8x32xf32, #tpu.memory_space<vmem>>, %arg15: memref<1x4x8x8xf32, #tpu.memory_space<vmem>>, %arg16: memref<8x32xbf16, #tpu.memory_space<vmem>>, %arg17: memref<8x32xbf16, #tpu.memory_space<vmem>>, %arg18: memref<8x32xbf16, #tpu.memory_space<vmem>>) attributes {dimension_semantics = [#tpu.dimension_semantics<parallel>, #tpu.dimension_semantics<arbitrary>], iteration_bounds = array<i64: 2, 1>, scalar_prefetch = 0 : i64, scratch_operands = 3 : i64, tpu.core_type = #tpu.core_type<tc>, window_params = [{transform_indices = @transform_0, window_bounds = array<i64: 1, 8, 32>}, {transform_indices = @transform_1, window_bounds = array<i64: 1, 8, 32>}, {transform_indices = @transform_2, window_bounds = array<i64: 1, 8, 32>}, {transform_indices = @transform_3, window_bounds = array<i64: 1, 1, 8>}, {pipeline_mode = #tpu.pipeline_mode<synchronous>, transform_indices = @transform_4, window_bounds = array<i64: 32, 32>}, {pipeline_mode = #tpu.pipeline_mode<synchronous>, transform_indices = @transform_5, window_bounds = array<i64: 32, 32>}, {pipeline_mode = #tpu.pipeline_mode<synchronous>, transform_indices = @transform_6, window_bounds = array<i64: 32, 32>}, {pipeline_mode = #tpu.pipeline_mode<synchronous>, transform_indices = @transform_7, window_bounds = array<i64: 32, 32>}, {pipeline_mode = #tpu.pipeline_mode<synchronous>, transform_indices = @transform_8, window_bounds = array<i64: 1, 32>}, {pipeline_mode = #tpu.pipeline_mode<synchronous>, transform_indices = @transform_9, window_bounds = array<i64: 1, 32>}, {pipeline_mode = #tpu.pipeline_mode<synchronous>, transform_indices = @transform_10, window_bounds = array<i64: 1, 32>}, {pipeline_mode = #tpu.pipeline_mode<synchronous>, transform_indices = @transform_11, window_bounds = array<i64: 1, 32>}, {transform_indices = @transform_12, window_bounds = array<i64: 1, 8, 32>}, {transform_indices = @transform_13, window_bounds = array<i64: 1, 4, 8, 8>}]} {
    %c0_i32 = arith.constant 0 : i32
    %0 = arith.cmpi eq, %arg1, %c0_i32 : i32
    %1 = arith.extui %0 : i1 to i32
    %c0_i32_0 = arith.constant 0 : i32
    %2 = arith.cmpi ne, %1, %c0_i32_0 : i32
    scf.if %2 {
      %c0_73 = arith.constant 0 : index
      %c0_74 = arith.constant 0 : index
      %c0_75 = arith.constant 0 : index
      %120 = vector.load %arg3[%c0_73, %c0_74, %c0_75] : memref<1x8x32xf32, #tpu.memory_space<vmem>>, vector<1x8x32xf32>
      %121 = vector.shape_cast %120 : vector<1x8x32xf32> to vector<8x32xf32>
      %122 = arith.truncf %121 : vector<8x32xf32> to vector<8x32xbf16>
      %c0_76 = arith.constant 0 : index
      %c0_77 = arith.constant 0 : index
      %c0_78 = arith.constant 0 : index
      %123 = vector.load %arg4[%c0_76, %c0_77, %c0_78] : memref<1x8x32xf32, #tpu.memory_space<vmem>>, vector<1x8x32xf32>
      %124 = vector.shape_cast %123 : vector<1x8x32xf32> to vector<8x32xf32>
      %125 = arith.truncf %124 : vector<8x32xf32> to vector<8x32xbf16>
      %c0_79 = arith.constant 0 : index
      %c0_80 = arith.constant 0 : index
      %126 = vector.load %arg7[%c0_79, %c0_80] : memref<32x32xbf16, #tpu.memory_space<vmem>>, vector<32x32xbf16>
      %cst_81 = arith.constant dense<0.000000e+00> : vector<8x32xf32>
      %127 = tpu.matmul %122, %126, %cst_81 {dimension_numbers = #tpu.dot_dimension_numbers<[1], [0], [0], [1], [0, 0, 1, 1], [], []>} : vector<8x32xbf16>, vector<32x32xbf16>, vector<8x32xf32> -> vector<8x32xf32>
      %c0_82 = arith.constant 0 : index
      %c0_83 = arith.constant 0 : index
      %128 = vector.load %arg11[%c0_82, %c0_83] : memref<1x32xf32, #tpu.memory_space<vmem>>, vector<1x32xf32>
      %129 = vector.broadcast %128 : vector<1x32xf32> to vector<8x32xf32>
      %130 = arith.addf %127, %129 : vector<8x32xf32>
      %131 = arith.truncf %130 : vector<8x32xf32> to vector<8x32xbf16>
      %c0_84 = arith.constant 0 : index
      %c0_85 = arith.constant 0 : index
      %132 = vector.load %arg16[%c0_84, %c0_85] : memref<8x32xbf16, #tpu.memory_space<vmem>>, vector<8x32xbf16>
      tpu.vector_store %arg16[%c0_84, %c0_85], %131 {strides = array<i32>} : memref<8x32xbf16, #tpu.memory_space<vmem>>, vector<8x32xbf16>,
      %c0_86 = arith.constant 0 : index
      %c0_87 = arith.constant 0 : index
      %133 = vector.load %arg8[%c0_86, %c0_87] : memref<32x32xbf16, #tpu.memory_space<vmem>>, vector<32x32xbf16>
      %cst_88 = arith.constant dense<0.000000e+00> : vector<8x32xf32>
      %134 = tpu.matmul %125, %133, %cst_88 {dimension_numbers = #tpu.dot_dimension_numbers<[1], [0], [0], [1], [0, 0, 1, 1], [], []>} : vector<8x32xbf16>, vector<32x32xbf16>, vector<8x32xf32> -> vector<8x32xf32>
      %c0_89 = arith.constant 0 : index
      %c0_90 = arith.constant 0 : index
      %135 = vector.load %arg12[%c0_89, %c0_90] : memref<1x32xf32, #tpu.memory_space<vmem>>, vector<1x32xf32>
      %136 = vector.broadcast %135 : vector<1x32xf32> to vector<8x32xf32>
      %137 = arith.addf %134, %136 : vector<8x32xf32>
      %138 = arith.truncf %137 : vector<8x32xf32> to vector<8x32xbf16>
      %c0_91 = arith.constant 0 : index
      %c0_92 = arith.constant 0 : index
      %139 = vector.load %arg17[%c0_91, %c0_92] : memref<8x32xbf16, #tpu.memory_space<vmem>>, vector<8x32xbf16>
      tpu.vector_store %arg17[%c0_91, %c0_92], %138 {strides = array<i32>} : memref<8x32xbf16, #tpu.memory_space<vmem>>, vector<8x32xbf16>,
    } else {
    }
    %c0 = arith.constant 0 : index
    %c0_1 = arith.constant 0 : index
    %c0_2 = arith.constant 0 : index
    %3 = vector.load %arg2[%c0, %c0_1, %c0_2] : memref<1x8x32xf32, #tpu.memory_space<vmem>>, vector<1x8x32xf32>
    %4 = vector.shape_cast %3 : vector<1x8x32xf32> to vector<8x32xf32>
    %5 = arith.truncf %4 : vector<8x32xf32> to vector<8x32xbf16>
    %c0_3 = arith.constant 0 : index
    %c0_4 = arith.constant 0 : index
    %6 = vector.load %arg6[%c0_3, %c0_4] : memref<32x32xbf16, #tpu.memory_space<vmem>>, vector<32x32xbf16>
    %cst = arith.constant dense<0.000000e+00> : vector<8x32xf32>
    %7 = tpu.matmul %5, %6, %cst {dimension_numbers = #tpu.dot_dimension_numbers<[1], [0], [0], [1], [0, 0, 1, 1], [], []>} : vector<8x32xbf16>, vector<32x32xbf16>, vector<8x32xf32> -> vector<8x32xf32>
    %c0_5 = arith.constant 0 : index
    %c0_6 = arith.constant 0 : index
    %8 = vector.load %arg10[%c0_5, %c0_6] : memref<1x32xf32, #tpu.memory_space<vmem>>, vector<1x32xf32>
    %9 = vector.broadcast %8 : vector<1x32xf32> to vector<8x32xf32>
    %10 = arith.addf %7, %9 : vector<8x32xf32>
    %11 = arith.truncf %10 : vector<8x32xf32> to vector<8x32xbf16>
    %c0_7 = arith.constant 0 : index
    %c0_8 = arith.constant 0 : index
    %c0_9 = arith.constant 0 : index
    %12 = vector.load %arg5[%c0_7, %c0_8, %c0_9] : memref<1x1x8xi32, #tpu.memory_space<vmem>>, vector<1x1x8xi32>
    %13 = vector.shape_cast %12 : vector<1x1x8xi32> to vector<1x8xi32>
    %c0_i32_10 = arith.constant 0 : i32
    %14 = vector.broadcast %c0_i32_10 : i32 to vector<1x8xi32>
    %15 = arith.cmpi eq, %13, %14 : vector<1x8xi32>
    %cst_11 = arith.constant -1.000000e+10 : f32
    %cst_12 = arith.constant 0.000000e+00 : f32
    %16 = vector.broadcast %cst_11 : f32 to vector<1x8xf32>
    %17 = vector.broadcast %cst_12 : f32 to vector<1x8xf32>
    %18 = arith.select %15, %16, %17 : vector<1x8xi1>, vector<1x8xf32>
    %19 = vector.extract_strided_slice %11 {offsets = [0, 0], sizes = [8, 8], strides = [1, 1]} : vector<8x32xbf16> to vector<8x8xbf16>
    %c0_13 = arith.constant 0 : index
    %c0_14 = arith.constant 0 : index
    %20 = vector.load %arg16[%c0_13, %c0_14] : memref<8x32xbf16, #tpu.memory_space<vmem>>, vector<8x8xbf16>
    %c0_15 = arith.constant 0 : index
    %c0_16 = arith.constant 0 : index
    %21 = vector.load %arg17[%c0_15, %c0_16] : memref<8x32xbf16, #tpu.memory_space<vmem>>, vector<8x8xbf16>
    %cst_17 = arith.constant dense<0.000000e+00> : vector<8x8xf32>
    %22 = tpu.matmul %19, %20, %cst_17 {dimension_numbers = #tpu.dot_dimension_numbers<[1], [1], [0], [0], [0, 0, 1, 0], [], []>} : vector<8x8xbf16>, vector<8x8xbf16>, vector<8x8xf32> -> vector<8x8xf32>
    %23 = vector.broadcast %18 : vector<1x8xf32> to vector<8x8xf32>
    %24 = arith.addf %22, %23 : vector<8x8xf32>
    %cst_18 = arith.constant dense<0xFF800000> : vector<8xf32>
    %25 = vector.multi_reduction <maximumf>, %24, %cst_18 [1] : vector<8x8xf32> to vector<8xf32>
    %26 = vector.shape_cast %25 : vector<8xf32> to vector<8x1xf32>
    %27 = vector.broadcast %26 : vector<8x1xf32> to vector<8x8xf32>
    %28 = arith.subf %24, %27 : vector<8x8xf32>
    %29 = math.exp %28 : vector<8x8xf32>
    %cst_19 = arith.constant dense<0.000000e+00> : vector<8xf32>
    %30 = vector.multi_reduction <add>, %29, %cst_19 [1] : vector<8x8xf32> to vector<8xf32>
    %31 = vector.shape_cast %30 : vector<8xf32> to vector<8x1xf32>
    %32 = tpu.reciprocal %31 : vector<8x1xf32> -> vector<8x1xf32>
    %33 = vector.broadcast %32 : vector<8x1xf32> to vector<8x8xf32>
    %34 = arith.mulf %29, %33 : vector<8x8xf32>
    %c0_20 = arith.constant 0 : index
    %c0_21 = arith.constant 0 : index
    %c0_22 = arith.constant 0 : index
    %c0_23 = arith.constant 0 : index
    %35 = vector.load %arg15[%c0_20, %c0_21, %c0_22, %c0_23] : memref<1x4x8x8xf32, #tpu.memory_space<vmem>>, vector<1x1x8x8xf32>
    %36 = vector.shape_cast %35 : vector<1x1x8x8xf32> to vector<8x8xf32>
    %37 = vector.shape_cast %34 : vector<8x8xf32> to vector<1x1x8x8xf32>
    tpu.vector_store %arg15[%c0_20, %c0_21, %c0_22, %c0_23], %37 {strides = array<i32>} : memref<1x4x8x8xf32, #tpu.memory_space<vmem>>, vector<1x1x8x8xf32>,
    %38 = arith.truncf %34 : vector<8x8xf32> to vector<8x8xbf16>
    %cst_24 = arith.constant dense<0.000000e+00> : vector<8x8xf32>
    %39 = tpu.matmul %38, %21, %cst_24 {dimension_numbers = #tpu.dot_dimension_numbers<[1], [0], [0], [1], [0, 0, 1, 1], [], []>} : vector<8x8xbf16>, vector<8x8xbf16>, vector<8x8xf32> -> vector<8x8xf32>
    %40 = arith.truncf %39 : vector<8x8xf32> to vector<8x8xbf16>
    %c0_25 = arith.constant 0 : index
    %c0_26 = arith.constant 0 : index
    %41 = vector.load %arg18[%c0_25, %c0_26] : memref<8x32xbf16, #tpu.memory_space<vmem>>, vector<8x8xbf16>
    tpu.vector_store %arg18[%c0_25, %c0_26], %40 {strides = array<i32>} : memref<8x32xbf16, #tpu.memory_space<vmem>>, vector<8x8xbf16>,
    %42 = vector.extract_strided_slice %11 {offsets = [0, 8], sizes = [8, 8], strides = [1, 1]} : vector<8x32xbf16> to vector<8x8xbf16>
    %c0_27 = arith.constant 0 : index
    %c8 = arith.constant 8 : index
    %43 = vector.load %arg16[%c0_27, %c8] : memref<8x32xbf16, #tpu.memory_space<vmem>>, vector<8x8xbf16>
    %c0_28 = arith.constant 0 : index
    %c8_29 = arith.constant 8 : index
    %44 = vector.load %arg17[%c0_28, %c8_29] : memref<8x32xbf16, #tpu.memory_space<vmem>>, vector<8x8xbf16>
    %cst_30 = arith.constant dense<0.000000e+00> : vector<8x8xf32>
    %45 = tpu.matmul %42, %43, %cst_30 {dimension_numbers = #tpu.dot_dimension_numbers<[1], [1], [0], [0], [0, 0, 1, 0], [], []>} : vector<8x8xbf16>, vector<8x8xbf16>, vector<8x8xf32> -> vector<8x8xf32>
    %46 = vector.broadcast %18 : vector<1x8xf32> to vector<8x8xf32>
    %47 = arith.addf %45, %46 : vector<8x8xf32>
    %cst_31 = arith.constant dense<0xFF800000> : vector<8xf32>
    %48 = vector.multi_reduction <maximumf>, %47, %cst_31 [1] : vector<8x8xf32> to vector<8xf32>
    %49 = vector.shape_cast %48 : vector<8xf32> to vector<8x1xf32>
    %50 = vector.broadcast %49 : vector<8x1xf32> to vector<8x8xf32>
    %51 = arith.subf %47, %50 : vector<8x8xf32>
    %52 = math.exp %51 : vector<8x8xf32>
    %cst_32 = arith.constant dense<0.000000e+00> : vector<8xf32>
    %53 = vector.multi_reduction <add>, %52, %cst_32 [1] : vector<8x8xf32> to vector<8xf32>
    %54 = vector.shape_cast %53 : vector<8xf32> to vector<8x1xf32>
    %55 = tpu.reciprocal %54 : vector<8x1xf32> -> vector<8x1xf32>
    %56 = vector.broadcast %55 : vector<8x1xf32> to vector<8x8xf32>
    %57 = arith.mulf %52, %56 : vector<8x8xf32>
    %c0_33 = arith.constant 0 : index
    %c1 = arith.constant 1 : index
    %c0_34 = arith.constant 0 : index
    %c0_35 = arith.constant 0 : index
    %58 = vector.load %arg15[%c0_33, %c1, %c0_34, %c0_35] : memref<1x4x8x8xf32, #tpu.memory_space<vmem>>, vector<1x1x8x8xf32>
    %59 = vector.shape_cast %58 : vector<1x1x8x8xf32> to vector<8x8xf32>
    %60 = vector.shape_cast %57 : vector<8x8xf32> to vector<1x1x8x8xf32>
    tpu.vector_store %arg15[%c0_33, %c1, %c0_34, %c0_35], %60 {strides = array<i32>} : memref<1x4x8x8xf32, #tpu.memory_space<vmem>>, vector<1x1x8x8xf32>,
    %61 = arith.truncf %57 : vector<8x8xf32> to vector<8x8xbf16>
    %cst_36 = arith.constant dense<0.000000e+00> : vector<8x8xf32>
    %62 = tpu.matmul %61, %44, %cst_36 {dimension_numbers = #tpu.dot_dimension_numbers<[1], [0], [0], [1], [0, 0, 1, 1], [], []>} : vector<8x8xbf16>, vector<8x8xbf16>, vector<8x8xf32> -> vector<8x8xf32>
    %63 = arith.truncf %62 : vector<8x8xf32> to vector<8x8xbf16>
    %c0_37 = arith.constant 0 : index
    %c8_38 = arith.constant 8 : index
    %64 = vector.load %arg18[%c0_37, %c8_38] : memref<8x32xbf16, #tpu.memory_space<vmem>>, vector<8x8xbf16>
    tpu.vector_store %arg18[%c0_37, %c8_38], %63 {strides = array<i32>} : memref<8x32xbf16, #tpu.memory_space<vmem>>, vector<8x8xbf16>,
    %65 = vector.extract_strided_slice %11 {offsets = [0, 16], sizes = [8, 8], strides = [1, 1]} : vector<8x32xbf16> to vector<8x8xbf16>
    %c0_39 = arith.constant 0 : index
    %c16 = arith.constant 16 : index
    %66 = vector.load %arg16[%c0_39, %c16] : memref<8x32xbf16, #tpu.memory_space<vmem>>, vector<8x8xbf16>
    %c0_40 = arith.constant 0 : index
    %c16_41 = arith.constant 16 : index
    %67 = vector.load %arg17[%c0_40, %c16_41] : memref<8x32xbf16, #tpu.memory_space<vmem>>, vector<8x8xbf16>
    %cst_42 = arith.constant dense<0.000000e+00> : vector<8x8xf32>
    %68 = tpu.matmul %65, %66, %cst_42 {dimension_numbers = #tpu.dot_dimension_numbers<[1], [1], [0], [0], [0, 0, 1, 0], [], []>} : vector<8x8xbf16>, vector<8x8xbf16>, vector<8x8xf32> -> vector<8x8xf32>
    %69 = vector.broadcast %18 : vector<1x8xf32> to vector<8x8xf32>
    %70 = arith.addf %68, %69 : vector<8x8xf32>
    %cst_43 = arith.constant dense<0xFF800000> : vector<8xf32>
    %71 = vector.multi_reduction <maximumf>, %70, %cst_43 [1] : vector<8x8xf32> to vector<8xf32>
    %72 = vector.shape_cast %71 : vector<8xf32> to vector<8x1xf32>
    %73 = vector.broadcast %72 : vector<8x1xf32> to vector<8x8xf32>
    %74 = arith.subf %70, %73 : vector<8x8xf32>
    %75 = math.exp %74 : vector<8x8xf32>
    %cst_44 = arith.constant dense<0.000000e+00> : vector<8xf32>
    %76 = vector.multi_reduction <add>, %75, %cst_44 [1] : vector<8x8xf32> to vector<8xf32>
    %77 = vector.shape_cast %76 : vector<8xf32> to vector<8x1xf32>
    %78 = tpu.reciprocal %77 : vector<8x1xf32> -> vector<8x1xf32>
    %79 = vector.broadcast %78 : vector<8x1xf32> to vector<8x8xf32>
    %80 = arith.mulf %75, %79 : vector<8x8xf32>
    %c0_45 = arith.constant 0 : index
    %c2 = arith.constant 2 : index
    %c0_46 = arith.constant 0 : index
    %c0_47 = arith.constant 0 : index
    %81 = vector.load %arg15[%c0_45, %c2, %c0_46, %c0_47] : memref<1x4x8x8xf32, #tpu.memory_space<vmem>>, vector<1x1x8x8xf32>
    %82 = vector.shape_cast %81 : vector<1x1x8x8xf32> to vector<8x8xf32>
    %83 = vector.shape_cast %80 : vector<8x8xf32> to vector<1x1x8x8xf32>
    tpu.vector_store %arg15[%c0_45, %c2, %c0_46, %c0_47], %83 {strides = array<i32>} : memref<1x4x8x8xf32, #tpu.memory_space<vmem>>, vector<1x1x8x8xf32>,
    %84 = arith.truncf %80 : vector<8x8xf32> to vector<8x8xbf16>
    %cst_48 = arith.constant dense<0.000000e+00> : vector<8x8xf32>
    %85 = tpu.matmul %84, %67, %cst_48 {dimension_numbers = #tpu.dot_dimension_numbers<[1], [0], [0], [1], [0, 0, 1, 1], [], []>} : vector<8x8xbf16>, vector<8x8xbf16>, vector<8x8xf32> -> vector<8x8xf32>
    %86 = arith.truncf %85 : vector<8x8xf32> to vector<8x8xbf16>
    %c0_49 = arith.constant 0 : index
    %c16_50 = arith.constant 16 : index
    %87 = vector.load %arg18[%c0_49, %c16_50] : memref<8x32xbf16, #tpu.memory_space<vmem>>, vector<8x8xbf16>
    tpu.vector_store %arg18[%c0_49, %c16_50], %86 {strides = array<i32>} : memref<8x32xbf16, #tpu.memory_space<vmem>>, vector<8x8xbf16>,
    %88 = vector.extract_strided_slice %11 {offsets = [0, 24], sizes = [8, 8], strides = [1, 1]} : vector<8x32xbf16> to vector<8x8xbf16>
    %c0_51 = arith.constant 0 : index
    %c24 = arith.constant 24 : index
    %89 = vector.load %arg16[%c0_51, %c24] : memref<8x32xbf16, #tpu.memory_space<vmem>>, vector<8x8xbf16>
    %c0_52 = arith.constant 0 : index
    %c24_53 = arith.constant 24 : index
    %90 = vector.load %arg17[%c0_52, %c24_53] : memref<8x32xbf16, #tpu.memory_space<vmem>>, vector<8x8xbf16>
    %cst_54 = arith.constant dense<0.000000e+00> : vector<8x8xf32>
    %91 = tpu.matmul %88, %89, %cst_54 {dimension_numbers = #tpu.dot_dimension_numbers<[1], [1], [0], [0], [0, 0, 1, 0], [], []>} : vector<8x8xbf16>, vector<8x8xbf16>, vector<8x8xf32> -> vector<8x8xf32>
    %92 = vector.broadcast %18 : vector<1x8xf32> to vector<8x8xf32>
    %93 = arith.addf %91, %92 : vector<8x8xf32>
    %cst_55 = arith.constant dense<0xFF800000> : vector<8xf32>
    %94 = vector.multi_reduction <maximumf>, %93, %cst_55 [1] : vector<8x8xf32> to vector<8xf32>
    %95 = vector.shape_cast %94 : vector<8xf32> to vector<8x1xf32>
    %96 = vector.broadcast %95 : vector<8x1xf32> to vector<8x8xf32>
    %97 = arith.subf %93, %96 : vector<8x8xf32>
    %98 = math.exp %97 : vector<8x8xf32>
    %cst_56 = arith.constant dense<0.000000e+00> : vector<8xf32>
    %99 = vector.multi_reduction <add>, %98, %cst_56 [1] : vector<8x8xf32> to vector<8xf32>
    %100 = vector.shape_cast %99 : vector<8xf32> to vector<8x1xf32>
    %101 = tpu.reciprocal %100 : vector<8x1xf32> -> vector<8x1xf32>
    %102 = vector.broadcast %101 : vector<8x1xf32> to vector<8x8xf32>
    %103 = arith.mulf %98, %102 : vector<8x8xf32>
    %c0_57 = arith.constant 0 : index
    %c3 = arith.constant 3 : index
    %c0_58 = arith.constant 0 : index
    %c0_59 = arith.constant 0 : index
    %104 = vector.load %arg15[%c0_57, %c3, %c0_58, %c0_59] : memref<1x4x8x8xf32, #tpu.memory_space<vmem>>, vector<1x1x8x8xf32>
    %105 = vector.shape_cast %104 : vector<1x1x8x8xf32> to vector<8x8xf32>
    %106 = vector.shape_cast %103 : vector<8x8xf32> to vector<1x1x8x8xf32>
    tpu.vector_store %arg15[%c0_57, %c3, %c0_58, %c0_59], %106 {strides = array<i32>} : memref<1x4x8x8xf32, #tpu.memory_space<vmem>>, vector<1x1x8x8xf32>,
    %107 = arith.truncf %103 : vector<8x8xf32> to vector<8x8xbf16>
    %cst_60 = arith.constant dense<0.000000e+00> : vector<8x8xf32>
    %108 = tpu.matmul %107, %90, %cst_60 {dimension_numbers = #tpu.dot_dimension_numbers<[1], [0], [0], [1], [0, 0, 1, 1], [], []>} : vector<8x8xbf16>, vector<8x8xbf16>, vector<8x8xf32> -> vector<8x8xf32>
    %109 = arith.truncf %108 : vector<8x8xf32> to vector<8x8xbf16>
    %c0_61 = arith.constant 0 : index
    %c24_62 = arith.constant 24 : index
    %110 = vector.load %arg18[%c0_61, %c24_62] : memref<8x32xbf16, #tpu.memory_space<vmem>>, vector<8x8xbf16>
    tpu.vector_store %arg18[%c0_61, %c24_62], %109 {strides = array<i32>} : memref<8x32xbf16, #tpu.memory_space<vmem>>, vector<8x8xbf16>,
    %c0_63 = arith.constant 0 : index
    %c0_64 = arith.constant 0 : index
    %111 = vector.load %arg18[%c0_63, %c0_64] : memref<8x32xbf16, #tpu.memory_space<vmem>>, vector<8x32xbf16>
    %c0_65 = arith.constant 0 : index
    %c0_66 = arith.constant 0 : index
    %112 = vector.load %arg9[%c0_65, %c0_66] : memref<32x32xbf16, #tpu.memory_space<vmem>>, vector<32x32xbf16>
    %cst_67 = arith.constant dense<0.000000e+00> : vector<8x32xf32>
    %113 = tpu.matmul %111, %112, %cst_67 {dimension_numbers = #tpu.dot_dimension_numbers<[1], [0], [0], [1], [0, 0, 1, 1], [], []>} : vector<8x32xbf16>, vector<32x32xbf16>, vector<8x32xf32> -> vector<8x32xf32>
    %c0_68 = arith.constant 0 : index
    %c0_69 = arith.constant 0 : index
    %114 = vector.load %arg13[%c0_68, %c0_69] : memref<1x32xf32, #tpu.memory_space<vmem>>, vector<1x32xf32>
    %115 = vector.broadcast %114 : vector<1x32xf32> to vector<8x32xf32>
    %116 = arith.addf %113, %115 : vector<8x32xf32>
    %c0_70 = arith.constant 0 : index
    %c0_71 = arith.constant 0 : index
    %c0_72 = arith.constant 0 : index
    %117 = vector.load %arg14[%c0_70, %c0_71, %c0_72] : memref<1x8x32xf32, #tpu.memory_space<vmem>>, vector<1x8x32xf32>
    %118 = vector.shape_cast %117 : vector<1x8x32xf32> to vector<8x32xf32>
    %119 = vector.shape_cast %116 : vector<8x32xf32> to vector<1x8x32xf32>
    tpu.vector_store %arg14[%c0_70, %c0_71, %c0_72], %119 {strides = array<i32>} : memref<1x8x32xf32, #tpu.memory_space<vmem>>, vector<1x8x32xf32>,
    return
  }
  func.func @transform_0(%arg0: i32, %arg1: i32) -> (i32, i32, i32) {
    %c0_i32 = arith.constant 0 : i32
    %c0_i32_0 = arith.constant 0 : i32
    return %arg0, %arg1, %c0_i32 : i32, i32, i32
  }
  func.func @transform_1(%arg0: i32, %arg1: i32) -> (i32, i32, i32) {
    %c0_i32 = arith.constant 0 : i32
    %c0_i32_0 = arith.constant 0 : i32
    %c0_i32_1 = arith.constant 0 : i32
    return %arg0, %c0_i32, %c0_i32_0 : i32, i32, i32
  }
  func.func @transform_2(%arg0: i32, %arg1: i32) -> (i32, i32, i32) {
    %c0_i32 = arith.constant 0 : i32
    %c0_i32_0 = arith.constant 0 : i32
    %c0_i32_1 = arith.constant 0 : i32
    return %arg0, %c0_i32, %c0_i32_0 : i32, i32, i32
  }
  func.func @transform_3(%arg0: i32, %arg1: i32) -> (i32, i32, i32) {
    %c0_i32 = arith.constant 0 : i32
    %c0_i32_0 = arith.constant 0 : i32
    %c0_i32_1 = arith.constant 0 : i32
    return %arg0, %c0_i32, %c0_i32_0 : i32, i32, i32
  }
  func.func @transform_4(%arg0: i32, %arg1: i32) -> (i32, i32) {
    %c0_i32 = arith.constant 0 : i32
    %c0_i32_0 = arith.constant 0 : i32
    %c0_i32_1 = arith.constant 0 : i32
    return %c0_i32, %c0_i32_0 : i32, i32
  }
  func.func @transform_5(%arg0: i32, %arg1: i32) -> (i32, i32) {
    %c0_i32 = arith.constant 0 : i32
    %c0_i32_0 = arith.constant 0 : i32
    %c0_i32_1 = arith.constant 0 : i32
    return %c0_i32, %c0_i32_0 : i32, i32
  }
  func.func @transform_6(%arg0: i32, %arg1: i32) -> (i32, i32) {
    %c0_i32 = arith.constant 0 : i32
    %c0_i32_0 = arith.constant 0 : i32
    %c0_i32_1 = arith.constant 0 : i32
    return %c0_i32, %c0_i32_0 : i32, i32
  }
  func.func @transform_7(%arg0: i32, %arg1: i32) -> (i32, i32) {
    %c0_i32 = arith.constant 0 : i32
    %c0_i32_0 = arith.constant 0 : i32
    %c0_i32_1 = arith.constant 0 : i32
    return %c0_i32, %c0_i32_0 : i32, i32
  }
  func.func @transform_8(%arg0: i32, %arg1: i32) -> (i32, i32) {
    %c0_i32 = arith.constant 0 : i32
    %c0_i32_0 = arith.constant 0 : i32
    %c0_i32_1 = arith.constant 0 : i32
    return %c0_i32, %c0_i32_0 : i32, i32
  }
  func.func @transform_9(%arg0: i32, %arg1: i32) -> (i32, i32) {
    %c0_i32 = arith.constant 0 : i32
    %c0_i32_0 = arith.constant 0 : i32
    %c0_i32_1 = arith.constant 0 : i32
    return %c0_i32, %c0_i32_0 : i32, i32
  }
  func.func @transform_10(%arg0: i32, %arg1: i32) -> (i32, i32) {
    %c0_i32 = arith.constant 0 : i32
    %c0_i32_0 = arith.constant 0 : i32
    %c0_i32_1 = arith.constant 0 : i32
    return %c0_i32, %c0_i32_0 : i32, i32
  }
  func.func @transform_11(%arg0: i32, %arg1: i32) -> (i32, i32) {
    %c0_i32 = arith.constant 0 : i32
    %c0_i32_0 = arith.constant 0 : i32
    %c0_i32_1 = arith.constant 0 : i32
    return %c0_i32, %c0_i32_0 : i32, i32
  }
  func.func @transform_12(%arg0: i32, %arg1: i32) -> (i32, i32, i32) {
    %c0_i32 = arith.constant 0 : i32
    %c0_i32_0 = arith.constant 0 : i32
    return %arg0, %arg1, %c0_i32 : i32, i32, i32
  }
  func.func @transform_13(%arg0: i32, %arg1: i32) -> (i32, i32, i32, i32) {
    %c0_i32 = arith.constant 0 : i32
    %c0_i32_0 = arith.constant 0 : i32
    %c0_i32_1 = arith.constant 0 : i32
    return %arg0, %c0_i32, %arg1, %c0_i32_0 : i32, i32, i32, i32
  }
}

</mosaic_0001>

<llo_original>
// kernel: tpu_custom_call.1
$region0: #{tpu_custom_call.1}
  #allocation0 [shape = 'u32[]', space=smem, size = 0x4, offset = 0x4, fixed_abs, tag = 'smem constant byte address 0x4 - core index']
  #allocation1 [shape = 'u32[144,128]{1,0:T(1,128)}', space=vmem, size = 0x12000, scoped, tag = 'internal scratch']
  #allocation2 [shape = 'bf16[8,32]{1,0:T(8,128)(2,1)}', space=vmem, size = 0x800, scoped, tag = 'scratch operand']
  #allocation3 [shape = 'bf16[8,32]{1,0:T(8,128)(2,1)}', space=vmem, size = 0x800, scoped, tag = 'scratch operand']
  #allocation4 [shape = 'bf16[8,32]{1,0:T(8,128)(2,1)}', space=vmem, size = 0x800, scoped, tag = 'scratch operand']
  %s0 = inlined_call_operand.hbm [shape: f32[2,8,32], index: 0, kind: input, shape index: {}]
  %s1 = inlined_call_operand.hbm [shape: f32[2,8,32], index: 1, kind: input, shape index: {}]
  %s2 = inlined_call_operand.hbm [shape: f32[2,8,32], index: 2, kind: input, shape index: {}]
  %s3 = inlined_call_operand.vmem [shape: s32[2,1,8], index: 3, kind: input, shape index: {}]
  %s4 = inlined_call_operand.hbm [shape: bf16[32,32], index: 4, kind: input, shape index: {}]
  %s5 = inlined_call_operand.hbm [shape: bf16[32,32], index: 5, kind: input, shape index: {}]
  %s6 = inlined_call_operand.hbm [shape: bf16[32,32], index: 6, kind: input, shape index: {}]
  %s7 = inlined_call_operand.hbm [shape: bf16[32,32], index: 7, kind: input, shape index: {}]
  %s8 = inlined_call_operand.vmem [shape: f32[1,32], index: 8, kind: input, shape index: {}]
  %s9 = inlined_call_operand.vmem [shape: f32[1,32], index: 9, kind: input, shape index: {}]
  %s10 = inlined_call_operand.vmem [shape: f32[1,32], index: 10, kind: input, shape index: {}]
  %s11 = inlined_call_operand.vmem [shape: f32[1,32], index: 11, kind: input, shape index: {}]
  %s12 = inlined_call_operand.hbm [shape: f32[2,8,32], index: 12, kind: output, shape index: {0}]
  %s13 = inlined_call_operand.hbm [shape: f32[2,4,8,8], index: 13, kind: output, shape index: {1}]
  %14 = xla_tuple %s12, %s13
  %s15 = sld [smem:[#allocation0]]
  $region121: #{tpu_custom_call.1} parent=0
    _
  %s17 = ssub.s32 1, %s15
  %s18 = scalar_select 0, %s17, %s15
  $region1: #{tpu_custom_call.1} parent=0
    #allocation5 [shape = 'u8[8192]{0}', space=vmem, size = 0x2000, scoped, tag = 'input window, operand 0']
    #allocation6 [shape = 's32[2]{0}', space=sflag, size = 0x8, scoped, tag = 'scoped memory for tpu_custom_call.1']
    #allocation7 [shape = 's32[2]{0}', space=sflag, size = 0x8, scoped, tag = 'scoped memory for tpu_custom_call.1']
    #allocation8 [shape = 'u8[8192]{0}', space=vmem, size = 0x2000, scoped, tag = 'input window, operand 1']
    #allocation9 [shape = 's32[2]{0}', space=sflag, size = 0x8, scoped, tag = 'scoped memory for tpu_custom_call.1']
    #allocation10 [shape = 'u8[8192]{0}', space=vmem, size = 0x2000, scoped, tag = 'input window, operand 2']
    #allocation11 [shape = 'u8[8192]{0}', space=vmem, size = 0x2000, scoped, tag = 'input window, operand 4, single buffered']
    #allocation12 [shape = 's32[1]{0}', space=sflag, size = 0x4, scoped, tag = 'scoped memory for tpu_custom_call.1']
    #allocation13 [shape = 'u8[8192]{0}', space=vmem, size = 0x2000, scoped, tag = 'input window, operand 5, single buffered']
    #allocation14 [shape = 'u8[8192]{0}', space=vmem, size = 0x2000, scoped, tag = 'input window, operand 6, single buffered']
    #allocation15 [shape = 's32[1]{0}', space=sflag, size = 0x4, scoped, tag = 'scoped memory for tpu_custom_call.1']
    #allocation16 [shape = 'u8[8192]{0}', space=vmem, size = 0x2000, scoped, tag = 'input window, operand 7, single buffered']
    #allocation17 [shape = 'u8[8192]{0}', space=vmem, size = 0x2000, scoped, tag = 'output window, operand 0']
    #allocation18 [shape = 'u8[32768]{0}', space=vmem, size = 0x8000, scoped, tag = 'output window, operand 1']
    #allocation19 [shape = 's32[2]{0}', space=sflag, size = 0x8, scoped, tag = 'scoped memory for tpu_custom_call.1']
    %19 = vsyncpa [#allocation6], 0
    %s20 = scalar_lea.sflag [#allocation6], 1
    %21 = vsyncpa %s20, 0
    %22 = vsyncpa [#allocation9], 0
    %s23 = scalar_lea.sflag [#allocation9], 1
    %24 = vsyncpa %s23, 0
    %25 = vsyncpa [#allocation12], 0
    %26 = vsyncpa [#allocation15], 0
    %27 = vsyncpa [#allocation7], 0
    %s28 = scalar_lea.sflag [#allocation7], 1
    %29 = vsyncpa %s28, 0
    %30 = vsyncpa [#allocation19], 0
    %s31 = scalar_lea.sflag [#allocation19], 1
    %32 = vsyncpa %s31, 0
    loop: start=0, step=1, limit=4
    $region2: #{tpu_custom_call.1} parent=1 // loop_pre_header
      _
    $region3: #{tpu_custom_call.1} parent=1 // loop_header
      %s34 = sphi 0, %s38
      %p35 = scmp.ge.s32.totalorder %s34, 4
      %s41 = sphi 0, %s53
      %s42 = sphi 0, %s49
      %s43 = sphi 0, %s41
      %s44 = sphi 0, %s42
      %s45 = sphi 0, %s43
      %s46 = sphi 0, %s44
      %s58 = sphi 0, %s60
      %s61 = sphi 0, %s58
      %s62 = sphi 0, %s61
      %s78 = sphi 0, %s62
      %s84 = sphi 0, %s86
      %s87 = sphi 0, %s84
      %s88 = sphi 0, %s87
      %s104 = sphi 0, %s88
      %s110 = sphi 0, %s112
      %s113 = sphi 0, %s110
      %s114 = sphi 0, %s113
      %s130 = sphi 0, %s114
      %s136 = sphi 0, %s138
      %s139 = sphi 0, %s136
      %s140 = sphi 0, %s139
      %s156 = sphi 0, %s140
      %s160 = sphi 0, %s160
      %s162 = sphi 0, %s160
      %s163 = sphi 0, %s162
      %s177 = sphi 0, %s163
      %s181 = sphi 0, %s181
      %s183 = sphi 0, %s181
      %s184 = sphi 0, %s183
      %s198 = sphi 0, %s184
      %s202 = sphi 0, %s202
      %s204 = sphi 0, %s202
      %s205 = sphi 0, %s204
      %s219 = sphi 0, %s205
      %s223 = sphi 0, %s223
      %s225 = sphi 0, %s223
      %s226 = sphi 0, %s225
      %s240 = sphi 0, %s226
      %s244 = sphi 0, %s244
      %s246 = sphi 0, %s244
      %s247 = sphi 0, %s246
      %s261 = sphi 0, %s247
      %s265 = sphi 0, %s265
      %s267 = sphi 0, %s265
      %s268 = sphi 0, %s267
      %s282 = sphi 0, %s268
      %s286 = sphi 0, %s286
      %s288 = sphi 0, %s286
      %s289 = sphi 0, %s288
      %s303 = sphi 0, %s289
      %s307 = sphi 0, %s307
      %s309 = sphi 0, %s307
      %s310 = sphi 0, %s309
      %s324 = sphi 0, %s310
      %s332 = sphi 0, %s334
      %s335 = sphi 0, %s332
      %s336 = sphi 0, %s335
      %s352 = sphi 0, %s336
      %s360 = sphi 0, %s362
      %s363 = sphi 0, %s360
      %s364 = sphi 0, %s363
      %s380 = sphi 0, %s364
    $region4: #{tpu_custom_call.1} parent=1 // loop_header_branch
      %37 = sbr.rel (%p35) target = $region8
    $region5: #{tpu_custom_call.1} parent=1 // loop_body
      %s39 = ssub.s32 %s34, 1
      %s40 = ssub.s32 %s34, 2
      %s47 = sadd.s32 1, %s42
      %p48 = scmp.ge.s32.totalorder %s47, 1
      %s49 = scalar_select %p48, 0, %s47
      %s50 = sadd.s32 1, %s41
      %s51 = scalar_select %p48, %s50, %s41
      %p52 = scmp.ge.s32.totalorder %s51, 2
      %s53 = scalar_select %p52, 0, %s51
      %s54 = ssub.s32 %s41, %s53
      %s55 = ssub.s32 %s42, %s49
      %s56 = sor.u32 %s54, %s55
      %p57 = scmp.eq.s32.totalorder %s56, 0
      %s59 = sadd.s32 %s58, 1
      %s60 = scalar_select %p57, %s58, %s59
      %p63 = pneg %p57
      %p64 = scmp.eq.s32.totalorder %s34, 1
      %p65 = por %p63, %p64
      %p66 = scmp.ne.s32.totalorder %s58, %s61
      %p67 = scmp.eq.s32.totalorder %s34, 0
      %p68 = por %p66, %p67
      %p69 = scmp.ne.s32.totalorder %s58, %s61
      %p70 = scmp.eq.s32.totalorder %s39, 1
      %p71 = por %p69, %p70
      %p72 = scmp.ne.s32.totalorder %s61, %s62
      %p73 = scmp.eq.s32.totalorder %s39, 0
      %p74 = por %p72, %p73
      %p75 = scmp.ne.s32.totalorder %s61, %s62
      %p76 = scmp.eq.s32.totalorder %s40, 1
      %p77 = por %p75, %p76
      %p79 = scmp.ne.s32.totalorder %s62, %s78
      %p80 = scmp.eq.s32.totalorder %s40, 0
      %p81 = por %p79, %p80
      %s82 = ssub.s32 %s41, %s53
      %p83 = scmp.eq.s32.totalorder %s82, 0
      %s85 = sadd.s32 %s84, 1
      %s86 = scalar_select %p83, %s84, %s85
      %p89 = pneg %p83
      %p90 = scmp.eq.s32.totalorder %s34, 1
      %p91 = por %p89, %p90
      %p92 = scmp.ne.s32.totalorder %s84, %s87
      %p93 = scmp.eq.s32.totalorder %s34, 0
      %p94 = por %p92, %p93
      %p95 = scmp.ne.s32.totalorder %s84, %s87
      %p96 = scmp.eq.s32.totalorder %s39, 1
      %p97 = por %p95, %p96
      %p98 = scmp.ne.s32.totalorder %s87, %s88
      %p99 = scmp.eq.s32.totalorder %s39, 0
      %p100 = por %p98, %p99
      %p101 = scmp.ne.s32.totalorder %s87, %s88
      %p102 = scmp.eq.s32.totalorder %s40, 1
      %p103 = por %p101, %p102
      %p105 = scmp.ne.s32.totalorder %s88, %s104
      %p106 = scmp.eq.s32.totalorder %s40, 0
      %p107 = por %p105, %p106
      %s108 = ssub.s32 %s41, %s53
      %p109 = scmp.eq.s32.totalorder %s108, 0
      %s111 = sadd.s32 %s110, 1
      %s112 = scalar_select %p109, %s110, %s111
      %p115 = pneg %p109
      %p116 = scmp.eq.s32.totalorder %s34, 1
      %p117 = por %p115, %p116
      %p118 = scmp.ne.s32.totalorder %s110, %s113
      %p119 = scmp.eq.s32.totalorder %s34, 0
      %p120 = por %p118, %p119
      %p121 = scmp.ne.s32.totalorder %s110, %s113
      %p122 = scmp.eq.s32.totalorder %s39, 1
      %p123 = por %p121, %p122
      %p124 = scmp.ne.s32.totalorder %s113, %s114
      %p125 = scmp.eq.s32.totalorder %s39, 0
      %p126 = por %p124, %p125
      %p127 = scmp.ne.s32.totalorder %s113, %s114
      %p128 = scmp.eq.s32.totalorder %s40, 1
      %p129 = por %p127, %p128
      %p131 = scmp.ne.s32.totalorder %s114, %s130
      %p132 = scmp.eq.s32.totalorder %s40, 0
      %p133 = por %p131, %p132
      %s134 = ssub.s32 %s41, %s53
      %p135 = scmp.eq.s32.totalorder %s134, 0
      %s137 = sadd.s32 %s136, 1
      %s138 = scalar_select %p135, %s136, %s137
      %p141 = pneg %p135
      %p142 = scmp.eq.s32.totalorder %s34, 1
      %p143 = por %p141, %p142
      %p144 = scmp.ne.s32.totalorder %s136, %s139
      %p145 = scmp.eq.s32.totalorder %s34, 0
      %p146 = por %p144, %p145
      %p147 = scmp.ne.s32.totalorder %s136, %s139
      %p148 = scmp.eq.s32.totalorder %s39, 1
      %p149 = por %p147, %p148
      %p150 = scmp.ne.s32.totalorder %s139, %s140
      %p151 = scmp.eq.s32.totalorder %s39, 0
      %p152 = por %p150, %p151
      %p153 = scmp.ne.s32.totalorder %s139, %s140
      %p154 = scmp.eq.s32.totalorder %s40, 1
      %p155 = por %p153, %p154
      %p157 = scmp.ne.s32.totalorder %s140, %s156
      %p158 = scmp.eq.s32.totalorder %s40, 0
      %p159 = por %p157, %p158
      %s161 = sadd.s32 %s160, 1
      %p164 = scmp.eq.s32.totalorder %s34, 1
      %p165 = scmp.ne.s32.totalorder %s160, %s162
      %p166 = scmp.eq.s32.totalorder %s34, 0
      %p167 = por %p165, %p166
      %p168 = scmp.ne.s32.totalorder %s160, %s162
      %p169 = scmp.eq.s32.totalorder %s39, 1
      %p170 = por %p168, %p169
      %p171 = scmp.ne.s32.totalorder %s162, %s163
      %p172 = scmp.eq.s32.totalorder %s39, 0
      %p173 = por %p171, %p172
      %p174 = scmp.ne.s32.totalorder %s162, %s163
      %p175 = scmp.eq.s32.totalorder %s40, 1
      %p176 = por %p174, %p175
      %p178 = scmp.ne.s32.totalorder %s163, %s177
      %p179 = scmp.eq.s32.totalorder %s40, 0
      %p180 = por %p178, %p179
      %s182 = sadd.s32 %s181, 1
      %p185 = scmp.eq.s32.totalorder %s34, 1
      %p186 = scmp.ne.s32.totalorder %s181, %s183
      %p187 = scmp.eq.s32.totalorder %s34, 0
      %p188 = por %p186, %p187
      %p189 = scmp.ne.s32.totalorder %s181, %s183
      %p190 = scmp.eq.s32.totalorder %s39, 1
      %p191 = por %p189, %p190
      %p192 = scmp.ne.s32.totalorder %s183, %s184
      %p193 = scmp.eq.s32.totalorder %s39, 0
      %p194 = por %p192, %p193
      %p195 = scmp.ne.s32.totalorder %s183, %s184
      %p196 = scmp.eq.s32.totalorder %s40, 1
      %p197 = por %p195, %p196
      %p199 = scmp.ne.s32.totalorder %s184, %s198
      %p200 = scmp.eq.s32.totalorder %s40, 0
      %p201 = por %p199, %p200
      %s203 = sadd.s32 %s202, 1
      %p206 = scmp.eq.s32.totalorder %s34, 1
      %p207 = scmp.ne.s32.totalorder %s202, %s204
      %p208 = scmp.eq.s32.totalorder %s34, 0
      %p209 = por %p207, %p208
      %p210 = scmp.ne.s32.totalorder %s202, %s204
      %p211 = scmp.eq.s32.totalorder %s39, 1
      %p212 = por %p210, %p211
      %p213 = scmp.ne.s32.totalorder %s204, %s205
      %p214 = scmp.eq.s32.totalorder %s39, 0
      %p215 = por %p213, %p214
      %p216 = scmp.ne.s32.totalorder %s204, %s205
      %p217 = scmp.eq.s32.totalorder %s40, 1
      %p218 = por %p216, %p217
      %p220 = scmp.ne.s32.totalorder %s205, %s219
      %p221 = scmp.eq.s32.totalorder %s40, 0
      %p222 = por %p220, %p221
      %s224 = sadd.s32 %s223, 1
      %p227 = scmp.eq.s32.totalorder %s34, 1
      %p228 = scmp.ne.s32.totalorder %s223, %s225
      %p229 = scmp.eq.s32.totalorder %s34, 0
      %p230 = por %p228, %p229
      %p231 = scmp.ne.s32.totalorder %s223, %s225
      %p232 = scmp.eq.s32.totalorder %s39, 1
      %p233 = por %p231, %p232
      %p234 = scmp.ne.s32.totalorder %s225, %s226
      %p235 = scmp.eq.s32.totalorder %s39, 0
      %p236 = por %p234, %p235
      %p237 = scmp.ne.s32.totalorder %s225, %s226
      %p238 = scmp.eq.s32.totalorder %s40, 1
      %p239 = por %p237, %p238
      %p241 = scmp.ne.s32.totalorder %s226, %s240
      %p242 = scmp.eq.s32.totalorder %s40, 0
      %p243 = por %p241, %p242
      %s245 = sadd.s32 %s244, 1
      %p248 = scmp.eq.s32.totalorder %s34, 1
      %p249 = scmp.ne.s32.totalorder %s244, %s246
      %p250 = scmp.eq.s32.totalorder %s34, 0
      %p251 = por %p249, %p250
      %p252 = scmp.ne.s32.totalorder %s244, %s246
      %p253 = scmp.eq.s32.totalorder %s39, 1
      %p254 = por %p252, %p253
      %p255 = scmp.ne.s32.totalorder %s246, %s247
      %p256 = scmp.eq.s32.totalorder %s39, 0
      %p257 = por %p255, %p256
      %p258 = scmp.ne.s32.totalorder %s246, %s247
      %p259 = scmp.eq.s32.totalorder %s40, 1
      %p260 = por %p258, %p259
      %p262 = scmp.ne.s32.totalorder %s247, %s261
      %p263 = scmp.eq.s32.totalorder %s40, 0
      %p264 = por %p262, %p263
      %s266 = sadd.s32 %s265, 1
      %p269 = scmp.eq.s32.totalorder %s34, 1
      %p270 = scmp.ne.s32.totalorder %s265, %s267
      %p271 = scmp.eq.s32.totalorder %s34, 0
      %p272 = por %p270, %p271
      %p273 = scmp.ne.s32.totalorder %s265, %s267
      %p274 = scmp.eq.s32.totalorder %s39, 1
      %p275 = por %p273, %p274
      %p276 = scmp.ne.s32.totalorder %s267, %s268
      %p277 = scmp.eq.s32.totalorder %s39, 0
      %p278 = por %p276, %p277
      %p279 = scmp.ne.s32.totalorder %s267, %s268
      %p280 = scmp.eq.s32.totalorder %s40, 1
      %p281 = por %p279, %p280
      %p283 = scmp.ne.s32.totalorder %s268, %s282
      %p284 = scmp.eq.s32.totalorder %s40, 0
      %p285 = por %p283, %p284
      %s287 = sadd.s32 %s286, 1
      %p290 = scmp.eq.s32.totalorder %s34, 1
      %p291 = scmp.ne.s32.totalorder %s286, %s288
      %p292 = scmp.eq.s32.totalorder %s34, 0
      %p293 = por %p291, %p292
      %p294 = scmp.ne.s32.totalorder %s286, %s288
      %p295 = scmp.eq.s32.totalorder %s39, 1
      %p296 = por %p294, %p295
      %p297 = scmp.ne.s32.totalorder %s288, %s289
      %p298 = scmp.eq.s32.totalorder %s39, 0
      %p299 = por %p297, %p298
      %p300 = scmp.ne.s32.totalorder %s288, %s289
      %p301 = scmp.eq.s32.totalorder %s40, 1
      %p302 = por %p300, %p301
      %p304 = scmp.ne.s32.totalorder %s289, %s303
      %p305 = scmp.eq.s32.totalorder %s40, 0
      %p306 = por %p304, %p305
      %s308 = sadd.s32 %s307, 1
      %p311 = scmp.eq.s32.totalorder %s34, 1
      %p312 = scmp.ne.s32.totalorder %s307, %s309
      %p313 = scmp.eq.s32.totalorder %s34, 0
      %p314 = por %p312, %p313
      %p315 = scmp.ne.s32.totalorder %s307, %s309
      %p316 = scmp.eq.s32.totalorder %s39, 1
      %p317 = por %p315, %p316
      %p318 = scmp.ne.s32.totalorder %s309, %s310
      %p319 = scmp.eq.s32.totalorder %s39, 0
      %p320 = por %p318, %p319
      %p321 = scmp.ne.s32.totalorder %s309, %s310
      %p322 = scmp.eq.s32.totalorder %s40, 1
      %p323 = por %p321, %p322
      %p325 = scmp.ne.s32.totalorder %s310, %s324
      %p326 = scmp.eq.s32.totalorder %s40, 0
      %p327 = por %p325, %p326
      %s328 = ssub.s32 %s41, %s53
      %s329 = ssub.s32 %s42, %s49
      %s330 = sor.u32 %s328, %s329
      %p331 = scmp.eq.s32.totalorder %s330, 0
      %s333 = sadd.s32 %s332, 1
      %s334 = scalar_select %p331, %s332, %s333
      %p337 = pneg %p331
      %p338 = scmp.eq.s32.totalorder %s34, 1
      %p339 = por %p337, %p338
      %p340 = scmp.ne.s32.totalorder %s332, %s335
      %p341 = scmp.eq.s32.totalorder %s34, 0
      %p342 = por %p340, %p341
      %p343 = scmp.ne.s32.totalorder %s332, %s335
      %p344 = scmp.eq.s32.totalorder %s39, 1
      %p345 = por %p343, %p344
      %p346 = scmp.ne.s32.totalorder %s335, %s336
      %p347 = scmp.eq.s32.totalorder %s39, 0
      %p348 = por %p346, %p347
      %p349 = scmp.ne.s32.totalorder %s335, %s336
      %p350 = scmp.eq.s32.totalorder %s40, 1
      %p351 = por %p349, %p350
      %p353 = scmp.ne.s32.totalorder %s336, %s352
      %p354 = scmp.eq.s32.totalorder %s40, 0
      %p355 = por %p353, %p354
      %s356 = ssub.s32 %s41, %s53
      %s357 = ssub.s32 %s42, %s49
      %s358 = sor.u32 %s356, %s357
      %p359 = scmp.eq.s32.totalorder %s358, 0
      %s361 = sadd.s32 %s360, 1
      %s362 = scalar_select %p359, %s360, %s361
      %p365 = pneg %p359
      %p366 = scmp.eq.s32.totalorder %s34, 1
      %p367 = por %p365, %p366
      %p368 = scmp.ne.s32.totalorder %s360, %s363
      %p369 = scmp.eq.s32.totalorder %s34, 0
      %p370 = por %p368, %p369
      %p371 = scmp.ne.s32.totalorder %s360, %s363
      %p372 = scmp.eq.s32.totalorder %s39, 1
      %p373 = por %p371, %p372
      %p374 = scmp.ne.s32.totalorder %s363, %s364
      %p375 = scmp.eq.s32.totalorder %s39, 0
      %p376 = por %p374, %p375
      %p377 = scmp.ne.s32.totalorder %s363, %s364
      %p378 = scmp.eq.s32.totalorder %s40, 1
      %p379 = por %p377, %p378
      %p381 = scmp.ne.s32.totalorder %s364, %s380
      %p382 = scmp.eq.s32.totalorder %s40, 0
      %p383 = por %p381, %p382
      %p384 = scmp.le.s32.totalorder 1, %s34
      %p385 = scmp.lt.s32.totalorder %s34, 3
      %p386 = pnand %p384, %p385
      %p387 = pneg %p386
      // Predicated region
      $region9: #{tpu_custom_call.1} parent=5 // pred_check
        _
      $region10: #{tpu_custom_call.1} parent=5 // pred_check_branch
        %389 = sbr.rel (%p386) target = $region12
      $region11: #{tpu_custom_call.1} parent=5 // pred_region
        %s390 = ssub.s32 %s34, 1
        // Predicated region
        $region13: #{tpu_custom_call.1} parent=11 // pred_check
          %p391 = pneg %p173
        $region14: #{tpu_custom_call.1} parent=11 // pred_check_branch
          %393 = sbr.rel (%p391) target = $region16
        $region15: #{tpu_custom_call.1} parent=11 // pred_region
          %s395 = ssub.s32 256, 256
          %396 = vsyncadd [#allocation12], %s395
          %s397 = sshll.u32 [#allocation11], 4
          %s398 = int_to_ptr.vmem [resolvable:$true] %s397
          %403 = dma.hbm_to_vmem [thread:$0]  %s4, 256, %s398, [#allocation12], 64, 64, 4
        $region16: #{tpu_custom_call.1} parent=11 // pred_fallthru
          _
        // Predicated region
        $region17: #{tpu_custom_call.1} parent=11 // pred_check
          %p404 = pneg %p194
        $region18: #{tpu_custom_call.1} parent=11 // pred_check_branch
          %406 = sbr.rel (%p404) target = $region20
        $region19: #{tpu_custom_call.1} parent=11 // pred_region
          %s408 = ssub.s32 256, 256
          %409 = vsyncadd [#allocation12], %s408
          %s410 = sshll.u32 [#allocation13], 4
          %s411 = int_to_ptr.vmem [resolvable:$true] %s410
          %416 = dma.hbm_to_vmem [thread:$0]  %s5, 256, %s411, [#allocation12], 64, 64, 4
        $region20: #{tpu_custom_call.1} parent=11 // pred_fallthru
          _
        // Predicated region
        $region21: #{tpu_custom_call.1} parent=11 // pred_check
          %p417 = pneg %p215
        $region22: #{tpu_custom_call.1} parent=11 // pred_check_branch
          %419 = sbr.rel (%p417) target = $region24
        $region23: #{tpu_custom_call.1} parent=11 // pred_region
          %s421 = ssub.s32 256, 256
          %422 = vsyncadd [#allocation15], %s421
          %s423 = sshll.u32 [#allocation14], 4
          %s424 = int_to_ptr.vmem [resolvable:$true] %s423
          %429 = dma.hbm_to_vmem [thread:$0]  %s6, 256, %s424, [#allocation15], 64, 64, 4
        $region24: #{tpu_custom_call.1} parent=11 // pred_fallthru
          _
        // Predicated region
        $region25: #{tpu_custom_call.1} parent=11 // pred_check
          %p430 = pneg %p236
        $region26: #{tpu_custom_call.1} parent=11 // pred_check_branch
          %432 = sbr.rel (%p430) target = $region28
        $region27: #{tpu_custom_call.1} parent=11 // pred_region
          %s434 = ssub.s32 256, 256
          %435 = vsyncadd [#allocation15], %s434
          %s436 = sshll.u32 [#allocation16], 4
          %s437 = int_to_ptr.vmem [resolvable:$true] %s436
          %442 = dma.hbm_to_vmem [thread:$0]  %s7, 256, %s437, [#allocation15], 64, 64, 4
        $region28: #{tpu_custom_call.1} parent=11 // pred_fallthru
          _
        // Predicated region
        $region29: #{tpu_custom_call.1} parent=11 // pred_check
          %p443 = pneg %p257
        $region30: #{tpu_custom_call.1} parent=11 // pred_check_branch
          %445 = sbr.rel (%p443) target = $region32
        $region31: #{tpu_custom_call.1} parent=11 // pred_region
          _
        $region32: #{tpu_custom_call.1} parent=11 // pred_fallthru
          _
        // Predicated region
        $region33: #{tpu_custom_call.1} parent=11 // pred_check
          %p446 = pneg %p278
        $region34: #{tpu_custom_call.1} parent=11 // pred_check_branch
          %448 = sbr.rel (%p446) target = $region36
        $region35: #{tpu_custom_call.1} parent=11 // pred_region
          _
        $region36: #{tpu_custom_call.1} parent=11 // pred_fallthru
          _
        // Predicated region
        $region37: #{tpu_custom_call.1} parent=11 // pred_check
          %p449 = pneg %p299
        $region38: #{tpu_custom_call.1} parent=11 // pred_check_branch
          %451 = sbr.rel (%p449) target = $region40
        $region39: #{tpu_custom_call.1} parent=11 // pred_region
          _
        $region40: #{tpu_custom_call.1} parent=11 // pred_fallthru
          _
        // Predicated region
        $region41: #{tpu_custom_call.1} parent=11 // pred_check
          %p452 = pneg %p320
        $region42: #{tpu_custom_call.1} parent=11 // pred_check_branch
          %454 = sbr.rel (%p452) target = $region44
        $region43: #{tpu_custom_call.1} parent=11 // pred_region
          _
        $region44: #{tpu_custom_call.1} parent=11 // pred_fallthru
          _
      $region12: #{tpu_custom_call.1} parent=5 // pred_fallthru
        _
      %p455 = scmp.lt.s32.totalorder %s34, 2
      // Predicated region
      $region45: #{tpu_custom_call.1} parent=5 // pred_check
        %p456 = pneg %p455
      $region46: #{tpu_custom_call.1} parent=5 // pred_check_branch
        %458 = sbr.rel (%p456) target = $region48
      $region47: #{tpu_custom_call.1} parent=5 // pred_region
        // Predicated region
        $region49: #{tpu_custom_call.1} parent=47 // pred_check
          %p459 = pneg %p68
        $region50: #{tpu_custom_call.1} parent=47 // pred_check_branch
          %461 = sbr.rel (%p459) target = $region52
        $region51: #{tpu_custom_call.1} parent=47 // pred_region
          %s462 = sand.u32 %s58, 1
          %s463 = scalar_lea.sflag [#allocation6], %s462
          %s464 = sand.u32 %s58, 1
          %s465 = smul.addr %s464, 8
          %s466 = scalar_lea.vmem [#allocation5], %s465
          %s468 = ssub.s32 128, 128
          %469 = vsyncadd %s463, %s468
          %s470 = sadd.s32 %s42, %s41
          %s471 = smul.addr %s470, 128
          %s472 = scalar_lea.hbm %s0, %s471
          %s474 = sshll.u32 %s466, 4
          %s475 = int_to_ptr.vmem [resolvable:$true] %s474
          %477 = dma.hbm_to_vmem [thread:$0]  %s472, 128, %s475, %s463
        $region52: #{tpu_custom_call.1} parent=47 // pred_fallthru
          _
        // Predicated region
        $region53: #{tpu_custom_call.1} parent=47 // pred_check
          %p478 = pneg %p94
        $region54: #{tpu_custom_call.1} parent=47 // pred_check_branch
          %480 = sbr.rel (%p478) target = $region56
        $region55: #{tpu_custom_call.1} parent=47 // pred_region
          %s481 = sand.u32 %s34, 1
          %s482 = scalar_lea.sflag [#allocation9], %s481
          %s483 = sand.u32 %s84, 1
          %s484 = smul.addr %s483, 8
          %s485 = scalar_lea.vmem [#allocation8], %s484
          %s487 = ssub.s32 128, 128
          %488 = vsyncadd %s482, %s487
          %s489 = smul.addr %s41, 128
          %s490 = scalar_lea.hbm %s1, %s489
          %s492 = sshll.u32 %s485, 4
          %s493 = int_to_ptr.vmem [resolvable:$true] %s492
          %495 = dma.hbm_to_vmem [thread:$0]  %s490, 128, %s493, %s482
        $region56: #{tpu_custom_call.1} parent=47 // pred_fallthru
          _
        // Predicated region
        $region57: #{tpu_custom_call.1} parent=47 // pred_check
          %p496 = pneg %p120
        $region58: #{tpu_custom_call.1} parent=47 // pred_check_branch
          %498 = sbr.rel (%p496) target = $region60
        $region59: #{tpu_custom_call.1} parent=47 // pred_region
          %s499 = sand.u32 %s34, 1
          %s500 = scalar_lea.sflag [#allocation9], %s499
          %s501 = sand.u32 %s110, 1
          %s502 = smul.addr %s501, 8
          %s503 = scalar_lea.vmem [#allocation10], %s502
          %s505 = ssub.s32 128, 128
          %506 = vsyncadd %s500, %s505
          %s507 = smul.addr %s41, 128
          %s508 = scalar_lea.hbm %s2, %s507
          %s510 = sshll.u32 %s503, 4
          %s511 = int_to_ptr.vmem [resolvable:$true] %s510
          %513 = dma.hbm_to_vmem [thread:$0]  %s508, 128, %s511, %s500
        $region60: #{tpu_custom_call.1} parent=47 // pred_fallthru
          _
        // Predicated region
        $region61: #{tpu_custom_call.1} parent=47 // pred_check
          %p514 = pneg %p146
        $region62: #{tpu_custom_call.1} parent=47 // pred_check_branch
          %516 = sbr.rel (%p514) target = $region64
        $region63: #{tpu_custom_call.1} parent=47 // pred_region
          %p517 = scmp.lt.s32.totalorder %s41, 1
          %s518 = scalar_select %p517, %s41, 1
          %s519 = scalar_lea.vmem %s3, %s518
        $region64: #{tpu_custom_call.1} parent=47 // pred_fallthru
          _
      $region48: #{tpu_custom_call.1} parent=5 // pred_fallthru
        _
      %p520 = scmp.le.s32.totalorder 1, %s34
      %p521 = scmp.lt.s32.totalorder %s34, 3
      %p522 = pnand %p520, %p521
      %p523 = pneg %p522
      // Predicated region
      $region65: #{tpu_custom_call.1} parent=5 // pred_check
        _
      $region66: #{tpu_custom_call.1} parent=5 // pred_check_branch
        %525 = sbr.rel (%p522) target = $region68
      $region67: #{tpu_custom_call.1} parent=5 // pred_region
        %s526 = ssub.s32 %s34, 1
        %s527 = sand.u32 %s61, 1
        %s528 = scalar_lea.sflag [#allocation6], %s527
        %s529 = sand.u32 %s61, 1
        %s530 = smul.addr %s529, 8
        %s531 = scalar_lea.vmem [#allocation5], %s530
        // Predicated region
        $region69: #{tpu_custom_call.1} parent=67 // pred_check
          %p532 = pneg %p74
        $region70: #{tpu_custom_call.1} parent=67 // pred_check_branch
          %534 = sbr.rel (%p532) target = $region72
        $region71: #{tpu_custom_call.1} parent=67 // pred_region
          %535 = dma.done %s528, 128
        $region72: #{tpu_custom_call.1} parent=67 // pred_fallthru
          _
        %s536 = sand.u32 %s39, 1
        %s537 = scalar_lea.sflag [#allocation9], %s536
        %s538 = sand.u32 %s87, 1
        %s539 = smul.addr %s538, 8
        %s540 = scalar_lea.vmem [#allocation8], %s539
        // Predicated region
        $region73: #{tpu_custom_call.1} parent=67 // pred_check
          %p541 = pneg %p100
        $region74: #{tpu_custom_call.1} parent=67 // pred_check_branch
          %543 = sbr.rel (%p541) target = $region76
        $region75: #{tpu_custom_call.1} parent=67 // pred_region
          %544 = dma.done %s537, 128
        $region76: #{tpu_custom_call.1} parent=67 // pred_fallthru
          _
        %s545 = sand.u32 %s39, 1
        %s546 = scalar_lea.sflag [#allocation9], %s545
        %s547 = sand.u32 %s113, 1
        %s548 = smul.addr %s547, 8
        %s549 = scalar_lea.vmem [#allocation10], %s548
        // Predicated region
        $region77: #{tpu_custom_call.1} parent=67 // pred_check
          %p550 = pneg %p126
        $region78: #{tpu_custom_call.1} parent=67 // pred_check_branch
          %552 = sbr.rel (%p550) target = $region80
        $region79: #{tpu_custom_call.1} parent=67 // pred_region
          %553 = dma.done %s546, 128
        $region80: #{tpu_custom_call.1} parent=67 // pred_fallthru
          _
        // Predicated region
        $region81: #{tpu_custom_call.1} parent=67 // pred_check
          %p554 = pneg %p173
        $region82: #{tpu_custom_call.1} parent=67 // pred_check_branch
          %556 = sbr.rel (%p554) target = $region84
        $region83: #{tpu_custom_call.1} parent=67 // pred_region
          %557 = dma.done [#allocation12], 256
        $region84: #{tpu_custom_call.1} parent=67 // pred_fallthru
          _
        // Predicated region
        $region85: #{tpu_custom_call.1} parent=67 // pred_check
          %p558 = pneg %p194
        $region86: #{tpu_custom_call.1} parent=67 // pred_check_branch
          %560 = sbr.rel (%p558) target = $region88
        $region87: #{tpu_custom_call.1} parent=67 // pred_region
          %561 = dma.done [#allocation12], 256
        $region88: #{tpu_custom_call.1} parent=67 // pred_fallthru
          _
        // Predicated region
        $region89: #{tpu_custom_call.1} parent=67 // pred_check
          %p562 = pneg %p215
        $region90: #{tpu_custom_call.1} parent=67 // pred_check_branch
          %564 = sbr.rel (%p562) target = $region92
        $region91: #{tpu_custom_call.1} parent=67 // pred_region
          %565 = dma.done [#allocation15], 256
        $region92: #{tpu_custom_call.1} parent=67 // pred_fallthru
          _
        // Predicated region
        $region93: #{tpu_custom_call.1} parent=67 // pred_check
          %p566 = pneg %p236
        $region94: #{tpu_custom_call.1} parent=67 // pred_check_branch
          %568 = sbr.rel (%p566) target = $region96
        $region95: #{tpu_custom_call.1} parent=67 // pred_region
          %569 = dma.done [#allocation15], 256
        $region96: #{tpu_custom_call.1} parent=67 // pred_fallthru
          _
        %s570 = sand.u32 %s61, 1
        %s571 = scalar_lea.sflag [#allocation6], %s570
        %s572 = sand.u32 %s61, 1
        %s573 = smul.addr %s572, 8
        %s574 = scalar_lea.vmem [#allocation5], %s573
        %p575 = pneg %p74
        %p576 = pneg %p71
        %s577 = sand.u32 %s39, 1
        %s578 = scalar_lea.sflag [#allocation9], %s577
        %s579 = sand.u32 %s87, 1
        %s580 = smul.addr %s579, 8
        %s581 = scalar_lea.vmem [#allocation8], %s580
        %p582 = pneg %p100
        %p583 = pneg %p97
        %s584 = sand.u32 %s39, 1
        %s585 = scalar_lea.sflag [#allocation9], %s584
        %s586 = sand.u32 %s113, 1
        %s587 = smul.addr %s586, 8
        %s588 = scalar_lea.vmem [#allocation10], %s587
        %p589 = pneg %p126
        %p590 = pneg %p123
        %p591 = scmp.lt.s32.totalorder %s43, 1
        %s592 = scalar_select %p591, %s43, 1
        %s593 = scalar_lea.vmem %s3, %s592
        %p594 = pneg %p152
        %p595 = pneg %p149
        %p596 = pneg %p173
        %p597 = pneg %p170
        %p598 = pneg %p194
        %p599 = pneg %p191
        %p600 = pneg %p215
        %p601 = pneg %p212
        %p602 = pneg %p236
        %p603 = pneg %p233
        %p604 = pneg %p257
        %p605 = pneg %p254
        %p606 = pneg %p278
        %p607 = pneg %p275
        %p608 = pneg %p299
        %p609 = pneg %p296
        %p610 = pneg %p320
        %p611 = pneg %p317
        %p612 = pneg %p348
        %p613 = pneg %p345
        %s614 = sand.u32 %s335, 1
        %s615 = scalar_lea.sflag [#allocation7], %s614
        %s616 = sand.u32 %s335, 1
        %s617 = smul.addr %s616, 8
        %s618 = scalar_lea.vmem [#allocation17], %s617
        %p619 = pneg %p376
        %p620 = pneg %p373
        %s621 = sand.u32 %s363, 1
        %s622 = scalar_lea.sflag [#allocation19], %s621
        %s623 = sand.u32 %s363, 1
        %s624 = smul.addr %s623, 32
        %s625 = scalar_lea.vmem [#allocation18], %s624
        %p626 = scmp.lt.s32.totalorder %s43, 1
        %s627 = scalar_select %p626, %s43, 1
        %s628 = scalar_lea.vmem %s3, %s627
        %p630 = scmp.eq.s32.totalorder %s44, 0
        // Predicated region
        $region97: #{tpu_custom_call.1} parent=67 // pred_check
          %p631 = pneg %p630
        $region98: #{tpu_custom_call.1} parent=67 // pred_check_branch
          %633 = sbr.rel (%p631) target = $region100
        $region99: #{tpu_custom_call.1} parent=67 // pred_region
          %v634 = vld [vmem:[%s540] sm:$0xff]
          %v635 = vpack.c.bf16 %v634, %v634
          %v636 = vld [vmem:[%s549] sm:$0xff]
          %v637 = vpack.c.bf16 %v636, %v636
          %v638 = vld [vmem:[#allocation13] sm:$0xf]
          %v639 = vld [vmem:[#allocation13 + $0x4] sm:$0xf]
          %v640 = vld [vmem:[#allocation13 + $0x8] sm:$0xf]
          %v641 = vld [vmem:[#allocation13 + $0xc] sm:$0xf]
          %v642 = vld [vmem:[%s9] sm:$0x1]
          %v644 = vlaneseq
          %v645 = vshrl.u32 %v644, 7
          %v646 = vsub.s32 0, %v645
          %v647 = vrot.slane %v642, %v646
          %v653 = vunpack.c.l.b16 %v638
          %v654 = vunpack.c.l.b16 %v639
          %v655 = vunpack.c.l.b16 %v640
          %v656 = vunpack.c.l.b16 %v641
          %v657 = vpack.c.b16 %v654, %v653
          %v658 = vpack.c.b16 %v656, %v655
          %vm661 = vcmask 261120
          %v663 = vsel %vm661, %v635, 0
          %665 = vmatprep.subr.bf16.mxu0 0
          %666 = vmatpush1.bf16.msra.mxu0 0
          %667 = vmatprep.subr.bf16.mxu0 0
          %668 = vmatpush1.bf16.msra.mxu0 0
          %669 = vmatprep.subr.bf16.mxu0 0
          %670 = vmatpush1.bf16.msra.mxu0 0
          %671 = vmatprep.subr.bf16.mxu0 0
          %672 = vmatpush1.bf16.msra.mxu0 0
          %673 = vmatprep.subr.bf16.mxu0 0
          %674 = vmatpush1.bf16.msra.mxu0 0
          %675 = vmatprep.subr.bf16.mxu0 0
          %676 = vmatpush1.bf16.msra.mxu0 0
          %677 = vmatprep.subr.bf16.mxu0 0
          %678 = vmatpush1.bf16.msra.mxu0 %v658
          %679 = vmatprep.subr.bf16.mxu0 0
          %680 = vmatpush1.bf16.msra.mxu0 %v657
          %681 = vmatprep.subr.bf16.mxu0 0
          %682 = vmatpush2.bf16.msra.mxu0 0
          %683 = vmatprep.subr.bf16.mxu0 0
          %684 = vmatpush2.bf16.msra.mxu0 0
          %685 = vmatprep.subr.bf16.mxu0 0
          %686 = vmatpush2.bf16.msra.mxu0 0
          %687 = vmatprep.subr.bf16.mxu0 0
          %688 = vmatpush2.bf16.msra.mxu0 0
          %689 = vmatprep.subr.bf16.mxu0 0
          %690 = vmatpush2.bf16.msra.mxu0 0
          %691 = vmatprep.subr.bf16.mxu0 0
          %692 = vmatpush2.bf16.msra.mxu0 0
          %693 = vmatprep.subr.bf16.mxu0 0
          %694 = vmatpush2.bf16.msra.mxu0 0
          %695 = vmatprep.subr.bf16.mxu0 0
          %696 = vmatpush2.bf16.msra.mxu0 0
          %697 = vmatprep.mubr.bf16.mxu0 0
          %698 = vmatmul.mubr.bf16.gmra.mxu0 %v663
          %v699 = vpop.f32.mrf.mxu0
          %v700 = vadd.f32 %v647, %v699
          %v701 = vpop.f32.mrf.mxu0
          %v702 = vpop.f32.mrf.mxu0
          %v703 = vpop.f32.mrf.mxu0
          %704 = vdwg.mxu0
          %v705 = vpack.c.bf16 %v700, %v700
          %vm706 = vcmask 257024
          %707 = vst.msk [vmem:[#allocation2] sm:$0xf] %vm706, %v705
          %v708 = vld [vmem:[#allocation14] sm:$0xf]
          %v709 = vld [vmem:[#allocation14 + $0x4] sm:$0xf]
          %v710 = vld [vmem:[#allocation14 + $0x8] sm:$0xf]
          %v711 = vld [vmem:[#allocation14 + $0xc] sm:$0xf]
          %v712 = vld [vmem:[%s10] sm:$0x1]
          %v714 = vlaneseq
          %v715 = vshrl.u32 %v714, 7
          %v716 = vsub.s32 0, %v715
          %v717 = vrot.slane %v712, %v716
          %v723 = vunpack.c.l.b16 %v708
          %v724 = vunpack.c.l.b16 %v709
          %v725 = vunpack.c.l.b16 %v710
          %v726 = vunpack.c.l.b16 %v711
          %v727 = vpack.c.b16 %v724, %v723
          %v728 = vpack.c.b16 %v726, %v725
          %v732 = vsel %vm661, %v637, 0
          %734 = vmatprep.subr.bf16.mxu0 0
          %735 = vmatpush1.bf16.msra.mxu0 0
          %736 = vmatprep.subr.bf16.mxu0 0
          %737 = vmatpush1.bf16.msra.mxu0 0
          %738 = vmatprep.subr.bf16.mxu0 0
          %739 = vmatpush1.bf16.msra.mxu0 0
          %740 = vmatprep.subr.bf16.mxu0 0
          %741 = vmatpush1.bf16.msra.mxu0 0
          %742 = vmatprep.subr.bf16.mxu0 0
          %743 = vmatpush1.bf16.msra.mxu0 0
          %744 = vmatprep.subr.bf16.mxu0 0
          %745 = vmatpush1.bf16.msra.mxu0 0
          %746 = vmatprep.subr.bf16.mxu0 0
          %747 = vmatpush1.bf16.msra.mxu0 %v728
          %748 = vmatprep.subr.bf16.mxu0 0
          %749 = vmatpush1.bf16.msra.mxu0 %v727
          %750 = vmatprep.subr.bf16.mxu0 0
          %751 = vmatpush2.bf16.msra.mxu0 0
          %752 = vmatprep.subr.bf16.mxu0 0
          %753 = vmatpush2.bf16.msra.mxu0 0
          %754 = vmatprep.subr.bf16.mxu0 0
          %755 = vmatpush2.bf16.msra.mxu0 0
          %756 = vmatprep.subr.bf16.mxu0 0
          %757 = vmatpush2.bf16.msra.mxu0 0
          %758 = vmatprep.subr.bf16.mxu0 0
          %759 = vmatpush2.bf16.msra.mxu0 0
          %760 = vmatprep.subr.bf16.mxu0 0
          %761 = vmatpush2.bf16.msra.mxu0 0
          %762 = vmatprep.subr.bf16.mxu0 0
          %763 = vmatpush2.bf16.msra.mxu0 0
          %764 = vmatprep.subr.bf16.mxu0 0
          %765 = vmatpush2.bf16.msra.mxu0 0
          %766 = vmatprep.mubr.bf16.mxu0 0
          %767 = vmatmul.mubr.bf16.gmra.mxu0 %v732
          %v768 = vpop.f32.mrf.mxu0
          %v769 = vadd.f32 %v717, %v768
          %v770 = vpop.f32.mrf.mxu0
          %v771 = vpop.f32.mrf.mxu0
          %v772 = vpop.f32.mrf.mxu0
          %773 = vdwg.mxu0
          %v774 = vpack.c.bf16 %v769, %v769
          %775 = vst.msk [vmem:[#allocation3] sm:$0xf] %vm706, %v774
        $region100: #{tpu_custom_call.1} parent=67 // pred_fallthru
          _
        %v776 = vld [vmem:[%s531] sm:$0xff]
        %v777 = vpack.c.bf16 %v776, %v776
        %v778 = vld [vmem:[#allocation11] sm:$0xf]
        %v779 = vld [vmem:[#allocation11 + $0x4] sm:$0xf]
        %v780 = vld [vmem:[#allocation11 + $0x8] sm:$0xf]
        %v781 = vld [vmem:[#allocation11 + $0xc] sm:$0xf]
        %v782 = vld [vmem:[%s8] sm:$0x1]
        %v784 = vlaneseq
        %v785 = vshrl.u32 %v784, 7
        %v786 = vsub.s32 0, %v785
        %v787 = vrot.slane %v782, %v786
        %v793 = vunpack.c.l.b16 %v778
        %v794 = vunpack.c.l.b16 %v779
        %v795 = vunpack.c.l.b16 %v780
        %v796 = vunpack.c.l.b16 %v781
        %v797 = vpack.c.b16 %v794, %v793
        %v798 = vpack.c.b16 %v796, %v795
        %vm801 = vcmask 261120
        %v803 = vsel %vm801, %v777, 0
        %805 = vmatprep.subr.bf16.mxu0 0
        %806 = vmatpush1.bf16.msra.mxu0 0
        %807 = vmatprep.subr.bf16.mxu0 0
        %808 = vmatpush1.bf16.msra.mxu0 0
        %809 = vmatprep.subr.bf16.mxu0 0
        %810 = vmatpush1.bf16.msra.mxu0 0
        %811 = vmatprep.subr.bf16.mxu0 0
        %812 = vmatpush1.bf16.msra.mxu0 0
        %813 = vmatprep.subr.bf16.mxu0 0
        %814 = vmatpush1.bf16.msra.mxu0 0
        %815 = vmatprep.subr.bf16.mxu0 0
        %816 = vmatpush1.bf16.msra.mxu0 0
        %817 = vmatprep.subr.bf16.mxu0 0
        %818 = vmatpush1.bf16.msra.mxu0 %v798
        %819 = vmatprep.subr.bf16.mxu0 0
        %820 = vmatpush1.bf16.msra.mxu0 %v797
        %821 = vmatprep.subr.bf16.mxu0 0
        %822 = vmatpush2.bf16.msra.mxu0 0
        %823 = vmatprep.subr.bf16.mxu0 0
        %824 = vmatpush2.bf16.msra.mxu0 0
        %825 = vmatprep.subr.bf16.mxu0 0
        %826 = vmatpush2.bf16.msra.mxu0 0
        %827 = vmatprep.subr.bf16.mxu0 0
        %828 = vmatpush2.bf16.msra.mxu0 0
        %829 = vmatprep.subr.bf16.mxu0 0
        %830 = vmatpush2.bf16.msra.mxu0 0
        %831 = vmatprep.subr.bf16.mxu0 0
        %832 = vmatpush2.bf16.msra.mxu0 0
        %833 = vmatprep.subr.bf16.mxu0 0
        %834 = vmatpush2.bf16.msra.mxu0 0
        %835 = vmatprep.subr.bf16.mxu0 0
        %836 = vmatpush2.bf16.msra.mxu0 0
        %837 = vmatprep.mubr.bf16.mxu0 0
        %838 = vmatmul.mubr.bf16.gmra.mxu0 %v803
        %v839 = vpop.f32.mrf.mxu0
        %v840 = vadd.f32 %v787, %v839
        %v841 = vpop.f32.mrf.mxu0
        %v842 = vpop.f32.mrf.mxu0
        %v843 = vpop.f32.mrf.mxu0
        %844 = vdwg.mxu0
        %v845 = vpack.c.bf16 %v840, %v840
        %v846 = vld [vmem:[%s628] sm:$0x1]
        %vm847 = vcmp.eq.s32.totalorder %v846, 0
        %v848 = vsel %vm847, -1e+10, 0.0
        %v849 = vld [vmem:[#allocation2] sm:$0xf]
        %v850 = vld [vmem:[#allocation3] sm:$0xf]
        %v852 = vlaneseq
        %v853 = vshrl.u32 %v852, 7
        %v854 = vsub.s32 0, %v853
        %v855 = vrot.slane %v848, %v854
        %vm857 = vcmask 64512
        %v859 = vsel %vm857, %v845, 0
        %v862 = vsel %vm857, %v849, 0
        %864 = vmatprep.subr.bf16.mxu0 0
        %865 = vmatpush1.bf16.xpose.msra.mxu0 0
        %866 = vmatprep.subr.bf16.mxu0 0
        %867 = vmatpush1.bf16.xpose.msra.mxu0 0
        %868 = vmatprep.subr.bf16.mxu0 0
        %869 = vmatpush1.bf16.xpose.msra.mxu0 0
        %870 = vmatprep.subr.bf16.mxu0 0
        %871 = vmatpush1.bf16.xpose.msra.mxu0 0
        %872 = vmatprep.subr.bf16.mxu0 0
        %873 = vmatpush1.bf16.xpose.msra.mxu0 0
        %874 = vmatprep.subr.bf16.mxu0 0
        %875 = vmatpush1.bf16.xpose.msra.mxu0 0
        %876 = vmatprep.subr.bf16.mxu0 0
        %877 = vmatpush1.bf16.xpose.msra.mxu0 0
        %878 = vmatprep.subr.bf16.mxu0 0
        %879 = vmatpush1.bf16.xpose.msra.mxu0 %v862
        %880 = vmatprep.subr.bf16.mxu0 0
        %881 = vmatpush2.bf16.xpose.msra.mxu0 0
        %882 = vmatprep.subr.bf16.mxu0 0
        %883 = vmatpush2.bf16.xpose.msra.mxu0 0
        %884 = vmatprep.subr.bf16.mxu0 0
        %885 = vmatpush2.bf16.xpose.msra.mxu0 0
        %886 = vmatprep.subr.bf16.mxu0 0
        %887 = vmatpush2.bf16.xpose.msra.mxu0 0
        %888 = vmatprep.subr.bf16.mxu0 0
        %889 = vmatpush2.bf16.xpose.msra.mxu0 0
        %890 = vmatprep.subr.bf16.mxu0 0
        %891 = vmatpush2.bf16.xpose.msra.mxu0 0
        %892 = vmatprep.subr.bf16.mxu0 0
        %893 = vmatpush2.bf16.xpose.msra.mxu0 0
        %894 = vmatprep.subr.bf16.mxu0 0
        %895 = vmatpush2.bf16.xpose.msra.mxu0 0
        %896 = vmatprep.mubr.bf16.mxu0 0
        %897 = vmatmul.mubr.bf16.gmra.mxu0 %v859
        %v898 = vpop.f32.mrf.mxu0
        %v899 = vadd.f32 %v855, %v898
        %v900 = vpop.f32.mrf.mxu0
        %v901 = vpop.f32.mrf.mxu0
        %v902 = vpop.f32.mrf.mxu0
        %903 = vdwg.mxu0
        %v904 = vsel %vm857, %v899, -inf
        %905 = vmax.xlane.f32.xlu0 %v904
        %v906 = vpop.xlane.xlu0 %905
        %v907 = vsub.f32 %v899, %v906
        %v908 = vmul.f32 %v907, 1.442695
        %v909 = vpow.pop %v908
        %v910 = vsel %vm857, %v909, 0.0
        %911 = vadd.xlane.f32.xlu0 %v910
        %v912 = vpop.xlane.xlu0 %911
        %v913 = vrcp.pop %v912
        %v914 = vmul.f32 %v909, %v913
        %915 = vst.msk [vmem:[%s625] sm:$0xff] %vm857, %v914
        %v916 = vpack.c.bf16 %v914, %v914
        %v918 = vsel %vm857, %v916, 0
        %vm920 = vcmask 1043456
        %v922 = vsel %vm920, %v850, 0
        %924 = vmatprep.subr.bf16.mxu0 0
        %925 = vmatpush1.bf16.msra.mxu0 0
        %926 = vmatprep.subr.bf16.mxu0 0
        %927 = vmatpush1.bf16.msra.mxu0 0
        %928 = vmatprep.subr.bf16.mxu0 0
        %929 = vmatpush1.bf16.msra.mxu0 0
        %930 = vmatprep.subr.bf16.mxu0 0
        %931 = vmatpush1.bf16.msra.mxu0 0
        %932 = vmatprep.subr.bf16.mxu0 0
        %933 = vmatpush1.bf16.msra.mxu0 0
        %934 = vmatprep.subr.bf16.mxu0 0
        %935 = vmatpush1.bf16.msra.mxu0 0
        %936 = vmatprep.subr.bf16.mxu0 0
        %937 = vmatpush1.bf16.msra.mxu0 0
        %938 = vmatprep.subr.bf16.mxu0 0
        %939 = vmatpush1.bf16.msra.mxu0 %v922
        %940 = vmatprep.subr.bf16.mxu0 0
        %941 = vmatpush2.bf16.msra.mxu0 0
        %942 = vmatprep.subr.bf16.mxu0 0
        %943 = vmatpush2.bf16.msra.mxu0 0
        %944 = vmatprep.subr.bf16.mxu0 0
        %945 = vmatpush2.bf16.msra.mxu0 0
        %946 = vmatprep.subr.bf16.mxu0 0
        %947 = vmatpush2.bf16.msra.mxu0 0
        %948 = vmatprep.subr.bf16.mxu0 0
        %949 = vmatpush2.bf16.msra.mxu0 0
        %950 = vmatprep.subr.bf16.mxu0 0
        %951 = vmatpush2.bf16.msra.mxu0 0
        %952 = vmatprep.subr.bf16.mxu0 0
        %953 = vmatpush2.bf16.msra.mxu0 0
        %954 = vmatprep.subr.bf16.mxu0 0
        %955 = vmatpush2.bf16.msra.mxu0 0
        %956 = vmatprep.mubr.bf16.mxu0 0
        %957 = vmatmul.mubr.bf16.gmra.mxu0 %v918
        %v958 = vpop.f32.mrf.mxu0
        %v959 = vadd.f32 0.0, %v958
        %v960 = vpop.f32.mrf.mxu0
        %v961 = vpop.f32.mrf.mxu0
        %v962 = vpop.f32.mrf.mxu0
        %963 = vdwg.mxu0
        %v964 = vpack.c.bf16 %v959, %v959
        %vm965 = vcmask 60416
        %966 = vst.msk [vmem:[#allocation4] sm:$0xf] %vm965, %v964
        %v967 = vld [vmem:[#allocation2] sm:$0xf]
        %v968 = vld [vmem:[#allocation3] sm:$0xf]
        %970 = vrot.lane.b32.xlu0 %v845, 120
        %v971 = vpop.permute.xlu0 %970
        %v973 = vunpack.c.l.b16 %v967
        %v974 = vpack.c.b16 %v973, %v973
        %975 = vrot.lane.b32.xlu0 %v974, 120
        %v976 = vpop.permute.xlu0 %975
        %v978 = vsel %vm857, %v971, 0
        %v981 = vsel %vm857, %v976, 0
        %983 = vmatprep.subr.bf16.mxu0 0
        %984 = vmatpush1.bf16.xpose.msra.mxu0 0
        %985 = vmatprep.subr.bf16.mxu0 0
        %986 = vmatpush1.bf16.xpose.msra.mxu0 0
        %987 = vmatprep.subr.bf16.mxu0 0
        %988 = vmatpush1.bf16.xpose.msra.mxu0 0
        %989 = vmatprep.subr.bf16.mxu0 0
        %990 = vmatpush1.bf16.xpose.msra.mxu0 0
        %991 = vmatprep.subr.bf16.mxu0 0
        %992 = vmatpush1.bf16.xpose.msra.mxu0 0
        %993 = vmatprep.subr.bf16.mxu0 0
        %994 = vmatpush1.bf16.xpose.msra.mxu0 0
        %995 = vmatprep.subr.bf16.mxu0 0
        %996 = vmatpush1.bf16.xpose.msra.mxu0 0
        %997 = vmatprep.subr.bf16.mxu0 0
        %998 = vmatpush1.bf16.xpose.msra.mxu0 %v981
        %999 = vmatprep.subr.bf16.mxu0 0
        %1000 = vmatpush2.bf16.xpose.msra.mxu0 0
        %1001 = vmatprep.subr.bf16.mxu0 0
        %1002 = vmatpush2.bf16.xpose.msra.mxu0 0
        %1003 = vmatprep.subr.bf16.mxu0 0
        %1004 = vmatpush2.bf16.xpose.msra.mxu0 0
        %1005 = vmatprep.subr.bf16.mxu0 0
        %1006 = vmatpush2.bf16.xpose.msra.mxu0 0
        %1007 = vmatprep.subr.bf16.mxu0 0
        %1008 = vmatpush2.bf16.xpose.msra.mxu0 0
        %1009 = vmatprep.subr.bf16.mxu0 0
        %1010 = vmatpush2.bf16.xpose.msra.mxu0 0
        %1011 = vmatprep.subr.bf16.mxu0 0
        %1012 = vmatpush2.bf16.xpose.msra.mxu0 0
        %1013 = vmatprep.subr.bf16.mxu0 0
        %1014 = vmatpush2.bf16.xpose.msra.mxu0 0
        %1015 = vmatprep.mubr.bf16.mxu0 0
        %1016 = vmatmul.mubr.bf16.gmra.mxu0 %v978
        %v1017 = vpop.f32.mrf.mxu0
        %v1018 = vadd.f32 %v855, %v1017
        %v1019 = vpop.f32.mrf.mxu0
        %v1020 = vpop.f32.mrf.mxu0
        %v1021 = vpop.f32.mrf.mxu0
        %1022 = vdwg.mxu0
        %v1023 = vsel %vm857, %v1018, -inf
        %1024 = vmax.xlane.f32.xlu0 %v1023
        %v1025 = vpop.xlane.xlu0 %1024
        %v1026 = vsub.f32 %v1018, %v1025
        %v1027 = vmul.f32 %v1026, 1.442695
        %v1028 = vpow.pop %v1027
        %v1029 = vsel %vm857, %v1028, 0.0
        %1030 = vadd.xlane.f32.xlu0 %v1029
        %v1031 = vpop.xlane.xlu0 %1030
        %v1032 = vrcp.pop %v1031
        %v1033 = vmul.f32 %v1028, %v1032
        %s1034 = scalar_lea.vmem %s625, 8 [#allocation18]
        %1035 = vst.msk [vmem:[%s1034] sm:$0xff] %vm857, %v1033
        %v1036 = vpack.c.bf16 %v1033, %v1033
        %v1038 = vunpack.c.l.b16 %v968
        %v1039 = vpack.c.b16 %v1038, %v1038
        %1040 = vrot.lane.b32.xlu0 %v1039, 120
        %v1041 = vpop.permute.xlu0 %1040
        %v1043 = vsel %vm857, %v1036, 0
        %v1046 = vsel %vm920, %v1041, 0
        %1048 = vmatprep.subr.bf16.mxu0 0
        %1049 = vmatpush1.bf16.msra.mxu0 0
        %1050 = vmatprep.subr.bf16.mxu0 0
        %1051 = vmatpush1.bf16.msra.mxu0 0
        %1052 = vmatprep.subr.bf16.mxu0 0
        %1053 = vmatpush1.bf16.msra.mxu0 0
        %1054 = vmatprep.subr.bf16.mxu0 0
        %1055 = vmatpush1.bf16.msra.mxu0 0
        %1056 = vmatprep.subr.bf16.mxu0 0
        %1057 = vmatpush1.bf16.msra.mxu0 0
        %1058 = vmatprep.subr.bf16.mxu0 0
        %1059 = vmatpush1.bf16.msra.mxu0 0
        %1060 = vmatprep.subr.bf16.mxu0 0
        %1061 = vmatpush1.bf16.msra.mxu0 0
        %1062 = vmatprep.subr.bf16.mxu0 0
        %1063 = vmatpush1.bf16.msra.mxu0 %v1046
        %1064 = vmatprep.subr.bf16.mxu0 0
        %1065 = vmatpush2.bf16.msra.mxu0 0
        %1066 = vmatprep.subr.bf16.mxu0 0
        %1067 = vmatpush2.bf16.msra.mxu0 0
        %1068 = vmatprep.subr.bf16.mxu0 0
        %1069 = vmatpush2.bf16.msra.mxu0 0
        %1070 = vmatprep.subr.bf16.mxu0 0
        %1071 = vmatpush2.bf16.msra.mxu0 0
        %1072 = vmatprep.subr.bf16.mxu0 0
        %1073 = vmatpush2.bf16.msra.mxu0 0
        %1074 = vmatprep.subr.bf16.mxu0 0
        %1075 = vmatpush2.bf16.msra.mxu0 0
        %1076 = vmatprep.subr.bf16.mxu0 0
        %1077 = vmatpush2.bf16.msra.mxu0 0
        %1078 = vmatprep.subr.bf16.mxu0 0
        %1079 = vmatpush2.bf16.msra.mxu0 0
        %1080 = vmatprep.mubr.bf16.mxu0 0
        %1081 = vmatmul.mubr.bf16.gmra.mxu0 %v1043
        %v1082 = vpop.f32.mrf.mxu0
        %v1083 = vadd.f32 0.0, %v1082
        %v1084 = vpop.f32.mrf.mxu0
        %v1085 = vpop.f32.mrf.mxu0
        %v1086 = vpop.f32.mrf.mxu0
        %1087 = vdwg.mxu0
        %v1088 = vpack.c.bf16 %v1083, %v1083
        %v1090 = vunpack.c.l.b16 %v1088
        %v1091 = vpack.c.b16 %v1090, %v1090
        %1092 = vrot.lane.b32.xlu0 %v1091, 8
        %v1093 = vpop.permute.xlu0 %1092
        %vm1095 = vcmask 126016
        %1096 = vst.msk [vmem:[#allocation4] sm:$0xf] %vm1095, %v1093
        %v1097 = vld [vmem:[#allocation2] sm:$0xf]
        %v1098 = vld [vmem:[#allocation3] sm:$0xf]
        %1099 = vrot.lane.b32.xlu0 %v845, 112
        %v1100 = vpop.permute.xlu0 %1099
        %v1102 = vunpack.c.l.b16 %v1097
        %v1103 = vpack.c.b16 %v1102, %v1102
        %1104 = vrot.lane.b32.xlu0 %v1103, 112
        %v1105 = vpop.permute.xlu0 %1104
        %v1107 = vsel %vm857, %v1100, 0
        %v1110 = vsel %vm857, %v1105, 0
        %1112 = vmatprep.subr.bf16.mxu0 0
        %1113 = vmatpush1.bf16.xpose.msra.mxu0 0
        %1114 = vmatprep.subr.bf16.mxu0 0
        %1115 = vmatpush1.bf16.xpose.msra.mxu0 0
        %1116 = vmatprep.subr.bf16.mxu0 0
        %1117 = vmatpush1.bf16.xpose.msra.mxu0 0
        %1118 = vmatprep.subr.bf16.mxu0 0
        %1119 = vmatpush1.bf16.xpose.msra.mxu0 0
        %1120 = vmatprep.subr.bf16.mxu0 0
        %1121 = vmatpush1.bf16.xpose.msra.mxu0 0
        %1122 = vmatprep.subr.bf16.mxu0 0
        %1123 = vmatpush1.bf16.xpose.msra.mxu0 0
        %1124 = vmatprep.subr.bf16.mxu0 0
        %1125 = vmatpush1.bf16.xpose.msra.mxu0 0
        %1126 = vmatprep.subr.bf16.mxu0 0
        %1127 = vmatpush1.bf16.xpose.msra.mxu0 %v1110
        %1128 = vmatprep.subr.bf16.mxu0 0
        %1129 = vmatpush2.bf16.xpose.msra.mxu0 0
        %1130 = vmatprep.subr.bf16.mxu0 0
        %1131 = vmatpush2.bf16.xpose.msra.mxu0 0
        %1132 = vmatprep.subr.bf16.mxu0 0
        %1133 = vmatpush2.bf16.xpose.msra.mxu0 0
        %1134 = vmatprep.subr.bf16.mxu0 0
        %1135 = vmatpush2.bf16.xpose.msra.mxu0 0
        %1136 = vmatprep.subr.bf16.mxu0 0
        %1137 = vmatpush2.bf16.xpose.msra.mxu0 0
        %1138 = vmatprep.subr.bf16.mxu0 0
        %1139 = vmatpush2.bf16.xpose.msra.mxu0 0
        %1140 = vmatprep.subr.bf16.mxu0 0
        %1141 = vmatpush2.bf16.xpose.msra.mxu0 0
        %1142 = vmatprep.subr.bf16.mxu0 0
        %1143 = vmatpush2.bf16.xpose.msra.mxu0 0
        %1144 = vmatprep.mubr.bf16.mxu0 0
        %1145 = vmatmul.mubr.bf16.gmra.mxu0 %v1107
        %v1146 = vpop.f32.mrf.mxu0
        %v1147 = vadd.f32 %v855, %v1146
        %v1148 = vpop.f32.mrf.mxu0
        %v1149 = vpop.f32.mrf.mxu0
        %v1150 = vpop.f32.mrf.mxu0
        %1151 = vdwg.mxu0
        %v1152 = vsel %vm857, %v1147, -inf
        %1153 = vmax.xlane.f32.xlu0 %v1152
        %v1154 = vpop.xlane.xlu0 %1153
        %v1155 = vsub.f32 %v1147, %v1154
        %v1156 = vmul.f32 %v1155, 1.442695
        %v1157 = vpow.pop %v1156
        %v1158 = vsel %vm857, %v1157, 0.0
        %1159 = vadd.xlane.f32.xlu0 %v1158
        %v1160 = vpop.xlane.xlu0 %1159
        %v1161 = vrcp.pop %v1160
        %v1162 = vmul.f32 %v1157, %v1161
        %s1163 = scalar_lea.vmem %s625, 16 [#allocation18]
        %1164 = vst.msk [vmem:[%s1163] sm:$0xff] %vm857, %v1162
        %v1165 = vpack.c.bf16 %v1162, %v1162
        %v1167 = vunpack.c.l.b16 %v1098
        %v1168 = vpack.c.b16 %v1167, %v1167
        %1169 = vrot.lane.b32.xlu0 %v1168, 112
        %v1170 = vpop.permute.xlu0 %1169
        %v1172 = vsel %vm857, %v1165, 0
        %v1175 = vsel %vm920, %v1170, 0
        %1177 = vmatprep.subr.bf16.mxu0 0
        %1178 = vmatpush1.bf16.msra.mxu0 0
        %1179 = vmatprep.subr.bf16.mxu0 0
        %1180 = vmatpush1.bf16.msra.mxu0 0
        %1181 = vmatprep.subr.bf16.mxu0 0
        %1182 = vmatpush1.bf16.msra.mxu0 0
        %1183 = vmatprep.subr.bf16.mxu0 0
        %1184 = vmatpush1.bf16.msra.mxu0 0
        %1185 = vmatprep.subr.bf16.mxu0 0
        %1186 = vmatpush1.bf16.msra.mxu0 0
        %1187 = vmatprep.subr.bf16.mxu0 0
        %1188 = vmatpush1.bf16.msra.mxu0 0
        %1189 = vmatprep.subr.bf16.mxu0 0
        %1190 = vmatpush1.bf16.msra.mxu0 0
        %1191 = vmatprep.subr.bf16.mxu0 0
        %1192 = vmatpush1.bf16.msra.mxu0 %v1175
        %1193 = vmatprep.subr.bf16.mxu0 0
        %1194 = vmatpush2.bf16.msra.mxu0 0
        %1195 = vmatprep.subr.bf16.mxu0 0
        %1196 = vmatpush2.bf16.msra.mxu0 0
        %1197 = vmatprep.subr.bf16.mxu0 0
        %1198 = vmatpush2.bf16.msra.mxu0 0
        %1199 = vmatprep.subr.bf16.mxu0 0
        %1200 = vmatpush2.bf16.msra.mxu0 0
        %1201 = vmatprep.subr.bf16.mxu0 0
        %1202 = vmatpush2.bf16.msra.mxu0 0
        %1203 = vmatprep.subr.bf16.mxu0 0
        %1204 = vmatpush2.bf16.msra.mxu0 0
        %1205 = vmatprep.subr.bf16.mxu0 0
        %1206 = vmatpush2.bf16.msra.mxu0 0
        %1207 = vmatprep.subr.bf16.mxu0 0
        %1208 = vmatpush2.bf16.msra.mxu0 0
        %1209 = vmatprep.mubr.bf16.mxu0 0
        %1210 = vmatmul.mubr.bf16.gmra.mxu0 %v1172
        %v1211 = vpop.f32.mrf.mxu0
        %v1212 = vadd.f32 0.0, %v1211
        %v1213 = vpop.f32.mrf.mxu0
        %v1214 = vpop.f32.mrf.mxu0
        %v1215 = vpop.f32.mrf.mxu0
        %1216 = vdwg.mxu0
        %v1217 = vpack.c.bf16 %v1212, %v1212
        %v1219 = vunpack.c.l.b16 %v1217
        %v1220 = vpack.c.b16 %v1219, %v1219
        %1221 = vrot.lane.b32.xlu0 %v1220, 16
        %v1222 = vpop.permute.xlu0 %1221
        %vm1224 = vcmask 191616
        %1225 = vst.msk [vmem:[#allocation4] sm:$0xf] %vm1224, %v1222
        %v1226 = vld [vmem:[#allocation2] sm:$0xf]
        %v1227 = vld [vmem:[#allocation3] sm:$0xf]
        %1228 = vrot.lane.b32.xlu0 %v845, 104
        %v1229 = vpop.permute.xlu0 %1228
        %v1231 = vunpack.c.l.b16 %v1226
        %v1232 = vpack.c.b16 %v1231, %v1231
        %1233 = vrot.lane.b32.xlu0 %v1232, 104
        %v1234 = vpop.permute.xlu0 %1233
        %v1236 = vsel %vm857, %v1229, 0
        %v1239 = vsel %vm857, %v1234, 0
        %1241 = vmatprep.subr.bf16.mxu0 0
        %1242 = vmatpush1.bf16.xpose.msra.mxu0 0
        %1243 = vmatprep.subr.bf16.mxu0 0
        %1244 = vmatpush1.bf16.xpose.msra.mxu0 0
        %1245 = vmatprep.subr.bf16.mxu0 0
        %1246 = vmatpush1.bf16.xpose.msra.mxu0 0
        %1247 = vmatprep.subr.bf16.mxu0 0
        %1248 = vmatpush1.bf16.xpose.msra.mxu0 0
        %1249 = vmatprep.subr.bf16.mxu0 0
        %1250 = vmatpush1.bf16.xpose.msra.mxu0 0
        %1251 = vmatprep.subr.bf16.mxu0 0
        %1252 = vmatpush1.bf16.xpose.msra.mxu0 0
        %1253 = vmatprep.subr.bf16.mxu0 0
        %1254 = vmatpush1.bf16.xpose.msra.mxu0 0
        %1255 = vmatprep.subr.bf16.mxu0 0
        %1256 = vmatpush1.bf16.xpose.msra.mxu0 %v1239
        %1257 = vmatprep.subr.bf16.mxu0 0
        %1258 = vmatpush2.bf16.xpose.msra.mxu0 0
        %1259 = vmatprep.subr.bf16.mxu0 0
        %1260 = vmatpush2.bf16.xpose.msra.mxu0 0
        %1261 = vmatprep.subr.bf16.mxu0 0
        %1262 = vmatpush2.bf16.xpose.msra.mxu0 0
        %1263 = vmatprep.subr.bf16.mxu0 0
        %1264 = vmatpush2.bf16.xpose.msra.mxu0 0
        %1265 = vmatprep.subr.bf16.mxu0 0
        %1266 = vmatpush2.bf16.xpose.msra.mxu0 0
        %1267 = vmatprep.subr.bf16.mxu0 0
        %1268 = vmatpush2.bf16.xpose.msra.mxu0 0
        %1269 = vmatprep.subr.bf16.mxu0 0
        %1270 = vmatpush2.bf16.xpose.msra.mxu0 0
        %1271 = vmatprep.subr.bf16.mxu0 0
        %1272 = vmatpush2.bf16.xpose.msra.mxu0 0
        %1273 = vmatprep.mubr.bf16.mxu0 0
        %1274 = vmatmul.mubr.bf16.gmra.mxu0 %v1236
        %v1275 = vpop.f32.mrf.mxu0
        %v1276 = vadd.f32 %v855, %v1275
        %v1277 = vpop.f32.mrf.mxu0
        %v1278 = vpop.f32.mrf.mxu0
        %v1279 = vpop.f32.mrf.mxu0
        %1280 = vdwg.mxu0
        %v1281 = vsel %vm857, %v1276, -inf
        %1282 = vmax.xlane.f32.xlu0 %v1281
        %v1283 = vpop.xlane.xlu0 %1282
        %v1284 = vsub.f32 %v1276, %v1283
        %v1285 = vmul.f32 %v1284, 1.442695
        %v1286 = vpow.pop %v1285
        %v1287 = vsel %vm857, %v1286, 0.0
        %1288 = vadd.xlane.f32.xlu0 %v1287
        %v1289 = vpop.xlane.xlu0 %1288
        %v1290 = vrcp.pop %v1289
        %v1291 = vmul.f32 %v1286, %v1290
        %s1292 = scalar_lea.vmem %s625, 24 [#allocation18]
        %1293 = vst.msk [vmem:[%s1292] sm:$0xff] %vm857, %v1291
        %v1294 = vpack.c.bf16 %v1291, %v1291
        %v1296 = vunpack.c.l.b16 %v1227
        %v1297 = vpack.c.b16 %v1296, %v1296
        %1298 = vrot.lane.b32.xlu0 %v1297, 104
        %v1299 = vpop.permute.xlu0 %1298
        %v1301 = vsel %vm857, %v1294, 0
        %v1304 = vsel %vm920, %v1299, 0
        %1306 = vmatprep.subr.bf16.mxu0 0
        %1307 = vmatpush1.bf16.msra.mxu0 0
        %1308 = vmatprep.subr.bf16.mxu0 0
        %1309 = vmatpush1.bf16.msra.mxu0 0
        %1310 = vmatprep.subr.bf16.mxu0 0
        %1311 = vmatpush1.bf16.msra.mxu0 0
        %1312 = vmatprep.subr.bf16.mxu0 0
        %1313 = vmatpush1.bf16.msra.mxu0 0
        %1314 = vmatprep.subr.bf16.mxu0 0
        %1315 = vmatpush1.bf16.msra.mxu0 0
        %1316 = vmatprep.subr.bf16.mxu0 0
        %1317 = vmatpush1.bf16.msra.mxu0 0
        %1318 = vmatprep.subr.bf16.mxu0 0
        %1319 = vmatpush1.bf16.msra.mxu0 0
        %1320 = vmatprep.subr.bf16.mxu0 0
        %1321 = vmatpush1.bf16.msra.mxu0 %v1304
        %1322 = vmatprep.subr.bf16.mxu0 0
        %1323 = vmatpush2.bf16.msra.mxu0 0
        %1324 = vmatprep.subr.bf16.mxu0 0
        %1325 = vmatpush2.bf16.msra.mxu0 0
        %1326 = vmatprep.subr.bf16.mxu0 0
        %1327 = vmatpush2.bf16.msra.mxu0 0
        %1328 = vmatprep.subr.bf16.mxu0 0
        %1329 = vmatpush2.bf16.msra.mxu0 0
        %1330 = vmatprep.subr.bf16.mxu0 0
        %1331 = vmatpush2.bf16.msra.mxu0 0
        %1332 = vmatprep.subr.bf16.mxu0 0
        %1333 = vmatpush2.bf16.msra.mxu0 0
        %1334 = vmatprep.subr.bf16.mxu0 0
        %1335 = vmatpush2.bf16.msra.mxu0 0
        %1336 = vmatprep.subr.bf16.mxu0 0
        %1337 = vmatpush2.bf16.msra.mxu0 0
        %1338 = vmatprep.mubr.bf16.mxu0 0
        %1339 = vmatmul.mubr.bf16.gmra.mxu0 %v1301
        %v1340 = vpop.f32.mrf.mxu0
        %v1341 = vadd.f32 0.0, %v1340
        %v1342 = vpop.f32.mrf.mxu0
        %v1343 = vpop.f32.mrf.mxu0
        %v1344 = vpop.f32.mrf.mxu0
        %1345 = vdwg.mxu0
        %v1346 = vpack.c.bf16 %v1341, %v1341
        %v1348 = vunpack.c.l.b16 %v1346
        %v1349 = vpack.c.b16 %v1348, %v1348
        %1350 = vrot.lane.b32.xlu0 %v1349, 24
        %v1351 = vpop.permute.xlu0 %1350
        %vm1353 = vcmask 257216
        %1354 = vst.msk [vmem:[#allocation4] sm:$0xf] %vm1353, %v1351
        %v1355 = vld [vmem:[#allocation4] sm:$0xf]
        %v1356 = vld [vmem:[#allocation16] sm:$0xf]
        %v1357 = vld [vmem:[#allocation16 + $0x4] sm:$0xf]
        %v1358 = vld [vmem:[#allocation16 + $0x8] sm:$0xf]
        %v1359 = vld [vmem:[#allocation16 + $0xc] sm:$0xf]
        %v1360 = vld [vmem:[%s11] sm:$0x1]
        %v1362 = vlaneseq
        %v1363 = vshrl.u32 %v1362, 7
        %v1364 = vsub.s32 0, %v1363
        %v1365 = vrot.slane %v1360, %v1364
        %v1371 = vunpack.c.l.b16 %v1356
        %v1372 = vunpack.c.l.b16 %v1357
        %v1373 = vunpack.c.l.b16 %v1358
        %v1374 = vunpack.c.l.b16 %v1359
        %v1375 = vpack.c.b16 %v1372, %v1371
        %v1376 = vpack.c.b16 %v1374, %v1373
        %v1380 = vsel %vm801, %v1355, 0
        %1382 = vmatprep.subr.bf16.mxu0 0
        %1383 = vmatpush1.bf16.msra.mxu0 0
        %1384 = vmatprep.subr.bf16.mxu0 0
        %1385 = vmatpush1.bf16.msra.mxu0 0
        %1386 = vmatprep.subr.bf16.mxu0 0
        %1387 = vmatpush1.bf16.msra.mxu0 0
        %1388 = vmatprep.subr.bf16.mxu0 0
        %1389 = vmatpush1.bf16.msra.mxu0 0
        %1390 = vmatprep.subr.bf16.mxu0 0
        %1391 = vmatpush1.bf16.msra.mxu0 0
        %1392 = vmatprep.subr.bf16.mxu0 0
        %1393 = vmatpush1.bf16.msra.mxu0 0
        %1394 = vmatprep.subr.bf16.mxu0 0
        %1395 = vmatpush1.bf16.msra.mxu0 %v1376
        %1396 = vmatprep.subr.bf16.mxu0 0
        %1397 = vmatpush1.bf16.msra.mxu0 %v1375
        %1398 = vmatprep.subr.bf16.mxu0 0
        %1399 = vmatpush2.bf16.msra.mxu0 0
        %1400 = vmatprep.subr.bf16.mxu0 0
        %1401 = vmatpush2.bf16.msra.mxu0 0
        %1402 = vmatprep.subr.bf16.mxu0 0
        %1403 = vmatpush2.bf16.msra.mxu0 0
        %1404 = vmatprep.subr.bf16.mxu0 0
        %1405 = vmatpush2.bf16.msra.mxu0 0
        %1406 = vmatprep.subr.bf16.mxu0 0
        %1407 = vmatpush2.bf16.msra.mxu0 0
        %1408 = vmatprep.subr.bf16.mxu0 0
        %1409 = vmatpush2.bf16.msra.mxu0 0
        %1410 = vmatprep.subr.bf16.mxu0 0
        %1411 = vmatpush2.bf16.msra.mxu0 0
        %1412 = vmatprep.subr.bf16.mxu0 0
        %1413 = vmatpush2.bf16.msra.mxu0 0
        %1414 = vmatprep.mubr.bf16.mxu0 0
        %1415 = vmatmul.mubr.bf16.gmra.mxu0 %v1380
        %v1416 = vpop.f32.mrf.mxu0
        %v1417 = vadd.f32 %v1365, %v1416
        %v1418 = vpop.f32.mrf.mxu0
        %v1419 = vpop.f32.mrf.mxu0
        %v1420 = vpop.f32.mrf.mxu0
        %1421 = vdwg.mxu0
        %1422 = vst.msk [vmem:[%s618] sm:$0xff] %vm801, %v1417
        %s1423 = sand.u32 %s335, 1
        %s1424 = scalar_lea.sflag [#allocation7], %s1423
        %s1425 = sand.u32 %s335, 1
        %s1426 = smul.addr %s1425, 8
        %s1427 = scalar_lea.vmem [#allocation17], %s1426
        %s1428 = sand.u32 %s363, 1
        %s1429 = scalar_lea.sflag [#allocation19], %s1428
        %s1430 = sand.u32 %s363, 1
        %s1431 = smul.addr %s1430, 32
        %s1432 = scalar_lea.vmem [#allocation18], %s1431
        // Predicated region
        $region101: #{tpu_custom_call.1} parent=67 // pred_check
          %p1433 = pneg %p345
        $region102: #{tpu_custom_call.1} parent=67 // pred_check_branch
          %1435 = sbr.rel (%p1433) target = $region104
        $region103: #{tpu_custom_call.1} parent=67 // pred_region
          %s1437 = ssub.s32 128, 128
          %1438 = vsyncadd %s1424, %s1437
          %s1439 = sadd.s32 %s44, %s43
          %s1440 = smul.addr %s1439, 128
          %s1441 = scalar_lea.hbm %s12, %s1440
          %s1443 = sshll.u32 %s1427, 4
          %s1444 = int_to_ptr.vmem [resolvable:$true] %s1443
          %1446 = dma.vmem_to_hbm [thread:$0]  %s1444, 128, %s1441, %s1424
        $region104: #{tpu_custom_call.1} parent=67 // pred_fallthru
          _
        // Predicated region
        $region105: #{tpu_custom_call.1} parent=67 // pred_check
          %p1447 = pneg %p373
        $region106: #{tpu_custom_call.1} parent=67 // pred_check_branch
          %1449 = sbr.rel (%p1447) target = $region108
        $region107: #{tpu_custom_call.1} parent=67 // pred_region
          %s1451 = ssub.s32 512, 512
          %1452 = vsyncadd %s1429, %s1451
          %s1453 = smul.addr %s43, 4
          %s1454 = sadd.s32 %s44, %s1453
          %s1455 = smul.addr %s1454, 128
          %s1456 = scalar_lea.hbm %s13, %s1455
          %s1457 = sshll.u32 %s1432, 4
          %s1458 = int_to_ptr.vmem [resolvable:$true] %s1457
          %1463 = dma.vmem_to_hbm [thread:$0]  %s1458, 512, %s1456, %s1429, 128, 128, 8
        $region108: #{tpu_custom_call.1} parent=67 // pred_fallthru
          _
      $region68: #{tpu_custom_call.1} parent=5 // pred_fallthru
        _
      %p1464 = scmp.le.s32.totalorder 2, %s34
      // Predicated region
      $region109: #{tpu_custom_call.1} parent=5 // pred_check
        %p1465 = pneg %p1464
      $region110: #{tpu_custom_call.1} parent=5 // pred_check_branch
        %1467 = sbr.rel (%p1465) target = $region112
      $region111: #{tpu_custom_call.1} parent=5 // pred_region
        %s1468 = ssub.s32 %s34, 2
        // Predicated region
        $region113: #{tpu_custom_call.1} parent=111 // pred_check
          %p1469 = pneg %p351
        $region114: #{tpu_custom_call.1} parent=111 // pred_check_branch
          %1471 = sbr.rel (%p1469) target = $region116
        $region115: #{tpu_custom_call.1} parent=111 // pred_region
          %s1472 = sand.u32 %s336, 1
          %s1473 = scalar_lea.sflag [#allocation7], %s1472
          %s1474 = sand.u32 %s336, 1
          %s1475 = smul.addr %s1474, 8
          %s1476 = scalar_lea.vmem [#allocation17], %s1475
          %1477 = dma.done %s1473, 128
        $region116: #{tpu_custom_call.1} parent=111 // pred_fallthru
          _
        // Predicated region
        $region117: #{tpu_custom_call.1} parent=111 // pred_check
          %p1478 = pneg %p379
        $region118: #{tpu_custom_call.1} parent=111 // pred_check_branch
          %1480 = sbr.rel (%p1478) target = $region120
        $region119: #{tpu_custom_call.1} parent=111 // pred_region
          %s1481 = sand.u32 %s364, 1
          %s1482 = scalar_lea.sflag [#allocation19], %s1481
          %s1483 = sand.u32 %s364, 1
          %s1484 = smul.addr %s1483, 32
          %s1485 = scalar_lea.vmem [#allocation18], %s1484
          %1486 = dma.done %s1482, 512
        $region120: #{tpu_custom_call.1} parent=111 // pred_fallthru
          _
      $region112: #{tpu_custom_call.1} parent=5 // pred_fallthru
        _
    $region6: #{tpu_custom_call.1} parent=1 // loop_footer
      %s38 = sadd.s32 1, %s34
    $region7: #{tpu_custom_call.1} parent=1 // loop_footer_branch
      %33 = sbr.rel target = $region3
    $region8: #{tpu_custom_call.1} parent=1 // loop_exit
      _
    %1487 = vsyncpa [#allocation6], 1
    %s1488 = scalar_lea.sflag [#allocation6], 1
    %1489 = vsyncpa %s1488, 1
    %1490 = vsyncpa [#allocation9], 1
    %s1491 = scalar_lea.sflag [#allocation9], 1
    %1492 = vsyncpa %s1491, 1
    %1493 = vsyncpa [#allocation12], 1
    %1494 = vsyncpa [#allocation15], 1
    %1495 = vsyncpa [#allocation7], 1
    %s1496 = scalar_lea.sflag [#allocation7], 1
    %1497 = vsyncpa %s1496, 1
    %1498 = vsyncpa [#allocation19], 1
    %s1499 = scalar_lea.sflag [#allocation19], 1
    %1500 = vsyncpa %s1499, 1

// kernel: tpu_custom_call.1
$region0: #{tpu_custom_call.1}
  #allocation0 [shape = 'u32[]', space=smem, size = 0x4, offset = 0x4, fixed_abs, tag = 'smem constant byte address 0x4 - core index']
  #allocation1 [shape = 'u32[144,128]{1,0:T(1,128)}', space=vmem, size = 0x12000, scoped, tag = 'internal scratch']
  #allocation2 [shape = 'bf16[8,32]{1,0:T(8,128)(2,1)}', space=vmem, size = 0x800, scoped, tag = 'scratch operand']
  #allocation3 [shape = 'bf16[8,32]{1,0:T(8,128)(2,1)}', space=vmem, size = 0x800, scoped, tag = 'scratch operand']
  #allocation4 [shape = 'bf16[8,32]{1,0:T(8,128)(2,1)}', space=vmem, size = 0x800, scoped, tag = 'scratch operand']
  %s0 = inlined_call_operand.hbm [shape: f32[2,8,32], index: 0, kind: input, shape index: {}]
  %s1 = inlined_call_operand.hbm [shape: f32[2,8,32], index: 1, kind: input, shape index: {}]
  %s2 = inlined_call_operand.hbm [shape: f32[2,8,32], index: 2, kind: input, shape index: {}]
  %s3 = inlined_call_operand.vmem [shape: s32[2,1,8], index: 3, kind: input, shape index: {}]
  %s4 = inlined_call_operand.hbm [shape: bf16[32,32], index: 4, kind: input, shape index: {}]
  %s5 = inlined_call_operand.hbm [shape: bf16[32,32], index: 5, kind: input, shape index: {}]
  %s6 = inlined_call_operand.hbm [shape: bf16[32,32], index: 6, kind: input, shape index: {}]
  %s7 = inlined_call_operand.hbm [shape: bf16[32,32], index: 7, kind: input, shape index: {}]
  %s8 = inlined_call_operand.vmem [shape: f32[1,32], index: 8, kind: input, shape index: {}]
  %s9 = inlined_call_operand.vmem [shape: f32[1,32], index: 9, kind: input, shape index: {}]
  %s10 = inlined_call_operand.vmem [shape: f32[1,32], index: 10, kind: input, shape index: {}]
  %s11 = inlined_call_operand.vmem [shape: f32[1,32], index: 11, kind: input, shape index: {}]
  %s12 = inlined_call_operand.hbm [shape: f32[2,8,32], index: 12, kind: output, shape index: {0}]
  %s13 = inlined_call_operand.hbm [shape: f32[2,4,8,8], index: 13, kind: output, shape index: {1}]
  %14 = xla_tuple %s12, %s13
  %s15 = sld [smem:[#allocation0]]
  $region121: #{tpu_custom_call.1} parent=0
    _
  %s17 = ssub.s32 1, %s15
  %s18 = scalar_select 0, %s17, %s15
  $region1: #{tpu_custom_call.1} parent=0
    #allocation5 [shape = 'u8[8192]{0}', space=vmem, size = 0x2000, scoped, tag = 'input window, operand 0']
    #allocation6 [shape = 's32[2]{0}', space=sflag, size = 0x8, scoped, tag = 'scoped memory for tpu_custom_call.1']
    #allocation7 [shape = 's32[2]{0}', space=sflag, size = 0x8, scoped, tag = 'scoped memory for tpu_custom_call.1']
    #allocation8 [shape = 'u8[8192]{0}', space=vmem, size = 0x2000, scoped, tag = 'input window, operand 1']
    #allocation9 [shape = 's32[2]{0}', space=sflag, size = 0x8, scoped, tag = 'scoped memory for tpu_custom_call.1']
    #allocation10 [shape = 'u8[8192]{0}', space=vmem, size = 0x2000, scoped, tag = 'input window, operand 2']
    #allocation11 [shape = 'u8[8192]{0}', space=vmem, size = 0x2000, scoped, tag = 'input window, operand 4, single buffered']
    #allocation12 [shape = 's32[1]{0}', space=sflag, size = 0x4, scoped, tag = 'scoped memory for tpu_custom_call.1']
    #allocation13 [shape = 'u8[8192]{0}', space=vmem, size = 0x2000, scoped, tag = 'input window, operand 5, single buffered']
    #allocation14 [shape = 'u8[8192]{0}', space=vmem, size = 0x2000, scoped, tag = 'input window, operand 6, single buffered']
    #allocation15 [shape = 's32[1]{0}', space=sflag, size = 0x4, scoped, tag = 'scoped memory for tpu_custom_call.1']
    #allocation16 [shape = 'u8[8192]{0}', space=vmem, size = 0x2000, scoped, tag = 'input window, operand 7, single buffered']
    #allocation17 [shape = 'u8[8192]{0}', space=vmem, size = 0x2000, scoped, tag = 'output window, operand 0']
    #allocation18 [shape = 'u8[32768]{0}', space=vmem, size = 0x8000, scoped, tag = 'output window, operand 1']
    #allocation19 [shape = 's32[2]{0}', space=sflag, size = 0x8, scoped, tag = 'scoped memory for tpu_custom_call.1']
    %19 = vsyncpa [#allocation6], 0
    %s20 = scalar_lea.sflag [#allocation6], 1
    %21 = vsyncpa %s20, 0
    %22 = vsyncpa [#allocation9], 0
    %s23 = scalar_lea.sflag [#allocation9], 1
    %24 = vsyncpa %s23, 0
    %25 = vsyncpa [#allocation12], 0
    %26 = vsyncpa [#allocation15], 0
    %27 = vsyncpa [#allocation7], 0
    %s28 = scalar_lea.sflag [#allocation7], 1
    %29 = vsyncpa %s28, 0
    %30 = vsyncpa [#allocation19], 0
    %s31 = scalar_lea.sflag [#allocation19], 1
    %32 = vsyncpa %s31, 0
    loop: start=0, step=1, limit=4
    $region2: #{tpu_custom_call.1} parent=1 // loop_pre_header
      _
    $region3: #{tpu_custom_call.1} parent=1 // loop_header
      %s34 = sphi 0, %s38
      %p35 = scmp.ge.s32.totalorder %s34, 4
      %s41 = sphi 0, %s53
      %s42 = sphi 0, %s49
      %s43 = sphi 0, %s41
      %s44 = sphi 0, %s42
      %s45 = sphi 0, %s43
      %s46 = sphi 0, %s44
      %s58 = sphi 0, %s60
      %s61 = sphi 0, %s58
      %s62 = sphi 0, %s61
      %s78 = sphi 0, %s62
      %s84 = sphi 0, %s86
      %s87 = sphi 0, %s84
      %s88 = sphi 0, %s87
      %s104 = sphi 0, %s88
      %s110 = sphi 0, %s112
      %s113 = sphi 0, %s110
      %s114 = sphi 0, %s113
      %s130 = sphi 0, %s114
      %s136 = sphi 0, %s138
      %s139 = sphi 0, %s136
      %s140 = sphi 0, %s139
      %s156 = sphi 0, %s140
      %s160 = sphi 0, %s160
      %s162 = sphi 0, %s160
      %s163 = sphi 0, %s162
      %s177 = sphi 0, %s163
      %s181 = sphi 0, %s181
      %s183 = sphi 0, %s181
      %s184 = sphi 0, %s183
      %s198 = sphi 0, %s184
      %s202 = sphi 0, %s202
      %s204 = sphi 0, %s202
      %s205 = sphi 0, %s204
      %s219 = sphi 0, %s205
      %s223 = sphi 0, %s223
      %s225 = sphi 0, %s223
      %s226 = sphi 0, %s225
      %s240 = sphi 0, %s226
      %s244 = sphi 0, %s244
      %s246 = sphi 0, %s244
      %s247 = sphi 0, %s246
      %s261 = sphi 0, %s247
      %s265 = sphi 0, %s265
      %s267 = sphi 0, %s265
      %s268 = sphi 0, %s267
      %s282 = sphi 0, %s268
      %s286 = sphi 0, %s286
      %s288 = sphi 0, %s286
      %s289 = sphi 0, %s288
      %s303 = sphi 0, %s289
      %s307 = sphi 0, %s307
      %s309 = sphi 0, %s307
      %s310 = sphi 0, %s309
      %s324 = sphi 0, %s310
      %s332 = sphi 0, %s334
      %s335 = sphi 0, %s332
      %s336 = sphi 0, %s335
      %s352 = sphi 0, %s336
      %s360 = sphi 0, %s362
      %s363 = sphi 0, %s360
      %s364 = sphi 0, %s363
      %s380 = sphi 0, %s364
    $region4: #{tpu_custom_call.1} parent=1 // loop_header_branch
      %37 = sbr.rel (%p35) target = $region8
    $region5: #{tpu_custom_call.1} parent=1 // loop_body
      %s39 = ssub.s32 %s34, 1
      %s40 = ssub.s32 %s34, 2
      %s47 = sadd.s32 1, %s42
      %p48 = scmp.ge.s32.totalorder %s47, 1
      %s49 = scalar_select %p48, 0, %s47
      %s50 = sadd.s32 1, %s41
      %s51 = scalar_select %p48, %s50, %s41
      %p52 = scmp.ge.s32.totalorder %s51, 2
      %s53 = scalar_select %p52, 0, %s51
      %s54 = ssub.s32 %s41, %s53
      %s55 = ssub.s32 %s42, %s49
      %s56 = sor.u32 %s54, %s55
      %p57 = scmp.eq.s32.totalorder %s56, 0
      %s59 = sadd.s32 %s58, 1
      %s60 = scalar_select %p57, %s58, %s59
      %p63 = pneg %p57
      %p64 = scmp.eq.s32.totalorder %s34, 1
      %p65 = por %p63, %p64
      %p66 = scmp.ne.s32.totalorder %s58, %s61
      %p67 = scmp.eq.s32.totalorder %s34, 0
      %p68 = por %p66, %p67
      %p69 = scmp.ne.s32.totalorder %s58, %s61
      %p70 = scmp.eq.s32.totalorder %s39, 1
      %p71 = por %p69, %p70
      %p72 = scmp.ne.s32.totalorder %s61, %s62
      %p73 = scmp.eq.s32.totalorder %s39, 0
      %p74 = por %p72, %p73
      %p75 = scmp.ne.s32.totalorder %s61, %s62
      %p76 = scmp.eq.s32.totalorder %s40, 1
      %p77 = por %p75, %p76
      %p79 = scmp.ne.s32.totalorder %s62, %s78
      %p80 = scmp.eq.s32.totalorder %s40, 0
      %p81 = por %p79, %p80
      %s82 = ssub.s32 %s41, %s53
      %p83 = scmp.eq.s32.totalorder %s82, 0
      %s85 = sadd.s32 %s84, 1
      %s86 = scalar_select %p83, %s84, %s85
      %p89 = pneg %p83
      %p90 = scmp.eq.s32.totalorder %s34, 1
      %p91 = por %p89, %p90
      %p92 = scmp.ne.s32.totalorder %s84, %s87
      %p93 = scmp.eq.s32.totalorder %s34, 0
      %p94 = por %p92, %p93
      %p95 = scmp.ne.s32.totalorder %s84, %s87
      %p96 = scmp.eq.s32.totalorder %s39, 1
      %p97 = por %p95, %p96
      %p98 = scmp.ne.s32.totalorder %s87, %s88
      %p99 = scmp.eq.s32.totalorder %s39, 0
      %p100 = por %p98, %p99
      %p101 = scmp.ne.s32.totalorder %s87, %s88
      %p102 = scmp.eq.s32.totalorder %s40, 1
      %p103 = por %p101, %p102
      %p105 = scmp.ne.s32.totalorder %s88, %s104
      %p106 = scmp.eq.s32.totalorder %s40, 0
      %p107 = por %p105, %p106
      %s108 = ssub.s32 %s41, %s53
      %p109 = scmp.eq.s32.totalorder %s108, 0
      %s111 = sadd.s32 %s110, 1
      %s112 = scalar_select %p109, %s110, %s111
      %p115 = pneg %p109
      %p116 = scmp.eq.s32.totalorder %s34, 1
      %p117 = por %p115, %p116
      %p118 = scmp.ne.s32.totalorder %s110, %s113
      %p119 = scmp.eq.s32.totalorder %s34, 0
      %p120 = por %p118, %p119
      %p121 = scmp.ne.s32.totalorder %s110, %s113
      %p122 = scmp.eq.s32.totalorder %s39, 1
      %p123 = por %p121, %p122
      %p124 = scmp.ne.s32.totalorder %s113, %s114
      %p125 = scmp.eq.s32.totalorder %s39, 0
      %p126 = por %p124, %p125
      %p127 = scmp.ne.s32.totalorder %s113, %s114
      %p128 = scmp.eq.s32.totalorder %s40, 1
      %p129 = por %p127, %p128
      %p131 = scmp.ne.s32.totalorder %s114, %s130
      %p132 = scmp.eq.s32.totalorder %s40, 0
      %p133 = por %p131, %p132
      %s134 = ssub.s32 %s41, %s53
      %p135 = scmp.eq.s32.totalorder %s134, 0
      %s137 = sadd.s32 %s136, 1
      %s138 = scalar_select %p135, %s136, %s137
      %p141 = pneg %p135
      %p142 = scmp.eq.s32.totalorder %s34, 1
      %p143 = por %p141, %p142
      %p144 = scmp.ne.s32.totalorder %s136, %s139
      %p145 = scmp.eq.s32.totalorder %s34, 0
      %p146 = por %p144, %p145
      %p147 = scmp.ne.s32.totalorder %s136, %s139
      %p148 = scmp.eq.s32.totalorder %s39, 1
      %p149 = por %p147, %p148
      %p150 = scmp.ne.s32.totalorder %s139, %s140
      %p151 = scmp.eq.s32.totalorder %s39, 0
      %p152 = por %p150, %p151
      %p153 = scmp.ne.s32.totalorder %s139, %s140
      %p154 = scmp.eq.s32.totalorder %s40, 1
      %p155 = por %p153, %p154
      %p157 = scmp.ne.s32.totalorder %s140, %s156
      %p158 = scmp.eq.s32.totalorder %s40, 0
      %p159 = por %p157, %p158
      %s161 = sadd.s32 %s160, 1
      %p164 = scmp.eq.s32.totalorder %s34, 1
      %p165 = scmp.ne.s32.totalorder %s160, %s162
      %p166 = scmp.eq.s32.totalorder %s34, 0
      %p167 = por %p165, %p166
      %p168 = scmp.ne.s32.totalorder %s160, %s162
      %p169 = scmp.eq.s32.totalorder %s39, 1
      %p170 = por %p168, %p169
      %p171 = scmp.ne.s32.totalorder %s162, %s163
      %p172 = scmp.eq.s32.totalorder %s39, 0
      %p173 = por %p171, %p172
      %p174 = scmp.ne.s32.totalorder %s162, %s163
      %p175 = scmp.eq.s32.totalorder %s40, 1
      %p176 = por %p174, %p175
      %p178 = scmp.ne.s32.totalorder %s163, %s177
      %p179 = scmp.eq.s32.totalorder %s40, 0
      %p180 = por %p178, %p179
      %s182 = sadd.s32 %s181, 1
      %p185 = scmp.eq.s32.totalorder %s34, 1
      %p186 = scmp.ne.s32.totalorder %s181, %s183
      %p187 = scmp.eq.s32.totalorder %s34, 0
      %p188 = por %p186, %p187
      %p189 = scmp.ne.s32.totalorder %s181, %s183
      %p190 = scmp.eq.s32.totalorder %s39, 1
      %p191 = por %p189, %p190
      %p192 = scmp.ne.s32.totalorder %s183, %s184
      %p193 = scmp.eq.s32.totalorder %s39, 0
      %p194 = por %p192, %p193
      %p195 = scmp.ne.s32.totalorder %s183, %s184
      %p196 = scmp.eq.s32.totalorder %s40, 1
      %p197 = por %p195, %p196
      %p199 = scmp.ne.s32.totalorder %s184, %s198
      %p200 = scmp.eq.s32.totalorder %s40, 0
      %p201 = por %p199, %p200
      %s203 = sadd.s32 %s202, 1
      %p206 = scmp.eq.s32.totalorder %s34, 1
      %p207 = scmp.ne.s32.totalorder %s202, %s204
      %p208 = scmp.eq.s32.totalorder %s34, 0
      %p209 = por %p207, %p208
      %p210 = scmp.ne.s32.totalorder %s202, %s204
      %p211 = scmp.eq.s32.totalorder %s39, 1
      %p212 = por %p210, %p211
      %p213 = scmp.ne.s32.totalorder %s204, %s205
      %p214 = scmp.eq.s32.totalorder %s39, 0
      %p215 = por %p213, %p214
      %p216 = scmp.ne.s32.totalorder %s204, %s205
      %p217 = scmp.eq.s32.totalorder %s40, 1
      %p218 = por %p216, %p217
      %p220 = scmp.ne.s32.totalorder %s205, %s219
      %p221 = scmp.eq.s32.totalorder %s40, 0
      %p222 = por %p220, %p221
      %s224 = sadd.s32 %s223, 1
      %p227 = scmp.eq.s32.totalorder %s34, 1
      %p228 = scmp.ne.s32.totalorder %s223, %s225
      %p229 = scmp.eq.s32.totalorder %s34, 0
      %p230 = por %p228, %p229
      %p231 = scmp.ne.s32.totalorder %s223, %s225
      %p232 = scmp.eq.s32.totalorder %s39, 1
      %p233 = por %p231, %p232
      %p234 = scmp.ne.s32.totalorder %s225, %s226
      %p235 = scmp.eq.s32.totalorder %s39, 0
      %p236 = por %p234, %p235
      %p237 = scmp.ne.s32.totalorder %s225, %s226
      %p238 = scmp.eq.s32.totalorder %s40, 1
      %p239 = por %p237, %p238
      %p241 = scmp.ne.s32.totalorder %s226, %s240
      %p242 = scmp.eq.s32.totalorder %s40, 0
      %p243 = por %p241, %p242
      %s245 = sadd.s32 %s244, 1
      %p248 = scmp.eq.s32.totalorder %s34, 1
      %p249 = scmp.ne.s32.totalorder %s244, %s246
      %p250 = scmp.eq.s32.totalorder %s34, 0
      %p251 = por %p249, %p250
      %p252 = scmp.ne.s32.totalorder %s244, %s246
      %p253 = scmp.eq.s32.totalorder %s39, 1
      %p254 = por %p252, %p253
      %p255 = scmp.ne.s32.totalorder %s246, %s247
      %p256 = scmp.eq.s32.totalorder %s39, 0
      %p257 = por %p255, %p256
      %p258 = scmp.ne.s32.totalorder %s246, %s247
      %p259 = scmp.eq.s32.totalorder %s40, 1
      %p260 = por %p258, %p259
      %p262 = scmp.ne.s32.totalorder %s247, %s261
      %p263 = scmp.eq.s32.totalorder %s40, 0
      %p264 = por %p262, %p263
      %s266 = sadd.s32 %s265, 1
      %p269 = scmp.eq.s32.totalorder %s34, 1
      %p270 = scmp.ne.s32.totalorder %s265, %s267
      %p271 = scmp.eq.s32.totalorder %s34, 0
      %p272 = por %p270, %p271
      %p273 = scmp.ne.s32.totalorder %s265, %s267
      %p274 = scmp.eq.s32.totalorder %s39, 1
      %p275 = por %p273, %p274
      %p276 = scmp.ne.s32.totalorder %s267, %s268
      %p277 = scmp.eq.s32.totalorder %s39, 0
      %p278 = por %p276, %p277
      %p279 = scmp.ne.s32.totalorder %s267, %s268
      %p280 = scmp.eq.s32.totalorder %s40, 1
      %p281 = por %p279, %p280
      %p283 = scmp.ne.s32.totalorder %s268, %s282
      %p284 = scmp.eq.s32.totalorder %s40, 0
      %p285 = por %p283, %p284
      %s287 = sadd.s32 %s286, 1
      %p290 = scmp.eq.s32.totalorder %s34, 1
      %p291 = scmp.ne.s32.totalorder %s286, %s288
      %p292 = scmp.eq.s32.totalorder %s34, 0
      %p293 = por %p291, %p292
      %p294 = scmp.ne.s32.totalorder %s286, %s288
      %p295 = scmp.eq.s32.totalorder %s39, 1
      %p296 = por %p294, %p295
      %p297 = scmp.ne.s32.totalorder %s288, %s289
      %p298 = scmp.eq.s32.totalorder %s39, 0
      %p299 = por %p297, %p298
      %p300 = scmp.ne.s32.totalorder %s288, %s289
      %p301 = scmp.eq.s32.totalorder %s40, 1
      %p302 = por %p300, %p301
      %p304 = scmp.ne.s32.totalorder %s289, %s303
      %p305 = scmp.eq.s32.totalorder %s40, 0
      %p306 = por %p304, %p305
      %s308 = sadd.s32 %s307, 1
      %p311 = scmp.eq.s32.totalorder %s34, 1
      %p312 = scmp.ne.s32.totalorder %s307, %s309
      %p313 = scmp.eq.s32.totalorder %s34, 0
      %p314 = por %p312, %p313
      %p315 = scmp.ne.s32.totalorder %s307, %s309
      %p316 = scmp.eq.s32.totalorder %s39, 1
      %p317 = por %p315, %p316
      %p318 = scmp.ne.s32.totalorder %s309, %s310
      %p319 = scmp.eq.s32.totalorder %s39, 0
      %p320 = por %p318, %p319
      %p321 = scmp.ne.s32.totalorder %s309, %s310
      %p322 = scmp.eq.s32.totalorder %s40, 1
      %p323 = por %p321, %p322
      %p325 = scmp.ne.s32.totalorder %s310, %s324
      %p326 = scmp.eq.s32.totalorder %s40, 0
      %p327 = por %p325, %p326
      %s328 = ssub.s32 %s41, %s53
      %s329 = ssub.s32 %s42, %s49
      %s330 = sor.u32 %s328, %s329
      %p331 = scmp.eq.s32.totalorder %s330, 0
      %s333 = sadd.s32 %s332, 1
      %s334 = scalar_select %p331, %s332, %s333
      %p337 = pneg %p331
      %p338 = scmp.eq.s32.totalorder %s34, 1
      %p339 = por %p337, %p338
      %p340 = scmp.ne.s32.totalorder %s332, %s335
      %p341 = scmp.eq.s32.totalorder %s34, 0
      %p342 = por %p340, %p341
      %p343 = scmp.ne.s32.totalorder %s332, %s335
      %p344 = scmp.eq.s32.totalorder %s39, 1
      %p345 = por %p343, %p344
      %p346 = scmp.ne.s32.totalorder %s335, %s336
      %p347 = scmp.eq.s32.totalorder %s39, 0
      %p348 = por %p346, %p347
      %p349 = scmp.ne.s32.totalorder %s335, %s336
      %p350 = scmp.eq.s32.totalorder %s40, 1
      %p351 = por %p349, %p350
      %p353 = scmp.ne.s32.totalorder %s336, %s352
      %p354 = scmp.eq.s32.totalorder %s40, 0
      %p355 = por %p353, %p354
      %s356 = ssub.s32 %s41, %s53
      %s357 = ssub.s32 %s42, %s49
      %s358 = sor.u32 %s356, %s357
      %p359 = scmp.eq.s32.totalorder %s358, 0
      %s361 = sadd.s32 %s360, 1
      %s362 = scalar_select %p359, %s360, %s361
      %p365 = pneg %p359
      %p366 = scmp.eq.s32.totalorder %s34, 1
      %p367 = por %p365, %p366
      %p368 = scmp.ne.s32.totalorder %s360, %s363
      %p369 = scmp.eq.s32.totalorder %s34, 0
      %p370 = por %p368, %p369
      %p371 = scmp.ne.s32.totalorder %s360, %s363
      %p372 = scmp.eq.s32.totalorder %s39, 1
      %p373 = por %p371, %p372
      %p374 = scmp.ne.s32.totalorder %s363, %s364
      %p375 = scmp.eq.s32.totalorder %s39, 0
      %p376 = por %p374, %p375
      %p377 = scmp.ne.s32.totalorder %s363, %s364
      %p378 = scmp.eq.s32.totalorder %s40, 1
      %p379 = por %p377, %p378
      %p381 = scmp.ne.s32.totalorder %s364, %s380
      %p382 = scmp.eq.s32.totalorder %s40, 0
      %p383 = por %p381, %p382
      %p384 = scmp.le.s32.totalorder 1, %s34
      %p385 = scmp.lt.s32.totalorder %s34, 3
      %p386 = pnand %p384, %p385
      %p387 = pneg %p386
      // Predicated region
      $region9: #{tpu_custom_call.1} parent=5 // pred_check
        _
      $region10: #{tpu_custom_call.1} parent=5 // pred_check_branch
        %389 = sbr.rel (%p386) target = $region12
      $region11: #{tpu_custom_call.1} parent=5 // pred_region
        %s390 = ssub.s32 %s34, 1
        // Predicated region
        $region13: #{tpu_custom_call.1} parent=11 // pred_check
          %p391 = pneg %p173
        $region14: #{tpu_custom_call.1} parent=11 // pred_check_branch
          %393 = sbr.rel (%p391) target = $region16
        $region15: #{tpu_custom_call.1} parent=11 // pred_region
          %s395 = ssub.s32 256, 256
          %396 = vsyncadd [#allocation12], %s395
          %s397 = sshll.u32 [#allocation11], 4
          %s398 = int_to_ptr.vmem [resolvable:$true] %s397
          %403 = dma.hbm_to_vmem [thread:$0]  %s4, 256, %s398, [#allocation12], 64, 64, 4
        $region16: #{tpu_custom_call.1} parent=11 // pred_fallthru
          _
        // Predicated region
        $region17: #{tpu_custom_call.1} parent=11 // pred_check
          %p404 = pneg %p194
        $region18: #{tpu_custom_call.1} parent=11 // pred_check_branch
          %406 = sbr.rel (%p404) target = $region20
        $region19: #{tpu_custom_call.1} parent=11 // pred_region
          %s408 = ssub.s32 256, 256
          %409 = vsyncadd [#allocation12], %s408
          %s410 = sshll.u32 [#allocation13], 4
          %s411 = int_to_ptr.vmem [resolvable:$true] %s410
          %416 = dma.hbm_to_vmem [thread:$0]  %s5, 256, %s411, [#allocation12], 64, 64, 4
        $region20: #{tpu_custom_call.1} parent=11 // pred_fallthru
          _
        // Predicated region
        $region21: #{tpu_custom_call.1} parent=11 // pred_check
          %p417 = pneg %p215
        $region22: #{tpu_custom_call.1} parent=11 // pred_check_branch
          %419 = sbr.rel (%p417) target = $region24
        $region23: #{tpu_custom_call.1} parent=11 // pred_region
          %s421 = ssub.s32 256, 256
          %422 = vsyncadd [#allocation15], %s421
          %s423 = sshll.u32 [#allocation14], 4
          %s424 = int_to_ptr.vmem [resolvable:$true] %s423
          %429 = dma.hbm_to_vmem [thread:$0]  %s6, 256, %s424, [#allocation15], 64, 64, 4
        $region24: #{tpu_custom_call.1} parent=11 // pred_fallthru
          _
        // Predicated region
        $region25: #{tpu_custom_call.1} parent=11 // pred_check
          %p430 = pneg %p236
        $region26: #{tpu_custom_call.1} parent=11 // pred_check_branch
          %432 = sbr.rel (%p430) target = $region28
        $region27: #{tpu_custom_call.1} parent=11 // pred_region
          %s434 = ssub.s32 256, 256
          %435 = vsyncadd [#allocation15], %s434
          %s436 = sshll.u32 [#allocation16], 4
          %s437 = int_to_ptr.vmem [resolvable:$true] %s436
          %442 = dma.hbm_to_vmem [thread:$0]  %s7, 256, %s437, [#allocation15], 64, 64, 4
        $region28: #{tpu_custom_call.1} parent=11 // pred_fallthru
          _
        // Predicated region
        $region29: #{tpu_custom_call.1} parent=11 // pred_check
          %p443 = pneg %p257
        $region30: #{tpu_custom_call.1} parent=11 // pred_check_branch
          %445 = sbr.rel (%p443) target = $region32
        $region31: #{tpu_custom_call.1} parent=11 // pred_region
          _
        $region32: #{tpu_custom_call.1} parent=11 // pred_fallthru
          _
        // Predicated region
        $region33: #{tpu_custom_call.1} parent=11 // pred_check
          %p446 = pneg %p278
        $region34: #{tpu_custom_call.1} parent=11 // pred_check_branch
          %448 = sbr.rel (%p446) target = $region36
        $region35: #{tpu_custom_call.1} parent=11 // pred_region
          _
        $region36: #{tpu_custom_call.1} parent=11 // pred_fallthru
          _
        // Predicated region
        $region37: #{tpu_custom_call.1} parent=11 // pred_check
          %p449 = pneg %p299
        $region38: #{tpu_custom_call.1} parent=11 // pred_check_branch
          %451 = sbr.rel (%p449) target = $region40
        $region39: #{tpu_custom_call.1} parent=11 // pred_region
          _
        $region40: #{tpu_custom_call.1} parent=11 // pred_fallthru
          _
        // Predicated region
        $region41: #{tpu_custom_call.1} parent=11 // pred_check
          %p452 = pneg %p320
        $region42: #{tpu_custom_call.1} parent=11 // pred_check_branch
          %454 = sbr.rel (%p452) target = $region44
        $region43: #{tpu_custom_call.1} parent=11 // pred_region
          _
        $region44: #{tpu_custom_call.1} parent=11 // pred_fallthru
          _
      $region12: #{tpu_custom_call.1} parent=5 // pred_fallthru
        _
      %p455 = scmp.lt.s32.totalorder %s34, 2
      // Predicated region
      $region45: #{tpu_custom_call.1} parent=5 // pred_check
        %p456 = pneg %p455
      $region46: #{tpu_custom_call.1} parent=5 // pred_check_branch
        %458 = sbr.rel (%p456) target = $region48
      $region47: #{tpu_custom_call.1} parent=5 // pred_region
        // Predicated region
        $region49: #{tpu_custom_call.1} parent=47 // pred_check
          %p459 = pneg %p68
        $region50: #{tpu_custom_call.1} parent=47 // pred_check_branch
          %461 = sbr.rel (%p459) target = $region52
        $region51: #{tpu_custom_call.1} parent=47 // pred_region
          %s462 = sand.u32 %s58, 1
          %s463 = scalar_lea.sflag [#allocation6], %s462
          %s464 = sand.u32 %s58, 1
          %s465 = smul.addr %s464, 8
          %s466 = scalar_lea.vmem [#allocation5], %s465
          %s468 = ssub.s32 128, 128
          %469 = vsyncadd %s463, %s468
          %s470 = sadd.s32 %s42, %s41
          %s471 = smul.addr %s470, 128
          %s472 = scalar_lea.hbm %s0, %s471
          %s474 = sshll.u32 %s466, 4
          %s475 = int_to_ptr.vmem [resolvable:$true] %s474
          %477 = dma.hbm_to_vmem [thread:$0]  %s472, 128, %s475, %s463
        $region52: #{tpu_custom_call.1} parent=47 // pred_fallthru
          _
        // Predicated region
        $region53: #{tpu_custom_call.1} parent=47 // pred_check
          %p478 = pneg %p94
        $region54: #{tpu_custom_call.1} parent=47 // pred_check_branch
          %480 = sbr.rel (%p478) target = $region56
        $region55: #{tpu_custom_call.1} parent=47 // pred_region
          %s481 = sand.u32 %s34, 1
          %s482 = scalar_lea.sflag [#allocation9], %s481
          %s483 = sand.u32 %s84, 1
          %s484 = smul.addr %s483, 8
          %s485 = scalar_lea.vmem [#allocation8], %s484
          %s487 = ssub.s32 128, 128
          %488 = vsyncadd %s482, %s487
          %s489 = smul.addr %s41, 128
          %s490 = scalar_lea.hbm %s1, %s489
          %s492 = sshll.u32 %s485, 4
          %s493 = int_to_ptr.vmem [resolvable:$true] %s492
          %495 = dma.hbm_to_vmem [thread:$0]  %s490, 128, %s493, %s482
        $region56: #{tpu_custom_call.1} parent=47 // pred_fallthru
          _
        // Predicated region
        $region57: #{tpu_custom_call.1} parent=47 // pred_check
          %p496 = pneg %p120
        $region58: #{tpu_custom_call.1} parent=47 // pred_check_branch
          %498 = sbr.rel (%p496) target = $region60
        $region59: #{tpu_custom_call.1} parent=47 // pred_region
          %s499 = sand.u32 %s34, 1
          %s500 = scalar_lea.sflag [#allocation9], %s499
          %s501 = sand.u32 %s110, 1
          %s502 = smul.addr %s501, 8
          %s503 = scalar_lea.vmem [#allocation10], %s502
          %s505 = ssub.s32 128, 128
          %506 = vsyncadd %s500, %s505
          %s507 = smul.addr %s41, 128
          %s508 = scalar_lea.hbm %s2, %s507
          %s510 = sshll.u32 %s503, 4
          %s511 = int_to_ptr.vmem [resolvable:$true] %s510
          %513 = dma.hbm_to_vmem [thread:$0]  %s508, 128, %s511, %s500
        $region60: #{tpu_custom_call.1} parent=47 // pred_fallthru
          _
        // Predicated region
        $region61: #{tpu_custom_call.1} parent=47 // pred_check
          %p514 = pneg %p146
        $region62: #{tpu_custom_call.1} parent=47 // pred_check_branch
          %516 = sbr.rel (%p514) target = $region64
        $region63: #{tpu_custom_call.1} parent=47 // pred_region
          %p517 = scmp.lt.s32.totalorder %s41, 1
          %s518 = scalar_select %p517, %s41, 1
          %s519 = scalar_lea.vmem %s3, %s518
        $region64: #{tpu_custom_call.1} parent=47 // pred_fallthru
          _
      $region48: #{tpu_custom_call.1} parent=5 // pred_fallthru
        _
      %p520 = scmp.le.s32.totalorder 1, %s34
      %p521 = scmp.lt.s32.totalorder %s34, 3
      %p522 = pnand %p520, %p521
      %p523 = pneg %p522
      // Predicated region
      $region65: #{tpu_custom_call.1} parent=5 // pred_check
        _
      $region66: #{tpu_custom_call.1} parent=5 // pred_check_branch
        %525 = sbr.rel (%p522) target = $region68
      $region67: #{tpu_custom_call.1} parent=5 // pred_region
        %s526 = ssub.s32 %s34, 1
        %s527 = sand.u32 %s61, 1
        %s528 = scalar_lea.sflag [#allocation6], %s527
        %s529 = sand.u32 %s61, 1
        %s530 = smul.addr %s529, 8
        %s531 = scalar_lea.vmem [#allocation5], %s530
        // Predicated region
        $region69: #{tpu_custom_call.1} parent=67 // pred_check
          %p532 = pneg %p74
        $region70: #{tpu_custom_call.1} parent=67 // pred_check_branch
          %534 = sbr.rel (%p532) target = $region72
        $region71: #{tpu_custom_call.1} parent=67 // pred_region
          %535 = dma.done %s528, 128
        $region72: #{tpu_custom_call.1} parent=67 // pred_fallthru
          _
        %s536 = sand.u32 %s39, 1
        %s537 = scalar_lea.sflag [#allocation9], %s536
        %s538 = sand.u32 %s87, 1
        %s539 = smul.addr %s538, 8
        %s540 = scalar_lea.vmem [#allocation8], %s539
        // Predicated region
        $region73: #{tpu_custom_call.1} parent=67 // pred_check
          %p541 = pneg %p100
        $region74: #{tpu_custom_call.1} parent=67 // pred_check_branch
          %543 = sbr.rel (%p541) target = $region76
        $region75: #{tpu_custom_call.1} parent=67 // pred_region
          %544 = dma.done %s537, 128
        $region76: #{tpu_custom_call.1} parent=67 // pred_fallthru
          _
        %s545 = sand.u32 %s39, 1
        %s546 = scalar_lea.sflag [#allocation9], %s545
        %s547 = sand.u32 %s113, 1
        %s548 = smul.addr %s547, 8
        %s549 = scalar_lea.vmem [#allocation10], %s548
        // Predicated region
        $region77: #{tpu_custom_call.1} parent=67 // pred_check
          %p550 = pneg %p126
        $region78: #{tpu_custom_call.1} parent=67 // pred_check_branch
          %552 = sbr.rel (%p550) target = $region80
        $region79: #{tpu_custom_call.1} parent=67 // pred_region
          %553 = dma.done %s546, 128
        $region80: #{tpu_custom_call.1} parent=67 // pred_fallthru
          _
        // Predicated region
        $region81: #{tpu_custom_call.1} parent=67 // pred_check
          %p554 = pneg %p173
        $region82: #{tpu_custom_call.1} parent=67 // pred_check_branch
          %556 = sbr.rel (%p554) target = $region84
        $region83: #{tpu_custom_call.1} parent=67 // pred_region
          %557 = dma.done [#allocation12], 256
        $region84: #{tpu_custom_call.1} parent=67 // pred_fallthru
          _
        // Predicated region
        $region85: #{tpu_custom_call.1} parent=67 // pred_check
          %p558 = pneg %p194
        $region86: #{tpu_custom_call.1} parent=67 // pred_check_branch
          %560 = sbr.rel (%p558) target = $region88
        $region87: #{tpu_custom_call.1} parent=67 // pred_region
          %561 = dma.done [#allocation12], 256
        $region88: #{tpu_custom_call.1} parent=67 // pred_fallthru
          _
        // Predicated region
        $region89: #{tpu_custom_call.1} parent=67 // pred_check
          %p562 = pneg %p215
        $region90: #{tpu_custom_call.1} parent=67 // pred_check_branch
          %564 = sbr.rel (%p562) target = $region92
        $region91: #{tpu_custom_call.1} parent=67 // pred_region
          %565 = dma.done [#allocation15], 256
        $region92: #{tpu_custom_call.1} parent=67 // pred_fallthru
          _
        // Predicated region
        $region93: #{tpu_custom_call.1} parent=67 // pred_check
          %p566 = pneg %p236
        $region94: #{tpu_custom_call.1} parent=67 // pred_check_branch
          %568 = sbr.rel (%p566) target = $region96
        $region95: #{tpu_custom_call.1} parent=67 // pred_region
          %569 = dma.done [#allocation15], 256
        $region96: #{tpu_custom_call.1} parent=67 // pred_fallthru
          _
        %s570 = sand.u32 %s61, 1
        %s571 = scalar_lea.sflag [#allocation6], %s570
        %s572 = sand.u32 %s61, 1
        %s573 = smul.addr %s572, 8
        %s574 = scalar_lea.vmem [#allocation5], %s573
        %p575 = pneg %p74
        %p576 = pneg %p71
        %s577 = sand.u32 %s39, 1
        %s578 = scalar_lea.sflag [#allocation9], %s577
        %s579 = sand.u32 %s87, 1
        %s580 = smul.addr %s579, 8
        %s581 = scalar_lea.vmem [#allocation8], %s580
        %p582 = pneg %p100
        %p583 = pneg %p97
        %s584 = sand.u32 %s39, 1
        %s585 = scalar_lea.sflag [#allocation9], %s584
        %s586 = sand.u32 %s113, 1
        %s587 = smul.addr %s586, 8
        %s588 = scalar_lea.vmem [#allocation10], %s587
        %p589 = pneg %p126
        %p590 = pneg %p123
        %p591 = scmp.lt.s32.totalorder %s43, 1
        %s592 = scalar_select %p591, %s43, 1
        %s593 = scalar_lea.vmem %s3, %s592
        %p594 = pneg %p152
        %p595 = pneg %p149
        %p596 = pneg %p173
        %p597 = pneg %p170
        %p598 = pneg %p194
        %p599 = pneg %p191
        %p600 = pneg %p215
        %p601 = pneg %p212
        %p602 = pneg %p236
        %p603 = pneg %p233
        %p604 = pneg %p257
        %p605 = pneg %p254
        %p606 = pneg %p278
        %p607 = pneg %p275
        %p608 = pneg %p299
        %p609 = pneg %p296
        %p610 = pneg %p320
        %p611 = pneg %p317
        %p612 = pneg %p348
        %p613 = pneg %p345
        %s614 = sand.u32 %s335, 1
        %s615 = scalar_lea.sflag [#allocation7], %s614
        %s616 = sand.u32 %s335, 1
        %s617 = smul.addr %s616, 8
        %s618 = scalar_lea.vmem [#allocation17], %s617
        %p619 = pneg %p376
        %p620 = pneg %p373
        %s621 = sand.u32 %s363, 1
        %s622 = scalar_lea.sflag [#allocation19], %s621
        %s623 = sand.u32 %s363, 1
        %s624 = smul.addr %s623, 32
        %s625 = scalar_lea.vmem [#allocation18], %s624
        %p626 = scmp.lt.s32.totalorder %s43, 1
        %s627 = scalar_select %p626, %s43, 1
        %s628 = scalar_lea.vmem %s3, %s627
        %p630 = scmp.eq.s32.totalorder %s44, 0
        // Predicated region
        $region97: #{tpu_custom_call.1} parent=67 // pred_check
          %p631 = pneg %p630
        $region98: #{tpu_custom_call.1} parent=67 // pred_check_branch
          %633 = sbr.rel (%p631) target = $region100
        $region99: #{tpu_custom_call.1} parent=67 // pred_region
          %v634 = vld [vmem:[%s540] sm:$0xff]
          %v635 = vpack.c.bf16 %v634, %v634
          %v636 = vld [vmem:[%s549] sm:$0xff]
          %v637 = vpack.c.bf16 %v636, %v636
          %v638 = vld [vmem:[#allocation13] sm:$0xf]
          %v639 = vld [vmem:[#allocation13 + $0x4] sm:$0xf]
          %v640 = vld [vmem:[#allocation13 + $0x8] sm:$0xf]
          %v641 = vld [vmem:[#allocation13 + $0xc] sm:$0xf]
          %v642 = vld [vmem:[%s9] sm:$0x1]
          %v644 = vlaneseq
          %v645 = vshrl.u32 %v644, 7
          %v646 = vsub.s32 0, %v645
          %v647 = vrot.slane %v642, %v646
          %v653 = vunpack.c.l.b16 %v638
          %v654 = vunpack.c.l.b16 %v639
          %v655 = vunpack.c.l.b16 %v640
          %v656 = vunpack.c.l.b16 %v641
          %v657 = vpack.c.b16 %v654, %v653
          %v658 = vpack.c.b16 %v656, %v655
          %vm661 = vcmask 261120
          %v663 = vsel %vm661, %v635, 0
          %665 = vmatprep.subr.bf16.mxu0 0
          %666 = vmatpush1.bf16.msra.mxu0 0
          %667 = vmatprep.subr.bf16.mxu0 0
          %668 = vmatpush1.bf16.msra.mxu0 0
          %669 = vmatprep.subr.bf16.mxu0 0
          %670 = vmatpush1.bf16.msra.mxu0 0
          %671 = vmatprep.subr.bf16.mxu0 0
          %672 = vmatpush1.bf16.msra.mxu0 0
          %673 = vmatprep.subr.bf16.mxu0 0
          %674 = vmatpush1.bf16.msra.mxu0 0
          %675 = vmatprep.subr.bf16.mxu0 0
          %676 = vmatpush1.bf16.msra.mxu0 0
          %677 = vmatprep.subr.bf16.mxu0 0
          %678 = vmatpush1.bf16.msra.mxu0 %v658
          %679 = vmatprep.subr.bf16.mxu0 0
          %680 = vmatpush1.bf16.msra.mxu0 %v657
          %681 = vmatprep.subr.bf16.mxu0 0
          %682 = vmatpush2.bf16.msra.mxu0 0
          %683 = vmatprep.subr.bf16.mxu0 0
          %684 = vmatpush2.bf16.msra.mxu0 0
          %685 = vmatprep.subr.bf16.mxu0 0
          %686 = vmatpush2.bf16.msra.mxu0 0
          %687 = vmatprep.subr.bf16.mxu0 0
          %688 = vmatpush2.bf16.msra.mxu0 0
          %689 = vmatprep.subr.bf16.mxu0 0
          %690 = vmatpush2.bf16.msra.mxu0 0
          %691 = vmatprep.subr.bf16.mxu0 0
          %692 = vmatpush2.bf16.msra.mxu0 0
          %693 = vmatprep.subr.bf16.mxu0 0
          %694 = vmatpush2.bf16.msra.mxu0 0
          %695 = vmatprep.subr.bf16.mxu0 0
          %696 = vmatpush2.bf16.msra.mxu0 0
          %697 = vmatprep.mubr.bf16.mxu0 0
          %698 = vmatmul.mubr.bf16.gmra.mxu0 %v663
          %v699 = vpop.f32.mrf.mxu0
          %v700 = vadd.f32 %v647, %v699
          %v701 = vpop.f32.mrf.mxu0
          %v702 = vpop.f32.mrf.mxu0
          %v703 = vpop.f32.mrf.mxu0
          %704 = vdwg.mxu0
          %v705 = vpack.c.bf16 %v700, %v700
          %vm706 = vcmask 257024
          %707 = vst.msk [vmem:[#allocation2] sm:$0xf] %vm706, %v705
          %v708 = vld [vmem:[#allocation14] sm:$0xf]
          %v709 = vld [vmem:[#allocation14 + $0x4] sm:$0xf]
          %v710 = vld [vmem:[#allocation14 + $0x8] sm:$0xf]
          %v711 = vld [vmem:[#allocation14 + $0xc] sm:$0xf]
          %v712 = vld [vmem:[%s10] sm:$0x1]
          %v714 = vlaneseq
          %v715 = vshrl.u32 %v714, 7
          %v716 = vsub.s32 0, %v715
          %v717 = vrot.slane %v712, %v716
          %v723 = vunpack.c.l.b16 %v708
          %v724 = vunpack.c.l.b16 %v709
          %v725 = vunpack.c.l.b16 %v710
          %v726 = vunpack.c.l.b16 %v711
          %v727 = vpack.c.b16 %v724, %v723
          %v728 = vpack.c.b16 %v726, %v725
          %v732 = vsel %vm661, %v637, 0
          %734 = vmatprep.subr.bf16.mxu0 0
          %735 = vmatpush1.bf16.msra.mxu0 0
          %736 = vmatprep.subr.bf16.mxu0 0
          %737 = vmatpush1.bf16.msra.mxu0 0
          %738 = vmatprep.subr.bf16.mxu0 0
          %739 = vmatpush1.bf16.msra.mxu0 0
          %740 = vmatprep.subr.bf16.mxu0 0
          %741 = vmatpush1.bf16.msra.mxu0 0
          %742 = vmatprep.subr.bf16.mxu0 0
          %743 = vmatpush1.bf16.msra.mxu0 0
          %744 = vmatprep.subr.bf16.mxu0 0
          %745 = vmatpush1.bf16.msra.mxu0 0
          %746 = vmatprep.subr.bf16.mxu0 0
          %747 = vmatpush1.bf16.msra.mxu0 %v728
          %748 = vmatprep.subr.bf16.mxu0 0
          %749 = vmatpush1.bf16.msra.mxu0 %v727
          %750 = vmatprep.subr.bf16.mxu0 0
          %751 = vmatpush2.bf16.msra.mxu0 0
          %752 = vmatprep.subr.bf16.mxu0 0
          %753 = vmatpush2.bf16.msra.mxu0 0
          %754 = vmatprep.subr.bf16.mxu0 0
          %755 = vmatpush2.bf16.msra.mxu0 0
          %756 = vmatprep.subr.bf16.mxu0 0
          %757 = vmatpush2.bf16.msra.mxu0 0
          %758 = vmatprep.subr.bf16.mxu0 0
          %759 = vmatpush2.bf16.msra.mxu0 0
          %760 = vmatprep.subr.bf16.mxu0 0
          %761 = vmatpush2.bf16.msra.mxu0 0
          %762 = vmatprep.subr.bf16.mxu0 0
          %763 = vmatpush2.bf16.msra.mxu0 0
          %764 = vmatprep.subr.bf16.mxu0 0
          %765 = vmatpush2.bf16.msra.mxu0 0
          %766 = vmatprep.mubr.bf16.mxu0 0
          %767 = vmatmul.mubr.bf16.gmra.mxu0 %v732
          %v768 = vpop.f32.mrf.mxu0
          %v769 = vadd.f32 %v717, %v768
          %v770 = vpop.f32.mrf.mxu0
          %v771 = vpop.f32.mrf.mxu0
          %v772 = vpop.f32.mrf.mxu0
          %773 = vdwg.mxu0
          %v774 = vpack.c.bf16 %v769, %v769
          %775 = vst.msk [vmem:[#allocation3] sm:$0xf] %vm706, %v774
        $region100: #{tpu_custom_call.1} parent=67 // pred_fallthru
          _
        %v776 = vld [vmem:[%s531] sm:$0xff]
        %v777 = vpack.c.bf16 %v776, %v776
        %v778 = vld [vmem:[#allocation11] sm:$0xf]
        %v779 = vld [vmem:[#allocation11 + $0x4] sm:$0xf]
        %v780 = vld [vmem:[#allocation11 + $0x8] sm:$0xf]
        %v781 = vld [vmem:[#allocation11 + $0xc] sm:$0xf]
        %v782 = vld [vmem:[%s8] sm:$0x1]
        %v784 = vlaneseq
        %v785 = vshrl.u32 %v784, 7
        %v786 = vsub.s32 0, %v785
        %v787 = vrot.slane %v782, %v786
        %v793 = vunpack.c.l.b16 %v778
        %v794 = vunpack.c.l.b16 %v779
        %v795 = vunpack.c.l.b16 %v780
        %v796 = vunpack.c.l.b16 %v781
        %v797 = vpack.c.b16 %v794, %v793
        %v798 = vpack.c.b16 %v796, %v795
        %vm801 = vcmask 261120
        %v803 = vsel %vm801, %v777, 0
        %805 = vmatprep.subr.bf16.mxu0 0
        %806 = vmatpush1.bf16.msra.mxu0 0
        %807 = vmatprep.subr.bf16.mxu0 0
        %808 = vmatpush1.bf16.msra.mxu0 0
        %809 = vmatprep.subr.bf16.mxu0 0
        %810 = vmatpush1.bf16.msra.mxu0 0
        %811 = vmatprep.subr.bf16.mxu0 0
        %812 = vmatpush1.bf16.msra.mxu0 0
        %813 = vmatprep.subr.bf16.mxu0 0
        %814 = vmatpush1.bf16.msra.mxu0 0
        %815 = vmatprep.subr.bf16.mxu0 0
        %816 = vmatpush1.bf16.msra.mxu0 0
        %817 = vmatprep.subr.bf16.mxu0 0
        %818 = vmatpush1.bf16.msra.mxu0 %v798
        %819 = vmatprep.subr.bf16.mxu0 0
        %820 = vmatpush1.bf16.msra.mxu0 %v797
        %821 = vmatprep.subr.bf16.mxu0 0
        %822 = vmatpush2.bf16.msra.mxu0 0
        %823 = vmatprep.subr.bf16.mxu0 0
        %824 = vmatpush2.bf16.msra.mxu0 0
        %825 = vmatprep.subr.bf16.mxu0 0
        %826 = vmatpush2.bf16.msra.mxu0 0
        %827 = vmatprep.subr.bf16.mxu0 0
        %828 = vmatpush2.bf16.msra.mxu0 0
        %829 = vmatprep.subr.bf16.mxu0 0
        %830 = vmatpush2.bf16.msra.mxu0 0
        %831 = vmatprep.subr.bf16.mxu0 0
        %832 = vmatpush2.bf16.msra.mxu0 0
        %833 = vmatprep.subr.bf16.mxu0 0
        %834 = vmatpush2.bf16.msra.mxu0 0
        %835 = vmatprep.subr.bf16.mxu0 0
        %836 = vmatpush2.bf16.msra.mxu0 0
        %837 = vmatprep.mubr.bf16.mxu0 0
        %838 = vmatmul.mubr.bf16.gmra.mxu0 %v803
        %v839 = vpop.f32.mrf.mxu0
        %v840 = vadd.f32 %v787, %v839
        %v841 = vpop.f32.mrf.mxu0
        %v842 = vpop.f32.mrf.mxu0
        %v843 = vpop.f32.mrf.mxu0
        %844 = vdwg.mxu0
        %v845 = vpack.c.bf16 %v840, %v840
        %v846 = vld [vmem:[%s628] sm:$0x1]
        %vm847 = vcmp.eq.s32.totalorder %v846, 0
        %v848 = vsel %vm847, -1e+10, 0.0
        %v849 = vld [vmem:[#allocation2] sm:$0xf]
        %v850 = vld [vmem:[#allocation3] sm:$0xf]
        %v852 = vlaneseq
        %v853 = vshrl.u32 %v852, 7
        %v854 = vsub.s32 0, %v853
        %v855 = vrot.slane %v848, %v854
        %vm857 = vcmask 64512
        %v859 = vsel %vm857, %v845, 0
        %v862 = vsel %vm857, %v849, 0
        %864 = vmatprep.subr.bf16.mxu0 0
        %865 = vmatpush1.bf16.xpose.msra.mxu0 0
        %866 = vmatprep.subr.bf16.mxu0 0
        %867 = vmatpush1.bf16.xpose.msra.mxu0 0
        %868 = vmatprep.subr.bf16.mxu0 0
        %869 = vmatpush1.bf16.xpose.msra.mxu0 0
        %870 = vmatprep.subr.bf16.mxu0 0
        %871 = vmatpush1.bf16.xpose.msra.mxu0 0
        %872 = vmatprep.subr.bf16.mxu0 0
        %873 = vmatpush1.bf16.xpose.msra.mxu0 0
        %874 = vmatprep.subr.bf16.mxu0 0
        %875 = vmatpush1.bf16.xpose.msra.mxu0 0
        %876 = vmatprep.subr.bf16.mxu0 0
        %877 = vmatpush1.bf16.xpose.msra.mxu0 0
        %878 = vmatprep.subr.bf16.mxu0 0
        %879 = vmatpush1.bf16.xpose.msra.mxu0 %v862
        %880 = vmatprep.subr.bf16.mxu0 0
        %881 = vmatpush2.bf16.xpose.msra.mxu0 0
        %882 = vmatprep.subr.bf16.mxu0 0
        %883 = vmatpush2.bf16.xpose.msra.mxu0 0
        %884 = vmatprep.subr.bf16.mxu0 0
        %885 = vmatpush2.bf16.xpose.msra.mxu0 0
        %886 = vmatprep.subr.bf16.mxu0 0
        %887 = vmatpush2.bf16.xpose.msra.mxu0 0
        %888 = vmatprep.subr.bf16.mxu0 0
        %889 = vmatpush2.bf16.xpose.msra.mxu0 0
        %890 = vmatprep.subr.bf16.mxu0 0
        %891 = vmatpush2.bf16.xpose.msra.mxu0 0
        %892 = vmatprep.subr.bf16.mxu0 0
        %893 = vmatpush2.bf16.xpose.msra.mxu0 0
        %894 = vmatprep.subr.bf16.mxu0 0
        %895 = vmatpush2.bf16.xpose.msra.mxu0 0
        %896 = vmatprep.mubr.bf16.mxu0 0
        %897 = vmatmul.mubr.bf16.gmra.mxu0 %v859
        %v898 = vpop.f32.mrf.mxu0
        %v899 = vadd.f32 %v855, %v898
        %v900 = vpop.f32.mrf.mxu0
        %v901 = vpop.f32.mrf.mxu0
        %v902 = vpop.f32.mrf.mxu0
        %903 = vdwg.mxu0
        %v904 = vsel %vm857, %v899, -inf
        %905 = vmax.xlane.f32.xlu0 %v904
        %v906 = vpop.xlane.xlu0 %905
        %v907 = vsub.f32 %v899, %v906
        %v908 = vmul.f32 %v907, 1.442695
        %v909 = vpow.pop %v908
        %v910 = vsel %vm857, %v909, 0.0
        %911 = vadd.xlane.f32.xlu0 %v910
        %v912 = vpop.xlane.xlu0 %911
        %v913 = vrcp.pop %v912
        %v914 = vmul.f32 %v909, %v913
        %915 = vst.msk [vmem:[%s625] sm:$0xff] %vm857, %v914
        %v916 = vpack.c.bf16 %v914, %v914
        %v918 = vsel %vm857, %v916, 0
        %vm920 = vcmask 1043456
        %v922 = vsel %vm920, %v850, 0
        %924 = vmatprep.subr.bf16.mxu0 0
        %925 = vmatpush1.bf16.msra.mxu0 0
        %926 = vmatprep.subr.bf16.mxu0 0
        %927 = vmatpush1.bf16.msra.mxu0 0
        %928 = vmatprep.subr.bf16.mxu0 0
        %929 = vmatpush1.bf16.msra.mxu0 0
        %930 = vmatprep.subr.bf16.mxu0 0
        %931 = vmatpush1.bf16.msra.mxu0 0
        %932 = vmatprep.subr.bf16.mxu0 0
        %933 = vmatpush1.bf16.msra.mxu0 0
        %934 = vmatprep.subr.bf16.mxu0 0
        %935 = vmatpush1.bf16.msra.mxu0 0
        %936 = vmatprep.subr.bf16.mxu0 0
        %937 = vmatpush1.bf16.msra.mxu0 0
        %938 = vmatprep.subr.bf16.mxu0 0
        %939 = vmatpush1.bf16.msra.mxu0 %v922
        %940 = vmatprep.subr.bf16.mxu0 0
        %941 = vmatpush2.bf16.msra.mxu0 0
        %942 = vmatprep.subr.bf16.mxu0 0
        %943 = vmatpush2.bf16.msra.mxu0 0
        %944 = vmatprep.subr.bf16.mxu0 0
        %945 = vmatpush2.bf16.msra.mxu0 0
        %946 = vmatprep.subr.bf16.mxu0 0
        %947 = vmatpush2.bf16.msra.mxu0 0
        %948 = vmatprep.subr.bf16.mxu0 0
        %949 = vmatpush2.bf16.msra.mxu0 0
        %950 = vmatprep.subr.bf16.mxu0 0
        %951 = vmatpush2.bf16.msra.mxu0 0
        %952 = vmatprep.subr.bf16.mxu0 0
        %953 = vmatpush2.bf16.msra.mxu0 0
        %954 = vmatprep.subr.bf16.mxu0 0
        %955 = vmatpush2.bf16.msra.mxu0 0
        %956 = vmatprep.mubr.bf16.mxu0 0
        %957 = vmatmul.mubr.bf16.gmra.mxu0 %v918
        %v958 = vpop.f32.mrf.mxu0
        %v959 = vadd.f32 0.0, %v958
        %v960 = vpop.f32.mrf.mxu0
        %v961 = vpop.f32.mrf.mxu0
        %v962 = vpop.f32.mrf.mxu0
        %963 = vdwg.mxu0
        %v964 = vpack.c.bf16 %v959, %v959
        %vm965 = vcmask 60416
        %966 = vst.msk [vmem:[#allocation4] sm:$0xf] %vm965, %v964
        %v967 = vld [vmem:[#allocation2] sm:$0xf]
        %v968 = vld [vmem:[#allocation3] sm:$0xf]
        %970 = vrot.lane.b32.xlu0 %v845, 120
        %v971 = vpop.permute.xlu0 %970
        %v973 = vunpack.c.l.b16 %v967
        %v974 = vpack.c.b16 %v973, %v973
        %975 = vrot.lane.b32.xlu0 %v974, 120
        %v976 = vpop.permute.xlu0 %975
        %v978 = vsel %vm857, %v971, 0
        %v981 = vsel %vm857, %v976, 0
        %983 = vmatprep.subr.bf16.mxu0 0
        %984 = vmatpush1.bf16.xpose.msra.mxu0 0
        %985 = vmatprep.subr.bf16.mxu0 0
        %986 = vmatpush1.bf16.xpose.msra.mxu0 0
        %987 = vmatprep.subr.bf16.mxu0 0
        %988 = vmatpush1.bf16.xpose.msra.mxu0 0
        %989 = vmatprep.subr.bf16.mxu0 0
        %990 = vmatpush1.bf16.xpose.msra.mxu0 0
        %991 = vmatprep.subr.bf16.mxu0 0
        %992 = vmatpush1.bf16.xpose.msra.mxu0 0
        %993 = vmatprep.subr.bf16.mxu0 0
        %994 = vmatpush1.bf16.xpose.msra.mxu0 0
        %995 = vmatprep.subr.bf16.mxu0 0
        %996 = vmatpush1.bf16.xpose.msra.mxu0 0
        %997 = vmatprep.subr.bf16.mxu0 0
        %998 = vmatpush1.bf16.xpose.msra.mxu0 %v981
        %999 = vmatprep.subr.bf16.mxu0 0
        %1000 = vmatpush2.bf16.xpose.msra.mxu0 0
        %1001 = vmatprep.subr.bf16.mxu0 0
        %1002 = vmatpush2.bf16.xpose.msra.mxu0 0
        %1003 = vmatprep.subr.bf16.mxu0 0
        %1004 = vmatpush2.bf16.xpose.msra.mxu0 0
        %1005 = vmatprep.subr.bf16.mxu0 0
        %1006 = vmatpush2.bf16.xpose.msra.mxu0 0
        %1007 = vmatprep.subr.bf16.mxu0 0
        %1008 = vmatpush2.bf16.xpose.msra.mxu0 0
        %1009 = vmatprep.subr.bf16.mxu0 0
        %1010 = vmatpush2.bf16.xpose.msra.mxu0 0
        %1011 = vmatprep.subr.bf16.mxu0 0
        %1012 = vmatpush2.bf16.xpose.msra.mxu0 0
        %1013 = vmatprep.subr.bf16.mxu0 0
        %1014 = vmatpush2.bf16.xpose.msra.mxu0 0
        %1015 = vmatprep.mubr.bf16.mxu0 0
        %1016 = vmatmul.mubr.bf16.gmra.mxu0 %v978
        %v1017 = vpop.f32.mrf.mxu0
        %v1018 = vadd.f32 %v855, %v1017
        %v1019 = vpop.f32.mrf.mxu0
        %v1020 = vpop.f32.mrf.mxu0
        %v1021 = vpop.f32.mrf.mxu0
        %1022 = vdwg.mxu0
        %v1023 = vsel %vm857, %v1018, -inf
        %1024 = vmax.xlane.f32.xlu0 %v1023
        %v1025 = vpop.xlane.xlu0 %1024
        %v1026 = vsub.f32 %v1018, %v1025
        %v1027 = vmul.f32 %v1026, 1.442695
        %v1028 = vpow.pop %v1027
        %v1029 = vsel %vm857, %v1028, 0.0
        %1030 = vadd.xlane.f32.xlu0 %v1029
        %v1031 = vpop.xlane.xlu0 %1030
        %v1032 = vrcp.pop %v1031
        %v1033 = vmul.f32 %v1028, %v1032
        %s1034 = scalar_lea.vmem %s625, 8 [#allocation18]
        %1035 = vst.msk [vmem:[%s1034] sm:$0xff] %vm857, %v1033
        %v1036 = vpack.c.bf16 %v1033, %v1033
        %v1038 = vunpack.c.l.b16 %v968
        %v1039 = vpack.c.b16 %v1038, %v1038
        %1040 = vrot.lane.b32.xlu0 %v1039, 120
        %v1041 = vpop.permute.xlu0 %1040
        %v1043 = vsel %vm857, %v1036, 0
        %v1046 = vsel %vm920, %v1041, 0
        %1048 = vmatprep.subr.bf16.mxu0 0
        %1049 = vmatpush1.bf16.msra.mxu0 0
        %1050 = vmatprep.subr.bf16.mxu0 0
        %1051 = vmatpush1.bf16.msra.mxu0 0
        %1052 = vmatprep.subr.bf16.mxu0 0
        %1053 = vmatpush1.bf16.msra.mxu0 0
        %1054 = vmatprep.subr.bf16.mxu0 0
        %1055 = vmatpush1.bf16.msra.mxu0 0
        %1056 = vmatprep.subr.bf16.mxu0 0
        %1057 = vmatpush1.bf16.msra.mxu0 0
        %1058 = vmatprep.subr.bf16.mxu0 0
        %1059 = vmatpush1.bf16.msra.mxu0 0
        %1060 = vmatprep.subr.bf16.mxu0 0
        %1061 = vmatpush1.bf16.msra.mxu0 0
        %1062 = vmatprep.subr.bf16.mxu0 0
        %1063 = vmatpush1.bf16.msra.mxu0 %v1046
        %1064 = vmatprep.subr.bf16.mxu0 0
        %1065 = vmatpush2.bf16.msra.mxu0 0
        %1066 = vmatprep.subr.bf16.mxu0 0
        %1067 = vmatpush2.bf16.msra.mxu0 0
        %1068 = vmatprep.subr.bf16.mxu0 0
        %1069 = vmatpush2.bf16.msra.mxu0 0
        %1070 = vmatprep.subr.bf16.mxu0 0
        %1071 = vmatpush2.bf16.msra.mxu0 0
        %1072 = vmatprep.subr.bf16.mxu0 0
        %1073 = vmatpush2.bf16.msra.mxu0 0
        %1074 = vmatprep.subr.bf16.mxu0 0
        %1075 = vmatpush2.bf16.msra.mxu0 0
        %1076 = vmatprep.subr.bf16.mxu0 0
        %1077 = vmatpush2.bf16.msra.mxu0 0
        %1078 = vmatprep.subr.bf16.mxu0 0
        %1079 = vmatpush2.bf16.msra.mxu0 0
        %1080 = vmatprep.mubr.bf16.mxu0 0
        %1081 = vmatmul.mubr.bf16.gmra.mxu0 %v1043
        %v1082 = vpop.f32.mrf.mxu0
        %v1083 = vadd.f32 0.0, %v1082
        %v1084 = vpop.f32.mrf.mxu0
        %v1085 = vpop.f32.mrf.mxu0
        %v1086 = vpop.f32.mrf.mxu0
        %1087 = vdwg.mxu0
        %v1088 = vpack.c.bf16 %v1083, %v1083
        %v1090 = vunpack.c.l.b16 %v1088
        %v1091 = vpack.c.b16 %v1090, %v1090
        %1092 = vrot.lane.b32.xlu0 %v1091, 8
        %v1093 = vpop.permute.xlu0 %1092
        %vm1095 = vcmask 126016
        %1096 = vst.msk [vmem:[#allocation4] sm:$0xf] %vm1095, %v1093
        %v1097 = vld [vmem:[#allocation2] sm:$0xf]
        %v1098 = vld [vmem:[#allocation3] sm:$0xf]
        %1099 = vrot.lane.b32.xlu0 %v845, 112
        %v1100 = vpop.permute.xlu0 %1099
        %v1102 = vunpack.c.l.b16 %v1097
        %v1103 = vpack.c.b16 %v1102, %v1102
        %1104 = vrot.lane.b32.xlu0 %v1103, 112
        %v1105 = vpop.permute.xlu0 %1104
        %v1107 = vsel %vm857, %v1100, 0
        %v1110 = vsel %vm857, %v1105, 0
        %1112 = vmatprep.subr.bf16.mxu0 0
        %1113 = vmatpush1.bf16.xpose.msra.mxu0 0
        %1114 = vmatprep.subr.bf16.mxu0 0
        %1115 = vmatpush1.bf16.xpose.msra.mxu0 0
        %1116 = vmatprep.subr.bf16.mxu0 0
        %1117 = vmatpush1.bf16.xpose.msra.mxu0 0
        %1118 = vmatprep.subr.bf16.mxu0 0
        %1119 = vmatpush1.bf16.xpose.msra.mxu0 0
        %1120 = vmatprep.subr.bf16.mxu0 0
        %1121 = vmatpush1.bf16.xpose.msra.mxu0 0
        %1122 = vmatprep.subr.bf16.mxu0 0
        %1123 = vmatpush1.bf16.xpose.msra.mxu0 0
        %1124 = vmatprep.subr.bf16.mxu0 0
        %1125 = vmatpush1.bf16.xpose.msra.mxu0 0
        %1126 = vmatprep.subr.bf16.mxu0 0
        %1127 = vmatpush1.bf16.xpose.msra.mxu0 %v1110
        %1128 = vmatprep.subr.bf16.mxu0 0
        %1129 = vmatpush2.bf16.xpose.msra.mxu0 0
        %1130 = vmatprep.subr.bf16.mxu0 0
        %1131 = vmatpush2.bf16.xpose.msra.mxu0 0
        %1132 = vmatprep.subr.bf16.mxu0 0
        %1133 = vmatpush2.bf16.xpose.msra.mxu0 0
        %1134 = vmatprep.subr.bf16.mxu0 0
        %1135 = vmatpush2.bf16.xpose.msra.mxu0 0
        %1136 = vmatprep.subr.bf16.mxu0 0
        %1137 = vmatpush2.bf16.xpose.msra.mxu0 0
        %1138 = vmatprep.subr.bf16.mxu0 0
        %1139 = vmatpush2.bf16.xpose.msra.mxu0 0
        %1140 = vmatprep.subr.bf16.mxu0 0
        %1141 = vmatpush2.bf16.xpose.msra.mxu0 0
        %1142 = vmatprep.subr.bf16.mxu0 0
        %1143 = vmatpush2.bf16.xpose.msra.mxu0 0
        %1144 = vmatprep.mubr.bf16.mxu0 0
        %1145 = vmatmul.mubr.bf16.gmra.mxu0 %v1107
        %v1146 = vpop.f32.mrf.mxu0
        %v1147 = vadd.f32 %v855, %v1146
        %v1148 = vpop.f32.mrf.mxu0
        %v1149 = vpop.f32.mrf.mxu0
        %v1150 = vpop.f32.mrf.mxu0
        %1151 = vdwg.mxu0
        %v1152 = vsel %vm857, %v1147, -inf
        %1153 = vmax.xlane.f32.xlu0 %v1152
        %v1154 = vpop.xlane.xlu0 %1153
        %v1155 = vsub.f32 %v1147, %v1154
        %v1156 = vmul.f32 %v1155, 1.442695
        %v1157 = vpow.pop %v1156
        %v1158 = vsel %vm857, %v1157, 0.0
        %1159 = vadd.xlane.f32.xlu0 %v1158
        %v1160 = vpop.xlane.xlu0 %1159
        %v1161 = vrcp.pop %v1160
        %v1162 = vmul.f32 %v1157, %v1161
        %s1163 = scalar_lea.vmem %s625, 16 [#allocation18]
        %1164 = vst.msk [vmem:[%s1163] sm:$0xff] %vm857, %v1162
        %v1165 = vpack.c.bf16 %v1162, %v1162
        %v1167 = vunpack.c.l.b16 %v1098
        %v1168 = vpack.c.b16 %v1167, %v1167
        %1169 = vrot.lane.b32.xlu0 %v1168, 112
        %v1170 = vpop.permute.xlu0 %1169
        %v1172 = vsel %vm857, %v1165, 0
        %v1175 = vsel %vm920, %v1170, 0
        %1177 = vmatprep.subr.bf16.mxu0 0
        %1178 = vmatpush1.bf16.msra.mxu0 0
        %1179 = vmatprep.subr.bf16.mxu0 0
        %1180 = vmatpush1.bf16.msra.mxu0 0
        %1181 = vmatprep.subr.bf16.mxu0 0
        %1182 = vmatpush1.bf16.msra.mxu0 0
        %1183 = vmatprep.subr.bf16.mxu0 0
        %1184 = vmatpush1.bf16.msra.mxu0 0
        %1185 = vmatprep.subr.bf16.mxu0 0
        %1186 = vmatpush1.bf16.msra.mxu0 0
        %1187 = vmatprep.subr.bf16.mxu0 0
        %1188 = vmatpush1.bf16.msra.mxu0 0
        %1189 = vmatprep.subr.bf16.mxu0 0
        %1190 = vmatpush1.bf16.msra.mxu0 0
        %1191 = vmatprep.subr.bf16.mxu0 0
        %1192 = vmatpush1.bf16.msra.mxu0 %v1175
        %1193 = vmatprep.subr.bf16.mxu0 0
        %1194 = vmatpush2.bf16.msra.mxu0 0
        %1195 = vmatprep.subr.bf16.mxu0 0
        %1196 = vmatpush2.bf16.msra.mxu0 0
        %1197 = vmatprep.subr.bf16.mxu0 0
        %1198 = vmatpush2.bf16.msra.mxu0 0
        %1199 = vmatprep.subr.bf16.mxu0 0
        %1200 = vmatpush2.bf16.msra.mxu0 0
        %1201 = vmatprep.subr.bf16.mxu0 0
        %1202 = vmatpush2.bf16.msra.mxu0 0
        %1203 = vmatprep.subr.bf16.mxu0 0
        %1204 = vmatpush2.bf16.msra.mxu0 0
        %1205 = vmatprep.subr.bf16.mxu0 0
        %1206 = vmatpush2.bf16.msra.mxu0 0
        %1207 = vmatprep.subr.bf16.mxu0 0
        %1208 = vmatpush2.bf16.msra.mxu0 0
        %1209 = vmatprep.mubr.bf16.mxu0 0
        %1210 = vmatmul.mubr.bf16.gmra.mxu0 %v1172
        %v1211 = vpop.f32.mrf.mxu0
        %v1212 = vadd.f32 0.0, %v1211
        %v1213 = vpop.f32.mrf.mxu0
        %v1214 = vpop.f32.mrf.mxu0
        %v1215 = vpop.f32.mrf.mxu0
        %1216 = vdwg.mxu0
        %v1217 = vpack.c.bf16 %v1212, %v1212
        %v1219 = vunpack.c.l.b16 %v1217
        %v1220 = vpack.c.b16 %v1219, %v1219
        %1221 = vrot.lane.b32.xlu0 %v1220, 16
        %v1222 = vpop.permute.xlu0 %1221
        %vm1224 = vcmask 191616
        %1225 = vst.msk [vmem:[#allocation4] sm:$0xf] %vm1224, %v1222
        %v1226 = vld [vmem:[#allocation2] sm:$0xf]
        %v1227 = vld [vmem:[#allocation3] sm:$0xf]
        %1228 = vrot.lane.b32.xlu0 %v845, 104
        %v1229 = vpop.permute.xlu0 %1228
        %v1231 = vunpack.c.l.b16 %v1226
        %v1232 = vpack.c.b16 %v1231, %v1231
        %1233 = vrot.lane.b32.xlu0 %v1232, 104
        %v1234 = vpop.permute.xlu0 %1233
        %v1236 = vsel %vm857, %v1229, 0
        %v1239 = vsel %vm857, %v1234, 0
        %1241 = vmatprep.subr.bf16.mxu0 0
        %1242 = vmatpush1.bf16.xpose.msra.mxu0 0
        %1243 = vmatprep.subr.bf16.mxu0 0
        %1244 = vmatpush1.bf16.xpose.msra.mxu0 0
        %1245 = vmatprep.subr.bf16.mxu0 0
        %1246 = vmatpush1.bf16.xpose.msra.mxu0 0
        %1247 = vmatprep.subr.bf16.mxu0 0
        %1248 = vmatpush1.bf16.xpose.msra.mxu0 0
        %1249 = vmatprep.subr.bf16.mxu0 0
        %1250 = vmatpush1.bf16.xpose.msra.mxu0 0
        %1251 = vmatprep.subr.bf16.mxu0 0
        %1252 = vmatpush1.bf16.xpose.msra.mxu0 0
        %1253 = vmatprep.subr.bf16.mxu0 0
        %1254 = vmatpush1.bf16.xpose.msra.mxu0 0
        %1255 = vmatprep.subr.bf16.mxu0 0
        %1256 = vmatpush1.bf16.xpose.msra.mxu0 %v1239
        %1257 = vmatprep.subr.bf16.mxu0 0
        %1258 = vmatpush2.bf16.xpose.msra.mxu0 0
        %1259 = vmatprep.subr.bf16.mxu0 0
        %1260 = vmatpush2.bf16.xpose.msra.mxu0 0
        %1261 = vmatprep.subr.bf16.mxu0 0
        %1262 = vmatpush2.bf16.xpose.msra.mxu0 0
        %1263 = vmatprep.subr.bf16.mxu0 0
        %1264 = vmatpush2.bf16.xpose.msra.mxu0 0
        %1265 = vmatprep.subr.bf16.mxu0 0
        %1266 = vmatpush2.bf16.xpose.msra.mxu0 0
        %1267 = vmatprep.subr.bf16.mxu0 0
        %1268 = vmatpush2.bf16.xpose.msra.mxu0 0
        %1269 = vmatprep.subr.bf16.mxu0 0
        %1270 = vmatpush2.bf16.xpose.msra.mxu0 0
        %1271 = vmatprep.subr.bf16.mxu0 0
        %1272 = vmatpush2.bf16.xpose.msra.mxu0 0
        %1273 = vmatprep.mubr.bf16.mxu0 0
        %1274 = vmatmul.mubr.bf16.gmra.mxu0 %v1236
        %v1275 = vpop.f32.mrf.mxu0
        %v1276 = vadd.f32 %v855, %v1275
        %v1277 = vpop.f32.mrf.mxu0
        %v1278 = vpop.f32.mrf.mxu0
        %v1279 = vpop.f32.mrf.mxu0
        %1280 = vdwg.mxu0
        %v1281 = vsel %vm857, %v1276, -inf
        %1282 = vmax.xlane.f32.xlu0 %v1281
        %v1283 = vpop.xlane.xlu0 %1282
        %v1284 = vsub.f32 %v1276, %v1283
        %v1285 = vmul.f32 %v1284, 1.442695
        %v1286 = vpow.pop %v1285
        %v1287 = vsel %vm857, %v1286, 0.0
        %1288 = vadd.xlane.f32.xlu0 %v1287
        %v1289 = vpop.xlane.xlu0 %1288
        %v1290 = vrcp.pop %v1289
        %v1291 = vmul.f32 %v1286, %v1290
        %s1292 = scalar_lea.vmem %s625, 24 [#allocation18]
        %1293 = vst.msk [vmem:[%s1292] sm:$0xff] %vm857, %v1291
        %v1294 = vpack.c.bf16 %v1291, %v1291
        %v1296 = vunpack.c.l.b16 %v1227
        %v1297 = vpack.c.b16 %v1296, %v1296
        %1298 = vrot.lane.b32.xlu0 %v1297, 104
        %v1299 = vpop.permute.xlu0 %1298
        %v1301 = vsel %vm857, %v1294, 0
        %v1304 = vsel %vm920, %v1299, 0
        %1306 = vmatprep.subr.bf16.mxu0 0
        %1307 = vmatpush1.bf16.msra.mxu0 0
        %1308 = vmatprep.subr.bf16.mxu0 0
        %1309 = vmatpush1.bf16.msra.mxu0 0
        %1310 = vmatprep.subr.bf16.mxu0 0
        %1311 = vmatpush1.bf16.msra.mxu0 0
        %1312 = vmatprep.subr.bf16.mxu0 0
        %1313 = vmatpush1.bf16.msra.mxu0 0
        %1314 = vmatprep.subr.bf16.mxu0 0
        %1315 = vmatpush1.bf16.msra.mxu0 0
        %1316 = vmatprep.subr.bf16.mxu0 0
        %1317 = vmatpush1.bf16.msra.mxu0 0
        %1318 = vmatprep.subr.bf16.mxu0 0
        %1319 = vmatpush1.bf16.msra.mxu0 0
        %1320 = vmatprep.subr.bf16.mxu0 0
        %1321 = vmatpush1.bf16.msra.mxu0 %v1304
        %1322 = vmatprep.subr.bf16.mxu0 0
        %1323 = vmatpush2.bf16.msra.mxu0 0
        %1324 = vmatprep.subr.bf16.mxu0 0
        %1325 = vmatpush2.bf16.msra.mxu0 0
        %1326 = vmatprep.subr.bf16.mxu0 0
        %1327 = vmatpush2.bf16.msra.mxu0 0
        %1328 = vmatprep.subr.bf16.mxu0 0
        %1329 = vmatpush2.bf16.msra.mxu0 0
        %1330 = vmatprep.subr.bf16.mxu0 0
        %1331 = vmatpush2.bf16.msra.mxu0 0
        %1332 = vmatprep.subr.bf16.mxu0 0
        %1333 = vmatpush2.bf16.msra.mxu0 0
        %1334 = vmatprep.subr.bf16.mxu0 0
        %1335 = vmatpush2.bf16.msra.mxu0 0
        %1336 = vmatprep.subr.bf16.mxu0 0
        %1337 = vmatpush2.bf16.msra.mxu0 0
        %1338 = vmatprep.mubr.bf16.mxu0 0
        %1339 = vmatmul.mubr.bf16.gmra.mxu0 %v1301
        %v1340 = vpop.f32.mrf.mxu0
        %v1341 = vadd.f32 0.0, %v1340
        %v1342 = vpop.f32.mrf.mxu0
        %v1343 = vpop.f32.mrf.mxu0
        %v1344 = vpop.f32.mrf.mxu0
        %1345 = vdwg.mxu0
        %v1346 = vpack.c.bf16 %v1341, %v1341
        %v1348 = vunpack.c.l.b16 %v1346
        %v1349 = vpack.c.b16 %v1348, %v1348
        %1350 = vrot.lane.b32.xlu0 %v1349, 24
        %v1351 = vpop.permute.xlu0 %1350
        %vm1353 = vcmask 257216
        %1354 = vst.msk [vmem:[#allocation4] sm:$0xf] %vm1353, %v1351
        %v1355 = vld [vmem:[#allocation4] sm:$0xf]
        %v1356 = vld [vmem:[#allocation16] sm:$0xf]
        %v1357 = vld [vmem:[#allocation16 + $0x4] sm:$0xf]
        %v1358 = vld [vmem:[#allocation16 + $0x8] sm:$0xf]
        %v1359 = vld [vmem:[#allocation16 + $0xc] sm:$0xf]
        %v1360 = vld [vmem:[%s11] sm:$0x1]
        %v1362 = vlaneseq
        %v1363 = vshrl.u32 %v1362, 7
        %v1364 = vsub.s32 0, %v1363
        %v1365 = vrot.slane %v1360, %v1364
        %v1371 = vunpack.c.l.b16 %v1356
        %v1372 = vunpack.c.l.b16 %v1357
        %v1373 = vunpack.c.l.b16 %v1358
        %v1374 = vunpack.c.l.b16 %v1359
        %v1375 = vpack.c.b16 %v1372, %v1371
        %v1376 = vpack.c.b16 %v1374, %v1373
        %v1380 = vsel %vm801, %v1355, 0
        %1382 = vmatprep.subr.bf16.mxu0 0
        %1383 = vmatpush1.bf16.msra.mxu0 0
        %1384 = vmatprep.subr.bf16.mxu0 0
        %1385 = vmatpush1.bf16.msra.mxu0 0
        %1386 = vmatprep.subr.bf16.mxu0 0
        %1387 = vmatpush1.bf16.msra.mxu0 0
        %1388 = vmatprep.subr.bf16.mxu0 0
        %1389 = vmatpush1.bf16.msra.mxu0 0
        %1390 = vmatprep.subr.bf16.mxu0 0
        %1391 = vmatpush1.bf16.msra.mxu0 0
        %1392 = vmatprep.subr.bf16.mxu0 0
        %1393 = vmatpush1.bf16.msra.mxu0 0
        %1394 = vmatprep.subr.bf16.mxu0 0
        %1395 = vmatpush1.bf16.msra.mxu0 %v1376
        %1396 = vmatprep.subr.bf16.mxu0 0
        %1397 = vmatpush1.bf16.msra.mxu0 %v1375
        %1398 = vmatprep.subr.bf16.mxu0 0
        %1399 = vmatpush2.bf16.msra.mxu0 0
        %1400 = vmatprep.subr.bf16.mxu0 0
        %1401 = vmatpush2.bf16.msra.mxu0 0
        %1402 = vmatprep.subr.bf16.mxu0 0
        %1403 = vmatpush2.bf16.msra.mxu0 0
        %1404 = vmatprep.subr.bf16.mxu0 0
        %1405 = vmatpush2.bf16.msra.mxu0 0
        %1406 = vmatprep.subr.bf16.mxu0 0
        %1407 = vmatpush2.bf16.msra.mxu0 0
        %1408 = vmatprep.subr.bf16.mxu0 0
        %1409 = vmatpush2.bf16.msra.mxu0 0
        %1410 = vmatprep.subr.bf16.mxu0 0
        %1411 = vmatpush2.bf16.msra.mxu0 0
        %1412 = vmatprep.subr.bf16.mxu0 0
        %1413 = vmatpush2.bf16.msra.mxu0 0
        %1414 = vmatprep.mubr.bf16.mxu0 0
        %1415 = vmatmul.mubr.bf16.gmra.mxu0 %v1380
        %v1416 = vpop.f32.mrf.mxu0
        %v1417 = vadd.f32 %v1365, %v1416
        %v1418 = vpop.f32.mrf.mxu0
        %v1419 = vpop.f32.mrf.mxu0
        %v1420 = vpop.f32.mrf.mxu0
        %1421 = vdwg.mxu0
        %1422 = vst.msk [vmem:[%s618] sm:$0xff] %vm801, %v1417
        %s1423 = sand.u32 %s335, 1
        %s1424 = scalar_lea.sflag [#allocation7], %s1423
        %s1425 = sand.u32 %s335, 1
        %s1426 = smul.addr %s1425, 8
        %s1427 = scalar_lea.vmem [#allocation17], %s1426
        %s1428 = sand.u32 %s363, 1
        %s1429 = scalar_lea.sflag [#allocation19], %s1428
        %s1430 = sand.u32 %s363, 1
        %s1431 = smul.addr %s1430, 32
        %s1432 = scalar_lea.vmem [#allocation18], %s1431
        // Predicated region
        $region101: #{tpu_custom_call.1} parent=67 // pred_check
          %p1433 = pneg %p345
        $region102: #{tpu_custom_call.1} parent=67 // pred_check_branch
          %1435 = sbr.rel (%p1433) target = $region104
        $region103: #{tpu_custom_call.1} parent=67 // pred_region
          %s1437 = ssub.s32 128, 128
          %1438 = vsyncadd %s1424, %s1437
          %s1439 = sadd.s32 %s44, %s43
          %s1440 = smul.addr %s1439, 128
          %s1441 = scalar_lea.hbm %s12, %s1440
          %s1443 = sshll.u32 %s1427, 4
          %s1444 = int_to_ptr.vmem [resolvable:$true] %s1443
          %1446 = dma.vmem_to_hbm [thread:$0]  %s1444, 128, %s1441, %s1424
        $region104: #{tpu_custom_call.1} parent=67 // pred_fallthru
          _
        // Predicated region
        $region105: #{tpu_custom_call.1} parent=67 // pred_check
          %p1447 = pneg %p373
        $region106: #{tpu_custom_call.1} parent=67 // pred_check_branch
          %1449 = sbr.rel (%p1447) target = $region108
        $region107: #{tpu_custom_call.1} parent=67 // pred_region
          %s1451 = ssub.s32 512, 512
          %1452 = vsyncadd %s1429, %s1451
          %s1453 = smul.addr %s43, 4
          %s1454 = sadd.s32 %s44, %s1453
          %s1455 = smul.addr %s1454, 128
          %s1456 = scalar_lea.hbm %s13, %s1455
          %s1457 = sshll.u32 %s1432, 4
          %s1458 = int_to_ptr.vmem [resolvable:$true] %s1457
          %1463 = dma.vmem_to_hbm [thread:$0]  %s1458, 512, %s1456, %s1429, 128, 128, 8
        $region108: #{tpu_custom_call.1} parent=67 // pred_fallthru
          _
      $region68: #{tpu_custom_call.1} parent=5 // pred_fallthru
        _
      %p1464 = scmp.le.s32.totalorder 2, %s34
      // Predicated region
      $region109: #{tpu_custom_call.1} parent=5 // pred_check
        %p1465 = pneg %p1464
      $region110: #{tpu_custom_call.1} parent=5 // pred_check_branch
        %1467 = sbr.rel (%p1465) target = $region112
      $region111: #{tpu_custom_call.1} parent=5 // pred_region
        %s1468 = ssub.s32 %s34, 2
        // Predicated region
        $region113: #{tpu_custom_call.1} parent=111 // pred_check
          %p1469 = pneg %p351
        $region114: #{tpu_custom_call.1} parent=111 // pred_check_branch
          %1471 = sbr.rel (%p1469) target = $region116
        $region115: #{tpu_custom_call.1} parent=111 // pred_region
          %s1472 = sand.u32 %s336, 1
          %s1473 = scalar_lea.sflag [#allocation7], %s1472
          %s1474 = sand.u32 %s336, 1
          %s1475 = smul.addr %s1474, 8
          %s1476 = scalar_lea.vmem [#allocation17], %s1475
          %1477 = dma.done %s1473, 128
        $region116: #{tpu_custom_call.1} parent=111 // pred_fallthru
          _
        // Predicated region
        $region117: #{tpu_custom_call.1} parent=111 // pred_check
          %p1478 = pneg %p379
        $region118: #{tpu_custom_call.1} parent=111 // pred_check_branch
          %1480 = sbr.rel (%p1478) target = $region120
        $region119: #{tpu_custom_call.1} parent=111 // pred_region
          %s1481 = sand.u32 %s364, 1
          %s1482 = scalar_lea.sflag [#allocation19], %s1481
          %s1483 = sand.u32 %s364, 1
          %s1484 = smul.addr %s1483, 32
          %s1485 = scalar_lea.vmem [#allocation18], %s1484
          %1486 = dma.done %s1482, 512
        $region120: #{tpu_custom_call.1} parent=111 // pred_fallthru
          _
      $region112: #{tpu_custom_call.1} parent=5 // pred_fallthru
        _
    $region6: #{tpu_custom_call.1} parent=1 // loop_footer
      %s38 = sadd.s32 1, %s34
    $region7: #{tpu_custom_call.1} parent=1 // loop_footer_branch
      %33 = sbr.rel target = $region3
    $region8: #{tpu_custom_call.1} parent=1 // loop_exit
      _
    %1487 = vsyncpa [#allocation6], 1
    %s1488 = scalar_lea.sflag [#allocation6], 1
    %1489 = vsyncpa %s1488, 1
    %1490 = vsyncpa [#allocation9], 1
    %s1491 = scalar_lea.sflag [#allocation9], 1
    %1492 = vsyncpa %s1491, 1
    %1493 = vsyncpa [#allocation12], 1
    %1494 = vsyncpa [#allocation15], 1
    %1495 = vsyncpa [#allocation7], 1
    %s1496 = scalar_lea.sflag [#allocation7], 1
    %1497 = vsyncpa %s1496, 1
    %1498 = vsyncpa [#allocation19], 1
    %s1499 = scalar_lea.sflag [#allocation19], 1
    %1500 = vsyncpa %s1499, 1

</llo_original>
